<compile_context>
chip_gen: v7x
topology: tpu7x:2x2x1
jax: 0.10.0
libtpu: 0.0.40
codegen_flags: <defaults>
</compile_context>

<pallas_src>
import math
from functools import partial

import jax
import jax.numpy as jnp
from jax import lax
from jax.experimental import pallas as pl
from jax.experimental.pallas import tpu as pltpu

BF16 = jnp.bfloat16
VMEM_LIMIT = 32 * 1024 * 1024           # <= 32 MiB: fits v7x (64 MiB VMEM) too


def _ru(v, m):
    return ((v + m - 1) // m) * m


def _epilogue(y, scale, shift, act):
    y = y * scale + shift
    if act == 'relu':
        y = jnp.maximum(y, 0.0)
    elif act == 'sigmoid':
        y = jax.nn.sigmoid(y)
    return y


# --------------------------------------------------------------------------
# Pallas kernel 1: K-tiled matmul  out = act((X @ W) * scale + shift)
# Used for all 1x1 convs and for im2col'ed (dilated / big-channel) kxk convs.
# --------------------------------------------------------------------------
def _mm_kernel(x_ref, w_ref, s_ref, b_ref, o_ref, acc_ref, *, act):
    k = pl.program_id(2)

    @pl.when(k == 0)
    def _():
        acc_ref[...] = jnp.zeros_like(acc_ref)

    acc_ref[...] += jnp.dot(x_ref[...], w_ref[...],
                            preferred_element_type=jnp.float32)

    @pl.when(k == pl.num_programs(2) - 1)
    def _():
        o_ref[...] = _epilogue(acc_ref[...], s_ref[...], b_ref[...],
                               act).astype(o_ref.dtype)


def _pick_tn(np_):
    if np_ <= 128:
        return np_
    for t in (512, 256, 128):
        if np_ % t == 0:
            return t
    return np_


def _pick_tk(kp):
    if kp <= 2304:
        return kp
    for t in (2304, 2048, 1536, 1152, 1024, 512, 256, 128):
        if kp % t == 0:
            return t
    return kp                                  # fall back: single K block


def _matmul_pallas(xf, wm, scale, shift, *, act, out_dtype):
    """xf: (m, K) float, wm: (Kp, Np) bf16 (K<=Kp), scale/shift: (1, Np)."""
    m, kin = xf.shape
    kp, np_ = wm.shape
    tn = _pick_tn(np_)
    tk = _pick_tk(kp)
    cap = 1024 if kp <= 1280 else 256
    if m >= cap:
        tm = cap
        for t in (cap, cap // 2, cap // 4):
            if m % t == 0:
                tm = t
                break
    else:
        tm = _ru(max(m, 8), 8)
    mp = _ru(m, tm)
    assert np_ % tn == 0 and kp % tk == 0

    xf = xf.astype(BF16)
    if mp != m or kp != kin:
        xf = jnp.pad(xf, ((0, mp - m), (0, kp - kin)))

    y = pl.pallas_call(
        partial(_mm_kernel, act=act),
        out_shape=jax.ShapeDtypeStruct((mp, np_), out_dtype),
        grid_spec=pltpu.PrefetchScalarGridSpec(
            num_scalar_prefetch=0,
            grid=(mp // tm, np_ // tn, kp // tk),
            in_specs=[
                pl.BlockSpec((tm, tk), lambda i, j, k: (i, k)),
                pl.BlockSpec((tk, tn), lambda i, j, k: (k, j)),
                pl.BlockSpec((1, tn), lambda i, j, k: (0, j)),
                pl.BlockSpec((1, tn), lambda i, j, k: (0, j)),
            ],
            out_specs=pl.BlockSpec((tm, tn), lambda i, j, k: (i, j)),
            scratch_shapes=[pltpu.VMEM((tm, tn), jnp.float32)]),
        compiler_params=pltpu.CompilerParams(
            dimension_semantics=("parallel", "parallel", "arbitrary"),
            vmem_limit_bytes=VMEM_LIMIT),
    )(xf, wm, scale, shift)

    return y[:m] if mp != m else y


@partial(jax.jit, static_argnames=('act', 'out_dtype', 'cout'))
def _conv1x1_p(x, wm, scale, shift, *, act, out_dtype, cout):
    n, h, w, c = x.shape
    y = _matmul_pallas(x.reshape(n * h * w, c), wm, scale, shift,
                       act=act, out_dtype=out_dtype)
    if y.shape[1] != cout:
        y = y[:, :cout]
    return y.reshape(n, h, w, cout)


@partial(jax.jit, static_argnames=('ksize', 'dil', 'act', 'out_dtype', 'cout'))
def _conv_col_p(x, wm, scale, shift, *, ksize, dil, act, out_dtype, cout):
    """kxk (possibly dilated) conv as a full im2col matmul (small spatial)."""
    n, h, w, c = x.shape
    pd = dil * ((ksize - 1) // 2)
    xp = jnp.pad(x.astype(BF16), ((0, 0), (pd, pd), (pd, pd), (0, 0)))
    cols = [xp[:, dy * dil:dy * dil + h, dx * dil:dx * dil + w, :]
            for dy in range(ksize) for dx in range(ksize)]
    xcol = jnp.concatenate(cols, axis=-1).reshape(n * h * w, ksize * ksize * c)
    y = _matmul_pallas(xcol, wm, scale, shift, act=act, out_dtype=out_dtype)
    if y.shape[1] != cout:
        y = y[:, :cout]
    return y.reshape(n, h, w, cout)


# --------------------------------------------------------------------------
# Pallas kernel 2: 3x3 (dil=1) conv for big-spatial / small-channel layers.
#
# The spatially padded image is a flat (rows, Cin) matrix with row stride Wp;
# tap (dy, dx) of output row m' is input row m' + dy*Wp + dx.  Each grid step
# manually DMAs exactly tm+halo contiguous rows of X from HBM into a
# double-buffered VMEM stage (prefetching the next block), then accumulates
# the 9 taps as shifted MXU matmuls and applies the fused epilogue.
# --------------------------------------------------------------------------
def _conv_tap_kernel(x_hbm, w_ref, s_ref, b_ref, o_ref, stage, sem,
                     *, offs, tm, rows_in, act):
    i = pl.program_id(0)
    ni = pl.num_programs(0)
    slot = lax.rem(i, 2)

    def start_dma(block, slot_idx):
        src = x_hbm.at[pl.ds(block * tm, rows_in)]
        pltpu.make_async_copy(src, stage.at[slot_idx], sem.at[slot_idx]).start()

    def wait_dma(slot_idx):
        src = x_hbm.at[pl.ds(0, rows_in)]
        pltpu.make_async_copy(src, stage.at[slot_idx], sem.at[slot_idx]).wait()

    @pl.when(i == 0)
    def _():
        start_dma(0, 0)

    wait_dma(slot)                       # rows for this block are now in VMEM

    @pl.when(i + 1 < ni)
    def _():
        start_dma(i + 1, 1 - slot)       # overlap next block's DMA with compute

    xs = stage.at[slot]
    acc = jnp.dot(xs[offs[0]:offs[0] + tm, :], w_ref[0],
                  preferred_element_type=jnp.float32)
    for t in range(1, len(offs)):
        off = offs[t]
        acc = acc + jnp.dot(xs[off:off + tm, :], w_ref[t],
                            preferred_element_type=jnp.float32)
    o_ref[...] = _epilogue(acc, s_ref[...], b_ref[...], act).astype(o_ref.dtype)


@partial(jax.jit, static_argnames=('act', 'out_dtype', 'cout'))
def _conv_tap_p(x, wm, scale, shift, *, act, out_dtype, cout):
    """Single image (N==1) 3x3 conv, padding=1, dilation=1."""
    n, h, w, c = x.shape
    taps, cp, np_ = wm.shape
    hp, wp = h + 2, w + 2
    m = hp * wp                                  # padded-grid output rows
    halo = 2 * wp + 2
    halo_pad = _ru(halo, 8)

    nb = max(1, -(-m // 4096))                   # row-band tiles of <=~4096 rows
    tm = _ru(-(-m // nb), 8)
    ni = -(-m // tm)
    rows_in = tm + halo_pad
    need = ni * tm + halo_pad
    extra_h = -(-(need - m) // wp)               # extra bottom rows, single pad

    xp = jnp.pad(x.astype(BF16),
                 ((0, 0), (1, 1 + extra_h), (1, 1), (0, cp - c)))
    xf = xp.reshape((hp + extra_h) * wp, cp)

    offs = tuple(dy * wp + dx for dy in range(3) for dx in range(3))

    y = pl.pallas_call(
        partial(_conv_tap_kernel, offs=offs, tm=tm, rows_in=rows_in, act=act),
        out_shape=jax.ShapeDtypeStruct((ni * tm, np_), out_dtype),
        grid_spec=pltpu.PrefetchScalarGridSpec(
            num_scalar_prefetch=0,
            grid=(ni,),
            in_specs=[
                pl.BlockSpec(memory_space=pl.ANY),          # X stays in HBM
                pl.BlockSpec((taps, cp, np_), lambda i: (0, 0, 0)),
                pl.BlockSpec((1, np_), lambda i: (0, 0)),
                pl.BlockSpec((1, np_), lambda i: (0, 0)),
            ],
            out_specs=pl.BlockSpec((tm, np_), lambda i: (i, 0)),
            scratch_shapes=[pltpu.VMEM((2, rows_in, cp), BF16),
                            pltpu.SemaphoreType.DMA((2,))]),
        compiler_params=pltpu.CompilerParams(
            # sequential so the manual double-buffering stays valid (these
            # convs are memory-bound, a second core would not add HBM BW)
            dimension_semantics=("arbitrary",),
            vmem_limit_bytes=VMEM_LIMIT),
    )(xf, wm, scale, shift)

    y = y[:m].reshape(1, hp, wp, np_)[:, :h, :w, :cout]
    return y


def _conv_tap_batched(x, wm, scale, shift, *, act, out_dtype, cout):
    if x.shape[0] == 1:
        return _conv_tap_p(x, wm, scale, shift, act=act,
                           out_dtype=out_dtype, cout=cout)
    ys = [_conv_tap_p(x[i:i + 1], wm, scale, shift, act=act,
                      out_dtype=out_dtype, cout=cout)
          for i in range(x.shape[0])]
    return jnp.concatenate(ys, axis=0)


# --------------------------------------------------------------------------
# Conv dispatch (tiny-channel convs stay in plain JAX)
# --------------------------------------------------------------------------
def conv_jnp(x, p, act, out_dtype):
    wh = p['w_hwio']
    xf = x.astype(jnp.float32)
    if p['k'] == 1:
        y = jnp.einsum('nhwc,co->nhwo', xf, wh[0, 0])
    else:
        pd = p['dil'] * ((p['k'] - 1) // 2)
        y = lax.conv_general_dilated(
            xf, wh, window_strides=(1, 1), padding=((pd, pd), (pd, pd)),
            rhs_dilation=(p['dil'], p['dil']),
            dimension_numbers=('NHWC', 'HWIO', 'NHWC'))
    y = _epilogue(y, p['scale'], p['shift'], act)
    return y.astype(out_dtype)


def conv(x, p, act='none', out_dtype=BF16):
    mode = p['mode']
    if mode == 'jax':
        return conv_jnp(x, p, act, out_dtype)
    if mode == 'mm':
        return _conv1x1_p(x, p['wm'], p['scale'], p['shift'],
                          act=act, out_dtype=out_dtype, cout=p['cout'])
    if mode == 'col':
        return _conv_col_p(x, p['wm'], p['scale'], p['shift'],
                           ksize=p['k'], dil=p['dil'],
                           act=act, out_dtype=out_dtype, cout=p['cout'])
    return _conv_tap_batched(x, p['wm'], p['scale'], p['shift'],
                             act=act, out_dtype=out_dtype, cout=p['cout'])


# --------------------------------------------------------------------------
# Layout glue (NHWC)
# --------------------------------------------------------------------------
def maxpool2d(x, k):
    n, h, w, c = x.shape
    oh, ow = h // k, w // k
    x = x[:, :oh * k, :ow * k, :].reshape(n, oh, k, ow, k, c)
    return x.max(axis=(2, 4))


def upsample_nearest(x, s):
    n, h, w, c = x.shape
    x = jnp.broadcast_to(x[:, :, None, :, None, :], (n, h, s, w, s, c))
    return x.reshape(n, h * s, w * s, c)


def interp_bilinear_ac(x, oh, ow):
    """F.interpolate(..., mode='bilinear', align_corners=True) in NHWC."""
    n, ih, iw, c = x.shape

    def coords(o, i):
        if i == 1:
            return jnp.zeros((o,), jnp.float32)
        return jnp.arange(o, dtype=jnp.float32) * ((i - 1) / (o - 1))

    ys, xs = coords(oh, ih), coords(ow, iw)
    y0 = jnp.floor(ys).astype(jnp.int32)
    x0 = jnp.floor(xs).astype(jnp.int32)
    y1 = jnp.minimum(y0 + 1, ih - 1)
    x1 = jnp.minimum(x0 + 1, iw - 1)
    wy = (ys - y0)[:, None, None]
    wx = (xs - x0)[None, :, None]
    xf = x.astype(jnp.float32)
    g = lambda yi, xi: xf[:, yi, :, :][:, :, xi, :]
    top = g(y0, x0) * (1 - wx) + g(y0, x1) * wx
    bot = g(y1, x0) * (1 - wx) + g(y1, x1) * wx
    return top * (1 - wy) + bot * wy


# --------------------------------------------------------------------------
# Parameter construction (pre-folded BN, pre-transposed / pre-padded weights)
# --------------------------------------------------------------------------
class PG:
    def __init__(self, seed=0):
        self.key = jax.random.PRNGKey(seed)

    def next(self):
        self.key, k = jax.random.split(self.key)
        return k


def _pack_conv(w, b, k, dil, *, bn=False):
    cout, cin = int(w.shape[0]), int(w.shape[1])
    if bn:  # inference-mode BN, PyTorch defaults, folded into the epilogue
        s = 1.0 / jnp.sqrt(jnp.ones((cout,), jnp.float32) + 1e-5)
        scale, shift = s, b * s
    else:
        scale, shift = jnp.ones((cout,), jnp.float32), b

    pallas = (cin >= 8 and cout >= 8)
    if not pallas:
        mode = 'jax'
    elif k == 1:
        mode = 'mm'
    elif dil > 1 or cin >= 128 or cout > 128:
        mode = 'col'     # dilated / deep convs (small spatial): im2col matmul
    else:
        mode = 'tap'     # big-spatial small-channel 3x3: shifted-tap kernel

    p = {'k': k, 'dil': dil, 'cin': cin, 'cout': cout, 'mode': mode}
    w_hwio = jnp.transpose(w, (2, 3, 1, 0))            # (kh, kw, Cin, Cout)

    if mode == 'jax':
        p['w_hwio'] = w_hwio
        p['scale'] = scale.reshape(1, cout)
        p['shift'] = shift.reshape(1, cout)
        return p

    # lane-dense outputs when that costs <= 2x, else just sublane-aligned
    np_ = _ru(cout, 128) if cout >= 64 else _ru(cout, 8)
    p['scale'] = jnp.pad(scale, (0, np_ - cout)).reshape(1, np_)
    p['shift'] = jnp.pad(shift, (0, np_ - cout)).reshape(1, np_)

    if mode == 'mm':
        kp = _ru(cin, 8)
        wm = jnp.pad(w_hwio.reshape(cin, cout),
                     ((0, kp - cin), (0, np_ - cout)))
    elif mode == 'col':
        kk = k * k * cin
        kp = _ru(kk, 8) if kk <= 2304 else _ru(kk, 1152)
        wm = jnp.pad(w_hwio.reshape(kk, cout),
                     ((0, kp - kk), (0, np_ - cout)))
    else:  # tap
        cp = _ru(cin, 8)
        wm = jnp.pad(w_hwio.reshape(k * k, cin, cout),
                     ((0, 0), (0, cp - cin), (0, np_ - cout)))
    p['wm'] = wm.astype(BF16)
    return p


def make_conv(pg, cin, cout, k, *, dil=1, bn=False, in_scale=1.0):
    fan_in = cin * k * k
    w = (jax.random.normal(pg.next(), (cout, cin, k, k), jnp.float32)
         / math.sqrt(fan_in)) * in_scale
    b = jnp.zeros((cout,), jnp.float32)
    return _pack_conv(w, b, k, dil, bn=bn)


def make_fused3(pg, cin, outs):
    """Three sibling 1x1 convs sharing the same input -> one matmul."""
    ws, bs = [], []
    for o in outs:
        ws.append(jax.random.normal(pg.next(), (o, cin, 1, 1), jnp.float32)
                  / math.sqrt(cin))
        bs.append(jnp.zeros((o,), jnp.float32))
    return _pack_conv(jnp.concatenate(ws, 0), jnp.concatenate(bs, 0), 1, 1)


def init_double_conv1(pg, ch):
    # Leading BatchNorm(defaults) is a uniform scalar scale 1/sqrt(1+eps);
    # it is folded into conv1's weights.  Its ReLU is applied by the producer
    # (pyramid: channel123 epilogue; pcps: channel111/222/333 already ReLU).
    s0 = 1.0 / math.sqrt(1.0 + 1e-5)
    return {'conv1': make_conv(pg, ch, ch // 2, 3, bn=True, in_scale=s0),
            'conv2': make_conv(pg, ch // 2, ch, 3)}


def init_pyramid_conv(pg, in_ch, out_ch):
    return {'channel': make_conv(pg, in_ch, out_ch, 1),
            'channel123': make_fused3(pg, out_ch,
                                      (out_ch // 2, out_ch // 4, out_ch // 4)),
            'split': (out_ch // 2, out_ch // 4, out_ch // 4),
            'conv': init_double_conv1(pg, out_ch // 2),
            'convup': init_double_conv1(pg, out_ch // 4),
            'convdown': init_double_conv1(pg, out_ch // 4)}


def init_pcps(pg, in_ch, out_ch, ch1, ch2, ch3):
    return {'channel': make_conv(pg, in_ch, out_ch, 1),
            'channel123': make_fused3(pg, out_ch,
                                      (out_ch // 2, out_ch // 4, out_ch // 4)),
            'split': (out_ch // 2, out_ch // 4, out_ch // 4),
            'channel11': make_conv(pg, ch2, out_ch // 2, 1, bn=True),
            'channel22': make_conv(pg, ch1, out_ch // 4, 1, bn=True),
            'channel33': make_conv(pg, ch3, out_ch // 4, 1, bn=True),
            'channel111': make_conv(pg, out_ch, out_ch // 2, 1, bn=True),
            'channel222': make_conv(pg, out_ch // 2, out_ch // 4, 1, bn=True),
            'channel333': make_conv(pg, out_ch // 2, out_ch // 4, 1, bn=True),
            'conv': init_double_conv1(pg, out_ch // 2),
            'convup': init_double_conv1(pg, out_ch // 4),
            'convdown': init_double_conv1(pg, out_ch // 4)}


def init_dac(pg, ch):
    return {'dilate1': make_conv(pg, ch, ch, 3, dil=1),
            'dilate2': make_conv(pg, ch, ch, 3, dil=3),
            'dilate3': make_conv(pg, ch, ch, 3, dil=5),
            'conv1x1': make_conv(pg, ch, ch, 1)}


def init_punet(pg, n_channels=3, n_classes=1):
    return {'inc': init_pyramid_conv(pg, n_channels, 64),
            'down1': init_pyramid_conv(pg, 64, 128),
            'down2': init_pyramid_conv(pg, 128, 256),
            'down3': init_pyramid_conv(pg, 256, 512),
            'down4': init_pyramid_conv(pg, 512, 1024),
            'up1': init_pcps(pg, 1024 + 4, 256, 288, 576, 640),
            'up2': init_pcps(pg, 256, 128, 144, 288, 576),
            'up3': init_pcps(pg, 128, 64, 64, 144, 288),
            'up4': init_pcps(pg, 64, 64, 16, 64, 144),
            'outc': make_conv(pg, 64, n_classes, 1),
            'dblock': init_dac(pg, 1024),
            'spp': make_conv(pg, 1024, 1, 1),
            'upp2': make_conv(pg, 64, n_classes, 1),
            'upp4': make_conv(pg, 128, n_classes, 1),
            'upp8': make_conv(pg, 256, n_classes, 1),
            'upp16': make_conv(pg, 1024 + 4, n_classes, 1),
            'sup1': make_conv(pg, n_classes * 5, n_classes * 5, 3),
            'sup2': make_conv(pg, n_classes * 5, n_classes, 1)}


# --------------------------------------------------------------------------
# Module forward functions (NHWC)
# --------------------------------------------------------------------------
def double_conv1_fwd(p, x):
    # x is already ReLU'd by its producer; the scalar BN0 scale sits in conv1.
    y = conv(x, p['conv1'], act='relu')     # conv1 + folded BN1 + ReLU
    y = conv(y, p['conv2'])
    return y


def pyramid_conv_fwd(p, x):
    x = conv(x, p['channel'])
    # ReLU in the epilogue folds double_conv1's leading BN(defaults)+ReLU
    # (ReLU commutes with nearest-upsample and maxpool).
    x123 = conv(x, p['channel123'], act='relu')
    o1, o2, _ = p['split']
    x1 = x123[..., :o1]
    x2 = upsample_nearest(x123[..., o1:o1 + o2], 2)
    x3 = maxpool2d(x123[..., o1 + o2:], 2)
    xxx1 = double_conv1_fwd(p['conv'], x1)
    xxx2 = double_conv1_fwd(p['convup'], x2)
    xxx3 = double_conv1_fwd(p['convdown'], x3)
    xx3 = upsample_nearest(xxx3, 2)
    xx2 = maxpool2d(xxx2, 2)
    # TODO(synk): the concat + residual add could be absorbed into the last
    # convs' out BlockSpecs (channel-slab writes) to save one HBM pass.
    xx = jnp.concatenate([xxx1, xx2, xx3], axis=-1)
    return xx + x, xxx2, xxx1, xxx3


def downn_fwd(p, x):
    return pyramid_conv_fwd(p, maxpool2d(x, 2))


def pcps_fwd(p, x, xxxx1, xxxx2, xxxx3):
    x = conv(x, p['channel'])
    x123 = conv(x, p['channel123'])
    o1, o2, _ = p['split']
    x1 = x123[..., :o1]
    x2 = upsample_nearest(x123[..., o1:o1 + o2], 2)
    x3 = maxpool2d(x123[..., o1 + o2:], 2)
    xxxx1 = conv(xxxx1, p['channel22'], act='relu')
    xxxx2 = conv(xxxx2, p['channel11'], act='relu')
    xxxx3 = conv(xxxx3, p['channel33'], act='relu')
    x1 = jnp.concatenate([x1, xxxx2], axis=-1)
    x2 = jnp.concatenate([x2, xxxx1], axis=-1)
    x3 = jnp.concatenate([x3, xxxx3], axis=-1)
    x1 = conv(x1, p['channel111'], act='relu')
    x2 = conv(x2, p['channel222'], act='relu')
    x3 = conv(x3, p['channel333'], act='relu')
    xx1 = double_conv1_fwd(p['conv'], x1)
    xx2 = double_conv1_fwd(p['convup'], x2)
    xx3 = double_conv1_fwd(p['convdown'], x3)
    xx3 = upsample_nearest(xx3, 2)
    xx2 = maxpool2d(xx2, 2)
    xx = jnp.concatenate([xx1, xx2, xx3], axis=-1)
    return xx + x


def upp_fwd(p, x1, x3, x4, x5):
    return pcps_fwd(p, upsample_nearest(x1, 2), x3, x4, x5)


def dac_fwd(p, x):
    d1 = conv(x, p['dilate1'])
    d2 = conv(x, p['dilate2'])
    o1 = jnp.maximum(d1, 0)
    o2 = conv(d2, p['conv1x1'], act='relu')
    t = conv(d1, p['dilate2'])
    o3 = conv(t, p['conv1x1'], act='relu')
    u = conv(t, p['dilate3'])
    o4 = conv(u, p['conv1x1'], act='relu')
    return (x + o1 + o2 + o3 + o4).astype(x.dtype)


def spp_fwd(p_conv, x):
    n, h, w, c = x.shape
    outs = []
    for k in (2, 3, 5, 6):
        y = conv(maxpool2d(x, k), p_conv, out_dtype=jnp.float32)
        outs.append(interp_bilinear_ac(y, h, w).astype(x.dtype))
    return jnp.concatenate(outs + [x], axis=-1)


def punet_forward(p, x):
    x = jnp.transpose(x, (0, 2, 3, 1))      # NCHW -> NHWC (only at the edges)

    x1, x11, x12, x13 = pyramid_conv_fwd(p['inc'], x)
    x2, x21, x22, x23 = downn_fwd(p['down1'], x1)
    x3, x31, x32, x33 = downn_fwd(p['down2'], x2)
    x4, x41, x42, x43 = downn_fwd(p['down3'], x3)
    x5, x51, x52, x53 = downn_fwd(p['down4'], x4)

    xxx1 = x11
    xxx2 = jnp.concatenate([x12, x21], axis=-1)
    xxx3 = jnp.concatenate([x13, x22, x31], axis=-1)
    xxx4 = jnp.concatenate([x23, x32, x41], axis=-1)
    xxx5 = jnp.concatenate([x33, x42, x51], axis=-1)
    xxx6 = jnp.concatenate([x43, x52], axis=-1)
    # xxx7 = x53 is computed by the PyTorch module but never used.

    x5 = dac_fwd(p['dblock'], x5)
    xx6 = spp_fwd(p['spp'], x5)
    xx5 = upp_fwd(p['up1'], xx6, xxx4, xxx5, xxx6)
    xx4 = upp_fwd(p['up2'], xx5, xxx3, xxx4, xxx5)
    xx3 = upp_fwd(p['up3'], xx4, xxx2, xxx3, xxx4)
    xx2 = upp_fwd(p['up4'], xx3, xxx1, xxx2, xxx3)

    xx1 = conv(xx2, p['outc'], out_dtype=jnp.float32)
    pred2 = upsample_nearest(conv(xx3, p['upp2'], out_dtype=jnp.float32), 2)
    pred4 = upsample_nearest(conv(xx4, p['upp4'], out_dtype=jnp.float32), 4)
    pred8 = upsample_nearest(conv(xx5, p['upp8'], out_dtype=jnp.float32), 8)
    pred16 = upsample_nearest(conv(xx6, p['upp16'], out_dtype=jnp.float32), 16)

    xx = jnp.concatenate([xx1, pred2, pred4, pred8, pred16], axis=-1)
    xx = conv(xx, p['sup1'], out_dtype=jnp.float32)
    xx = conv(xx, p['sup2'], act='sigmoid', out_dtype=jnp.float32)
    return jnp.transpose(xx, (0, 3, 1, 2))   # NHWC -> NCHW


# --------------------------------------------------------------------------
if __name__ == "__main__":
    pg = PG(0)
    params = init_punet(pg, n_channels=3, n_classes=1)

    # Spatial size must be a multiple of 32 and >= 96 so the SPP pooling
    # (kernel 6) and the internal pyramid up/down stages stay well-defined.
    x = jax.random.normal(jax.random.PRNGKey(0), (1, 3, 96, 96), jnp.float32)

    out = punet_forward(params, x)
    out = jax.block_until_ready(out)
    assert out.shape == (1, 1, 96, 96), out.shape
    assert bool(jnp.all(jnp.isfinite(out)))
    assert bool(jnp.all((out >= 0.0) & (out <= 1.0)))
    print("KERNEL_OK")
</pallas_src>

<mosaic_0001>
module attributes {stable_mosaic.version = 11 : i64} {
  func.func @_mm_kernel(%arg0: i32, %arg1: i32, %arg2: i32, %arg3: memref<1024x64xbf16, #tpu.memory_space<vmem>>, %arg4: memref<64x128xbf16, #tpu.memory_space<vmem>>, %arg5: memref<1x128xf32, #tpu.memory_space<vmem>>, %arg6: memref<1x128xf32, #tpu.memory_space<vmem>>, %arg7: memref<1024x128xbf16, #tpu.memory_space<vmem>>, %arg8: memref<1024x128xf32, #tpu.memory_space<vmem>>) attributes {dimension_semantics = [#tpu.dimension_semantics<parallel>, #tpu.dimension_semantics<parallel>, #tpu.dimension_semantics<arbitrary>], iteration_bounds = array<i64: 9, 1, 1>, scalar_prefetch = 0 : i64, scratch_operands = 1 : i64, tpu.core_type = #tpu.core_type<tc>, window_params = [{transform_indices = @transform_0, window_bounds = array<i64: 1024, 64>}, {transform_indices = @transform_1, window_bounds = array<i64: 64, 128>}, {transform_indices = @transform_2, window_bounds = array<i64: 1, 128>}, {transform_indices = @transform_3, window_bounds = array<i64: 1, 128>}, {transform_indices = @transform_4, window_bounds = array<i64: 1024, 128>}]} {
    %c0_i32 = arith.constant 0 : i32
    %0 = arith.cmpi eq, %arg2, %c0_i32 : i32
    %1 = arith.extui %0 : i1 to i32
    %c0_i32_0 = arith.constant 0 : i32
    %2 = arith.cmpi ne, %1, %c0_i32_0 : i32
    scf.if %2 {
      %cst_10 = arith.constant 0.000000e+00 : f32
      %12 = vector.broadcast %cst_10 : f32 to vector<1024x128xf32>
      %c0_11 = arith.constant 0 : index
      %c0_12 = arith.constant 0 : index
      %13 = vector.load %arg8[%c0_11, %c0_12] : memref<1024x128xf32, #tpu.memory_space<vmem>>, vector<1024x128xf32>
      tpu.vector_store %arg8[%c0_11, %c0_12], %12 {strides = array<i32>} : memref<1024x128xf32, #tpu.memory_space<vmem>>, vector<1024x128xf32>,
    } else {
    }
    %c0 = arith.constant 0 : index
    %c0_1 = arith.constant 0 : index
    %3 = vector.load %arg8[%c0, %c0_1] : memref<1024x128xf32, #tpu.memory_space<vmem>>, vector<1024x128xf32>
    %c0_2 = arith.constant 0 : index
    %c0_3 = arith.constant 0 : index
    %4 = vector.load %arg3[%c0_2, %c0_3] : memref<1024x64xbf16, #tpu.memory_space<vmem>>, vector<1024x64xbf16>
    %c0_4 = arith.constant 0 : index
    %c0_5 = arith.constant 0 : index
    %5 = vector.load %arg4[%c0_4, %c0_5] : memref<64x128xbf16, #tpu.memory_space<vmem>>, vector<64x128xbf16>
    %cst = arith.constant dense<0.000000e+00> : vector<1024x128xf32>
    %6 = tpu.matmul %4, %5, %cst {dimension_numbers = #tpu.dot_dimension_numbers<[1], [0], [0], [1], [0, 0, 1, 1], [], []>} : vector<1024x64xbf16>, vector<64x128xbf16>, vector<1024x128xf32> -> vector<1024x128xf32>
    %7 = arith.addf %3, %6 : vector<1024x128xf32>
    %c0_6 = arith.constant 0 : index
    %c0_7 = arith.constant 0 : index
    %8 = vector.load %arg8[%c0_6, %c0_7] : memref<1024x128xf32, #tpu.memory_space<vmem>>, vector<1024x128xf32>
    tpu.vector_store %arg8[%c0_6, %c0_7], %7 {strides = array<i32>} : memref<1024x128xf32, #tpu.memory_space<vmem>>, vector<1024x128xf32>,
    %c0_i32_8 = arith.constant 0 : i32
    %9 = arith.cmpi eq, %arg2, %c0_i32_8 : i32
    %10 = arith.extui %9 : i1 to i32
    %c0_i32_9 = arith.constant 0 : i32
    %11 = arith.cmpi ne, %10, %c0_i32_9 : i32
    scf.if %11 {
      %c0_10 = arith.constant 0 : index
      %c0_11 = arith.constant 0 : index
      %12 = vector.load %arg8[%c0_10, %c0_11] : memref<1024x128xf32, #tpu.memory_space<vmem>>, vector<1024x128xf32>
      %c0_12 = arith.constant 0 : index
      %c0_13 = arith.constant 0 : index
      %13 = vector.load %arg5[%c0_12, %c0_13] : memref<1x128xf32, #tpu.memory_space<vmem>>, vector<1x128xf32>
      %c0_14 = arith.constant 0 : index
      %c0_15 = arith.constant 0 : index
      %14 = vector.load %arg6[%c0_14, %c0_15] : memref<1x128xf32, #tpu.memory_space<vmem>>, vector<1x128xf32>
      %15 = vector.broadcast %13 : vector<1x128xf32> to vector<1024x128xf32>
      %16 = arith.mulf %12, %15 : vector<1024x128xf32>
      %17 = vector.broadcast %14 : vector<1x128xf32> to vector<1024x128xf32>
      %18 = arith.addf %16, %17 : vector<1024x128xf32>
      %cst_16 = arith.constant 0.000000e+00 : f32
      %19 = vector.broadcast %cst_16 : f32 to vector<1024x128xf32>
      %20 = arith.maximumf %18, %19 : vector<1024x128xf32>
      %21 = arith.truncf %20 : vector<1024x128xf32> to vector<1024x128xbf16>
      %c0_17 = arith.constant 0 : index
      %c0_18 = arith.constant 0 : index
      %22 = vector.load %arg7[%c0_17, %c0_18] : memref<1024x128xbf16, #tpu.memory_space<vmem>>, vector<1024x128xbf16>
      tpu.vector_store %arg7[%c0_17, %c0_18], %21 {strides = array<i32>} : memref<1024x128xbf16, #tpu.memory_space<vmem>>, vector<1024x128xbf16>,
    } else {
    }
    return
  }
  func.func @transform_0(%arg0: i32, %arg1: i32, %arg2: i32) -> (i32, i32) {
    %c0_i32 = arith.constant 0 : i32
    return %arg0, %arg2 : i32, i32
  }
  func.func @transform_1(%arg0: i32, %arg1: i32, %arg2: i32) -> (i32, i32) {
    %c0_i32 = arith.constant 0 : i32
    return %arg2, %arg1 : i32, i32
  }
  func.func @transform_2(%arg0: i32, %arg1: i32, %arg2: i32) -> (i32, i32) {
    %c0_i32 = arith.constant 0 : i32
    %c0_i32_0 = arith.constant 0 : i32
    return %c0_i32, %arg1 : i32, i32
  }
  func.func @transform_3(%arg0: i32, %arg1: i32, %arg2: i32) -> (i32, i32) {
    %c0_i32 = arith.constant 0 : i32
    %c0_i32_0 = arith.constant 0 : i32
    return %c0_i32, %arg1 : i32, i32
  }
  func.func @transform_4(%arg0: i32, %arg1: i32, %arg2: i32) -> (i32, i32) {
    %c0_i32 = arith.constant 0 : i32
    return %arg0, %arg1 : i32, i32
  }
}

</mosaic_0001>

<llo_original>
// kernel: _conv1x1_p.1
$region0: #{_conv1x1_p.1}
  #allocation0 [shape = 'u32[]', space=smem, size = 0x4, offset = 0x4, fixed_abs, tag = 'smem constant byte address 0x4 - core index']
  #allocation1 [shape = 'u32[144,128]{1,0:T(1,128)}', space=vmem, size = 0x12000, scoped, tag = 'internal scratch']
  #allocation2 [shape = 'f32[1024,128]{1,0:T(8,128)}', space=vmem, size = 0x80000, scoped, tag = 'scratch operand']
  %s0 = inlined_call_operand.vmem [shape: bf16[9216,64], index: 0, kind: input, shape index: {}]
  %s1 = inlined_call_operand.vmem [shape: bf16[64,128], index: 1, kind: input, shape index: {}]
  %s2 = inlined_call_operand.vmem [shape: f32[1,128], index: 2, kind: input, shape index: {}]
  %s3 = inlined_call_operand.vmem [shape: f32[1,128], index: 3, kind: input, shape index: {}]
  %s4 = inlined_call_operand.vmem [shape: bf16[9216,128], index: 4, kind: output, shape index: {}]
  %s5 = sld [smem:[#allocation0]]
  $region57: #{_conv1x1_p.1} parent=0
    _
  %s7 = ssub.s32 1, %s5
  %s8 = scalar_select 0, %s7, %s5
  loop: start=0, step=1, limit=11
  $region2: #{_conv1x1_p.1} parent=0 // loop_pre_header
    _
  $region3: #{_conv1x1_p.1} parent=0 // loop_header
    %s10 = sphi 0, %s14
    %p11 = scmp.ge.s32.totalorder %s10, 11
    %s17 = sphi 0, %s36
    %s18 = sphi 0, %s32
    %s19 = sphi 0, %s28
    %s20 = sphi 0, %s17
    %s21 = sphi 0, %s18
    %s22 = sphi 0, %s19
    %s23 = sphi 0, %s20
    %s24 = sphi 0, %s21
    %s25 = sphi 0, %s22
    %s41 = sphi 0, %s43
    %s44 = sphi 0, %s41
    %s45 = sphi 0, %s44
    %s61 = sphi 0, %s45
    %s69 = sphi 0, %s71
    %s72 = sphi 0, %s69
    %s73 = sphi 0, %s72
    %s89 = sphi 0, %s73
    %s95 = sphi 0, %s97
    %s98 = sphi 0, %s95
    %s99 = sphi 0, %s98
    %s115 = sphi 0, %s99
    %s121 = sphi 0, %s123
    %s124 = sphi 0, %s121
    %s125 = sphi 0, %s124
    %s141 = sphi 0, %s125
    %s149 = sphi 0, %s151
    %s152 = sphi 0, %s149
    %s153 = sphi 0, %s152
    %s169 = sphi 0, %s153
  $region4: #{_conv1x1_p.1} parent=0 // loop_header_branch
    %13 = sbr.rel (%p11) target = $region8
  $region5: #{_conv1x1_p.1} parent=0 // loop_body
    %s15 = ssub.s32 %s10, 1
    %s16 = ssub.s32 %s10, 2
    %s26 = sadd.s32 1, %s19
    %p27 = scmp.ge.s32.totalorder %s26, 1
    %s28 = scalar_select %p27, 0, %s26
    %s29 = sadd.s32 1, %s18
    %s30 = scalar_select %p27, %s29, %s18
    %p31 = scmp.ge.s32.totalorder %s30, 1
    %s32 = scalar_select %p31, 0, %s30
    %s33 = sadd.s32 1, %s17
    %s34 = scalar_select %p31, %s33, %s17
    %p35 = scmp.ge.s32.totalorder %s34, 9
    %s36 = scalar_select %p35, 0, %s34
    %s37 = ssub.s32 %s17, %s36
    %s38 = ssub.s32 %s19, %s28
    %s39 = sor.u32 %s37, %s38
    %p40 = scmp.eq.s32.totalorder %s39, 0
    %s42 = sadd.s32 %s41, 1
    %s43 = scalar_select %p40, %s41, %s42
    %p46 = pneg %p40
    %p47 = scmp.eq.s32.totalorder %s10, 8
    %p48 = por %p46, %p47
    %p49 = scmp.ne.s32.totalorder %s41, %s44
    %p50 = scmp.eq.s32.totalorder %s10, 0
    %p51 = por %p49, %p50
    %p52 = scmp.ne.s32.totalorder %s41, %s44
    %p53 = scmp.eq.s32.totalorder %s15, 8
    %p54 = por %p52, %p53
    %p55 = scmp.ne.s32.totalorder %s44, %s45
    %p56 = scmp.eq.s32.totalorder %s15, 0
    %p57 = por %p55, %p56
    %p58 = scmp.ne.s32.totalorder %s44, %s45
    %p59 = scmp.eq.s32.totalorder %s16, 8
    %p60 = por %p58, %p59
    %p62 = scmp.ne.s32.totalorder %s45, %s61
    %p63 = scmp.eq.s32.totalorder %s16, 0
    %p64 = por %p62, %p63
    %s65 = ssub.s32 %s19, %s28
    %s66 = ssub.s32 %s18, %s32
    %s67 = sor.u32 %s65, %s66
    %p68 = scmp.eq.s32.totalorder %s67, 0
    %s70 = sadd.s32 %s69, 1
    %s71 = scalar_select %p68, %s69, %s70
    %p74 = pneg %p68
    %p75 = scmp.eq.s32.totalorder %s10, 8
    %p76 = por %p74, %p75
    %p77 = scmp.ne.s32.totalorder %s69, %s72
    %p78 = scmp.eq.s32.totalorder %s10, 0
    %p79 = por %p77, %p78
    %p80 = scmp.ne.s32.totalorder %s69, %s72
    %p81 = scmp.eq.s32.totalorder %s15, 8
    %p82 = por %p80, %p81
    %p83 = scmp.ne.s32.totalorder %s72, %s73
    %p84 = scmp.eq.s32.totalorder %s15, 0
    %p85 = por %p83, %p84
    %p86 = scmp.ne.s32.totalorder %s72, %s73
    %p87 = scmp.eq.s32.totalorder %s16, 8
    %p88 = por %p86, %p87
    %p90 = scmp.ne.s32.totalorder %s73, %s89
    %p91 = scmp.eq.s32.totalorder %s16, 0
    %p92 = por %p90, %p91
    %s93 = ssub.s32 %s18, %s32
    %p94 = scmp.eq.s32.totalorder %s93, 0
    %s96 = sadd.s32 %s95, 1
    %s97 = scalar_select %p94, %s95, %s96
    %p100 = pneg %p94
    %p101 = scmp.eq.s32.totalorder %s10, 8
    %p102 = por %p100, %p101
    %p103 = scmp.ne.s32.totalorder %s95, %s98
    %p104 = scmp.eq.s32.totalorder %s10, 0
    %p105 = por %p103, %p104
    %p106 = scmp.ne.s32.totalorder %s95, %s98
    %p107 = scmp.eq.s32.totalorder %s15, 8
    %p108 = por %p106, %p107
    %p109 = scmp.ne.s32.totalorder %s98, %s99
    %p110 = scmp.eq.s32.totalorder %s15, 0
    %p111 = por %p109, %p110
    %p112 = scmp.ne.s32.totalorder %s98, %s99
    %p113 = scmp.eq.s32.totalorder %s16, 8
    %p114 = por %p112, %p113
    %p116 = scmp.ne.s32.totalorder %s99, %s115
    %p117 = scmp.eq.s32.totalorder %s16, 0
    %p118 = por %p116, %p117
    %s119 = ssub.s32 %s18, %s32
    %p120 = scmp.eq.s32.totalorder %s119, 0
    %s122 = sadd.s32 %s121, 1
    %s123 = scalar_select %p120, %s121, %s122
    %p126 = pneg %p120
    %p127 = scmp.eq.s32.totalorder %s10, 8
    %p128 = por %p126, %p127
    %p129 = scmp.ne.s32.totalorder %s121, %s124
    %p130 = scmp.eq.s32.totalorder %s10, 0
    %p131 = por %p129, %p130
    %p132 = scmp.ne.s32.totalorder %s121, %s124
    %p133 = scmp.eq.s32.totalorder %s15, 8
    %p134 = por %p132, %p133
    %p135 = scmp.ne.s32.totalorder %s124, %s125
    %p136 = scmp.eq.s32.totalorder %s15, 0
    %p137 = por %p135, %p136
    %p138 = scmp.ne.s32.totalorder %s124, %s125
    %p139 = scmp.eq.s32.totalorder %s16, 8
    %p140 = por %p138, %p139
    %p142 = scmp.ne.s32.totalorder %s125, %s141
    %p143 = scmp.eq.s32.totalorder %s16, 0
    %p144 = por %p142, %p143
    %s145 = ssub.s32 %s17, %s36
    %s146 = ssub.s32 %s18, %s32
    %s147 = sor.u32 %s145, %s146
    %p148 = scmp.eq.s32.totalorder %s147, 0
    %s150 = sadd.s32 %s149, 1
    %s151 = scalar_select %p148, %s149, %s150
    %p154 = pneg %p148
    %p155 = scmp.eq.s32.totalorder %s10, 8
    %p156 = por %p154, %p155
    %p157 = scmp.ne.s32.totalorder %s149, %s152
    %p158 = scmp.eq.s32.totalorder %s10, 0
    %p159 = por %p157, %p158
    %p160 = scmp.ne.s32.totalorder %s149, %s152
    %p161 = scmp.eq.s32.totalorder %s15, 8
    %p162 = por %p160, %p161
    %p163 = scmp.ne.s32.totalorder %s152, %s153
    %p164 = scmp.eq.s32.totalorder %s15, 0
    %p165 = por %p163, %p164
    %p166 = scmp.ne.s32.totalorder %s152, %s153
    %p167 = scmp.eq.s32.totalorder %s16, 8
    %p168 = por %p166, %p167
    %p170 = scmp.ne.s32.totalorder %s153, %s169
    %p171 = scmp.eq.s32.totalorder %s16, 0
    %p172 = por %p170, %p171
    %p173 = scmp.le.s32.totalorder 1, %s10
    %p174 = scmp.lt.s32.totalorder %s10, 10
    %p175 = pnand %p173, %p174
    %p176 = pneg %p175
    // Predicated region
    $region9: #{_conv1x1_p.1} parent=5 // pred_check
      _
    $region10: #{_conv1x1_p.1} parent=5 // pred_check_branch
      %178 = sbr.rel (%p175) target = $region12
    $region11: #{_conv1x1_p.1} parent=5 // pred_region
      %s179 = ssub.s32 %s10, 1
      // Predicated region
      $region13: #{_conv1x1_p.1} parent=11 // pred_check
        %p180 = pneg %p85
      $region14: #{_conv1x1_p.1} parent=11 // pred_check_branch
        %182 = sbr.rel (%p180) target = $region16
      $region15: #{_conv1x1_p.1} parent=11 // pred_region
        %s183 = smul.u32 8, %s22
        %p184 = scmp.lt.s32.totalorder %s183, 7
        %s185 = scalar_select %p184, %s183, 7
        %p186 = scmp.lt.s32.totalorder %s21, 0
        %s187 = scalar_select %p186, %s21, 0
        %s188 = sadd.s32 %s187, %s185
        %s189 = smul.addr %s188, 4
        %s190 = scalar_lea.vmem %s1, %s189
        %s191 = smul.u32 8, %s22
      $region16: #{_conv1x1_p.1} parent=11 // pred_fallthru
        _
      // Predicated region
      $region17: #{_conv1x1_p.1} parent=11 // pred_check
        %p192 = pneg %p111
      $region18: #{_conv1x1_p.1} parent=11 // pred_check_branch
        %194 = sbr.rel (%p192) target = $region20
      $region19: #{_conv1x1_p.1} parent=11 // pred_region
        %p195 = scmp.lt.s32.totalorder %s21, 0
        %s196 = scalar_select %p195, %s21, 0
        %s197 = scalar_lea.vmem %s2, %s196
      $region20: #{_conv1x1_p.1} parent=11 // pred_fallthru
        _
      // Predicated region
      $region21: #{_conv1x1_p.1} parent=11 // pred_check
        %p198 = pneg %p137
      $region22: #{_conv1x1_p.1} parent=11 // pred_check_branch
        %200 = sbr.rel (%p198) target = $region24
      $region23: #{_conv1x1_p.1} parent=11 // pred_region
        %p201 = scmp.lt.s32.totalorder %s21, 0
        %s202 = scalar_select %p201, %s21, 0
        %s203 = scalar_lea.vmem %s3, %s202
      $region24: #{_conv1x1_p.1} parent=11 // pred_fallthru
        _
    $region12: #{_conv1x1_p.1} parent=5 // pred_fallthru
      _
    %p204 = scmp.lt.s32.totalorder %s10, 9
    // Predicated region
    $region25: #{_conv1x1_p.1} parent=5 // pred_check
      %p205 = pneg %p204
    $region26: #{_conv1x1_p.1} parent=5 // pred_check_branch
      %207 = sbr.rel (%p205) target = $region28
    $region27: #{_conv1x1_p.1} parent=5 // pred_region
      // Predicated region
      $region29: #{_conv1x1_p.1} parent=27 // pred_check
        %p208 = pneg %p51
      $region30: #{_conv1x1_p.1} parent=27 // pred_check_branch
        %210 = sbr.rel (%p208) target = $region32
      $region31: #{_conv1x1_p.1} parent=27 // pred_region
        %s211 = smul.u32 128, %s17
        %p212 = scmp.lt.s32.totalorder %s211, 1151
        %s213 = scalar_select %p212, %s211, 1151
        %p214 = scmp.lt.s32.totalorder %s19, 0
        %s215 = scalar_select %p214, %s19, 0
        %s216 = sadd.s32 %s215, %s213
        %s217 = smul.addr %s216, 4
        %s218 = scalar_lea.vmem %s0, %s217
        %s219 = smul.u32 128, %s17
      $region32: #{_conv1x1_p.1} parent=27 // pred_fallthru
        _
    $region28: #{_conv1x1_p.1} parent=5 // pred_fallthru
      _
    %p220 = scmp.le.s32.totalorder 1, %s10
    %p221 = scmp.lt.s32.totalorder %s10, 10
    %p222 = pnand %p220, %p221
    %p223 = pneg %p222
    // Predicated region
    $region33: #{_conv1x1_p.1} parent=5 // pred_check
      _
    $region34: #{_conv1x1_p.1} parent=5 // pred_check_branch
      %225 = sbr.rel (%p222) target = $region36
    $region35: #{_conv1x1_p.1} parent=5 // pred_region
      %s226 = ssub.s32 %s10, 1
      %s227 = smul.u32 128, %s20
      %p228 = scmp.lt.s32.totalorder %s227, 1151
      %s229 = scalar_select %p228, %s227, 1151
      %p230 = scmp.lt.s32.totalorder %s22, 0
      %s231 = scalar_select %p230, %s22, 0
      %s232 = sadd.s32 %s231, %s229
      %s233 = smul.addr %s232, 4
      %s234 = scalar_lea.vmem %s0, %s233
      %p235 = pneg %p57
      %p236 = pneg %p54
      %s237 = smul.u32 8, %s22
      %p238 = scmp.lt.s32.totalorder %s237, 7
      %s239 = scalar_select %p238, %s237, 7
      %p240 = scmp.lt.s32.totalorder %s21, 0
      %s241 = scalar_select %p240, %s21, 0
      %s242 = sadd.s32 %s241, %s239
      %s243 = smul.addr %s242, 4
      %s244 = scalar_lea.vmem %s1, %s243
      %p245 = pneg %p85
      %p246 = pneg %p82
      %p247 = scmp.lt.s32.totalorder %s21, 0
      %s248 = scalar_select %p247, %s21, 0
      %s249 = scalar_lea.vmem %s2, %s248
      %p250 = pneg %p111
      %p251 = pneg %p108
      %p252 = scmp.lt.s32.totalorder %s21, 0
      %s253 = scalar_select %p252, %s21, 0
      %s254 = scalar_lea.vmem %s3, %s253
      %p255 = pneg %p137
      %p256 = pneg %p134
      %p257 = pneg %p165
      %p258 = pneg %p162
      %s259 = smul.u32 128, %s20
      %p260 = scmp.lt.s32.totalorder %s259, 1151
      %s261 = scalar_select %p260, %s259, 1151
      %p262 = scmp.lt.s32.totalorder %s21, 0
      %s263 = scalar_select %p262, %s21, 0
      %s264 = sadd.s32 %s263, %s261
      %s265 = smul.addr %s264, 4
      %s266 = scalar_lea.vmem %s4, %s265
      %s267 = smul.u32 128, %s20
      %p268 = scmp.lt.s32.totalorder %s267, 1151
      %s269 = scalar_select %p268, %s267, 1151
      %p270 = scmp.lt.s32.totalorder %s22, 0
      %s271 = scalar_select %p270, %s22, 0
      %s272 = sadd.s32 %s271, %s269
      %s273 = smul.addr %s272, 4
      %s274 = scalar_lea.vmem %s0, %s273
      %s275 = smul.u32 128, %s20
      %s276 = smul.u32 8, %s22
      %p277 = scmp.lt.s32.totalorder %s276, 7
      %s278 = scalar_select %p277, %s276, 7
      %p279 = scmp.lt.s32.totalorder %s21, 0
      %s280 = scalar_select %p279, %s21, 0
      %s281 = sadd.s32 %s280, %s278
      %s282 = smul.addr %s281, 4
      %s283 = scalar_lea.vmem %s1, %s282
      %s284 = smul.u32 8, %s22
      %p285 = scmp.lt.s32.totalorder %s21, 0
      %s286 = scalar_select %p285, %s21, 0
      %s287 = scalar_lea.vmem %s2, %s286
      %p288 = scmp.lt.s32.totalorder %s21, 0
      %s289 = scalar_select %p288, %s21, 0
      %s290 = scalar_lea.vmem %s3, %s289
      %s291 = smul.u32 128, %s20
      %p292 = scmp.lt.s32.totalorder %s291, 1151
      %s293 = scalar_select %p292, %s291, 1151
      %p294 = scmp.lt.s32.totalorder %s21, 0
      %s295 = scalar_select %p294, %s21, 0
      %s296 = sadd.s32 %s295, %s293
      %s297 = smul.addr %s296, 4
      %s298 = scalar_lea.vmem %s4, %s297
      %s299 = smul.u32 128, %s20
      %p301 = scmp.eq.s32.totalorder %s22, 0
      // Predicated region
      $region37: #{_conv1x1_p.1} parent=35 // pred_check
        %p302 = pneg %p301
      $region38: #{_conv1x1_p.1} parent=35 // pred_check_branch
        %304 = sbr.rel (%p302) target = $region40
      $region39: #{_conv1x1_p.1} parent=35 // pred_region
        %305 = vst [vmem:[#allocation2] sm:$0xff] 0.0
        %306 = vst [vmem:[#allocation2 + $0x8] sm:$0xff] 0.0
        %307 = vst [vmem:[#allocation2 + $0x10] sm:$0xff] 0.0
        %308 = vst [vmem:[#allocation2 + $0x18] sm:$0xff] 0.0
        %309 = vst [vmem:[#allocation2 + $0x20] sm:$0xff] 0.0
        %310 = vst [vmem:[#allocation2 + $0x28] sm:$0xff] 0.0
        %311 = vst [vmem:[#allocation2 + $0x30] sm:$0xff] 0.0
        %312 = vst [vmem:[#allocation2 + $0x38] sm:$0xff] 0.0
        %313 = vst [vmem:[#allocation2 + $0x40] sm:$0xff] 0.0
        %314 = vst [vmem:[#allocation2 + $0x48] sm:$0xff] 0.0
        %315 = vst [vmem:[#allocation2 + $0x50] sm:$0xff] 0.0
        %316 = vst [vmem:[#allocation2 + $0x58] sm:$0xff] 0.0
        %317 = vst [vmem:[#allocation2 + $0x60] sm:$0xff] 0.0
        %318 = vst [vmem:[#allocation2 + $0x68] sm:$0xff] 0.0
        %319 = vst [vmem:[#allocation2 + $0x70] sm:$0xff] 0.0
        %320 = vst [vmem:[#allocation2 + $0x78] sm:$0xff] 0.0
        %321 = vst [vmem:[#allocation2 + $0x80] sm:$0xff] 0.0
        %322 = vst [vmem:[#allocation2 + $0x88] sm:$0xff] 0.0
        %323 = vst [vmem:[#allocation2 + $0x90] sm:$0xff] 0.0
        %324 = vst [vmem:[#allocation2 + $0x98] sm:$0xff] 0.0
        %325 = vst [vmem:[#allocation2 + $0xa0] sm:$0xff] 0.0
        %326 = vst [vmem:[#allocation2 + $0xa8] sm:$0xff] 0.0
        %327 = vst [vmem:[#allocation2 + $0xb0] sm:$0xff] 0.0
        %328 = vst [vmem:[#allocation2 + $0xb8] sm:$0xff] 0.0
        %329 = vst [vmem:[#allocation2 + $0xc0] sm:$0xff] 0.0
        %330 = vst [vmem:[#allocation2 + $0xc8] sm:$0xff] 0.0
        %331 = vst [vmem:[#allocation2 + $0xd0] sm:$0xff] 0.0
        %332 = vst [vmem:[#allocation2 + $0xd8] sm:$0xff] 0.0
        %333 = vst [vmem:[#allocation2 + $0xe0] sm:$0xff] 0.0
        %334 = vst [vmem:[#allocation2 + $0xe8] sm:$0xff] 0.0
        %335 = vst [vmem:[#allocation2 + $0xf0] sm:$0xff] 0.0
        %336 = vst [vmem:[#allocation2 + $0xf8] sm:$0xff] 0.0
        %337 = vst [vmem:[#allocation2 + $0x100] sm:$0xff] 0.0
        %338 = vst [vmem:[#allocation2 + $0x108] sm:$0xff] 0.0
        %339 = vst [vmem:[#allocation2 + $0x110] sm:$0xff] 0.0
        %340 = vst [vmem:[#allocation2 + $0x118] sm:$0xff] 0.0
        %341 = vst [vmem:[#allocation2 + $0x120] sm:$0xff] 0.0
        %342 = vst [vmem:[#allocation2 + $0x128] sm:$0xff] 0.0
        %343 = vst [vmem:[#allocation2 + $0x130] sm:$0xff] 0.0
        %344 = vst [vmem:[#allocation2 + $0x138] sm:$0xff] 0.0
        %345 = vst [vmem:[#allocation2 + $0x140] sm:$0xff] 0.0
        %346 = vst [vmem:[#allocation2 + $0x148] sm:$0xff] 0.0
        %347 = vst [vmem:[#allocation2 + $0x150] sm:$0xff] 0.0
        %348 = vst [vmem:[#allocation2 + $0x158] sm:$0xff] 0.0
        %349 = vst [vmem:[#allocation2 + $0x160] sm:$0xff] 0.0
        %350 = vst [vmem:[#allocation2 + $0x168] sm:$0xff] 0.0
        %351 = vst [vmem:[#allocation2 + $0x170] sm:$0xff] 0.0
        %352 = vst [vmem:[#allocation2 + $0x178] sm:$0xff] 0.0
        %353 = vst [vmem:[#allocation2 + $0x180] sm:$0xff] 0.0
        %354 = vst [vmem:[#allocation2 + $0x188] sm:$0xff] 0.0
        %355 = vst [vmem:[#allocation2 + $0x190] sm:$0xff] 0.0
        %356 = vst [vmem:[#allocation2 + $0x198] sm:$0xff] 0.0
        %357 = vst [vmem:[#allocation2 + $0x1a0] sm:$0xff] 0.0
        %358 = vst [vmem:[#allocation2 + $0x1a8] sm:$0xff] 0.0
        %359 = vst [vmem:[#allocation2 + $0x1b0] sm:$0xff] 0.0
        %360 = vst [vmem:[#allocation2 + $0x1b8] sm:$0xff] 0.0
        %361 = vst [vmem:[#allocation2 + $0x1c0] sm:$0xff] 0.0
        %362 = vst [vmem:[#allocation2 + $0x1c8] sm:$0xff] 0.0
        %363 = vst [vmem:[#allocation2 + $0x1d0] sm:$0xff] 0.0
        %364 = vst [vmem:[#allocation2 + $0x1d8] sm:$0xff] 0.0
        %365 = vst [vmem:[#allocation2 + $0x1e0] sm:$0xff] 0.0
        %366 = vst [vmem:[#allocation2 + $0x1e8] sm:$0xff] 0.0
        %367 = vst [vmem:[#allocation2 + $0x1f0] sm:$0xff] 0.0
        %368 = vst [vmem:[#allocation2 + $0x1f8] sm:$0xff] 0.0
        %369 = vst [vmem:[#allocation2 + $0x200] sm:$0xff] 0.0
        %370 = vst [vmem:[#allocation2 + $0x208] sm:$0xff] 0.0
        %371 = vst [vmem:[#allocation2 + $0x210] sm:$0xff] 0.0
        %372 = vst [vmem:[#allocation2 + $0x218] sm:$0xff] 0.0
        %373 = vst [vmem:[#allocation2 + $0x220] sm:$0xff] 0.0
        %374 = vst [vmem:[#allocation2 + $0x228] sm:$0xff] 0.0
        %375 = vst [vmem:[#allocation2 + $0x230] sm:$0xff] 0.0
        %376 = vst [vmem:[#allocation2 + $0x238] sm:$0xff] 0.0
        %377 = vst [vmem:[#allocation2 + $0x240] sm:$0xff] 0.0
        %378 = vst [vmem:[#allocation2 + $0x248] sm:$0xff] 0.0
        %379 = vst [vmem:[#allocation2 + $0x250] sm:$0xff] 0.0
        %380 = vst [vmem:[#allocation2 + $0x258] sm:$0xff] 0.0
        %381 = vst [vmem:[#allocation2 + $0x260] sm:$0xff] 0.0
        %382 = vst [vmem:[#allocation2 + $0x268] sm:$0xff] 0.0
        %383 = vst [vmem:[#allocation2 + $0x270] sm:$0xff] 0.0
        %384 = vst [vmem:[#allocation2 + $0x278] sm:$0xff] 0.0
        %385 = vst [vmem:[#allocation2 + $0x280] sm:$0xff] 0.0
        %386 = vst [vmem:[#allocation2 + $0x288] sm:$0xff] 0.0
        %387 = vst [vmem:[#allocation2 + $0x290] sm:$0xff] 0.0
        %388 = vst [vmem:[#allocation2 + $0x298] sm:$0xff] 0.0
        %389 = vst [vmem:[#allocation2 + $0x2a0] sm:$0xff] 0.0
        %390 = vst [vmem:[#allocation2 + $0x2a8] sm:$0xff] 0.0
        %391 = vst [vmem:[#allocation2 + $0x2b0] sm:$0xff] 0.0
        %392 = vst [vmem:[#allocation2 + $0x2b8] sm:$0xff] 0.0
        %393 = vst [vmem:[#allocation2 + $0x2c0] sm:$0xff] 0.0
        %394 = vst [vmem:[#allocation2 + $0x2c8] sm:$0xff] 0.0
        %395 = vst [vmem:[#allocation2 + $0x2d0] sm:$0xff] 0.0
        %396 = vst [vmem:[#allocation2 + $0x2d8] sm:$0xff] 0.0
        %397 = vst [vmem:[#allocation2 + $0x2e0] sm:$0xff] 0.0
        %398 = vst [vmem:[#allocation2 + $0x2e8] sm:$0xff] 0.0
        %399 = vst [vmem:[#allocation2 + $0x2f0] sm:$0xff] 0.0
        %400 = vst [vmem:[#allocation2 + $0x2f8] sm:$0xff] 0.0
        %401 = vst [vmem:[#allocation2 + $0x300] sm:$0xff] 0.0
        %402 = vst [vmem:[#allocation2 + $0x308] sm:$0xff] 0.0
        %403 = vst [vmem:[#allocation2 + $0x310] sm:$0xff] 0.0
        %404 = vst [vmem:[#allocation2 + $0x318] sm:$0xff] 0.0
        %405 = vst [vmem:[#allocation2 + $0x320] sm:$0xff] 0.0
        %406 = vst [vmem:[#allocation2 + $0x328] sm:$0xff] 0.0
        %407 = vst [vmem:[#allocation2 + $0x330] sm:$0xff] 0.0
        %408 = vst [vmem:[#allocation2 + $0x338] sm:$0xff] 0.0
        %409 = vst [vmem:[#allocation2 + $0x340] sm:$0xff] 0.0
        %410 = vst [vmem:[#allocation2 + $0x348] sm:$0xff] 0.0
        %411 = vst [vmem:[#allocation2 + $0x350] sm:$0xff] 0.0
        %412 = vst [vmem:[#allocation2 + $0x358] sm:$0xff] 0.0
        %413 = vst [vmem:[#allocation2 + $0x360] sm:$0xff] 0.0
        %414 = vst [vmem:[#allocation2 + $0x368] sm:$0xff] 0.0
        %415 = vst [vmem:[#allocation2 + $0x370] sm:$0xff] 0.0
        %416 = vst [vmem:[#allocation2 + $0x378] sm:$0xff] 0.0
        %417 = vst [vmem:[#allocation2 + $0x380] sm:$0xff] 0.0
        %418 = vst [vmem:[#allocation2 + $0x388] sm:$0xff] 0.0
        %419 = vst [vmem:[#allocation2 + $0x390] sm:$0xff] 0.0
        %420 = vst [vmem:[#allocation2 + $0x398] sm:$0xff] 0.0
        %421 = vst [vmem:[#allocation2 + $0x3a0] sm:$0xff] 0.0
        %422 = vst [vmem:[#allocation2 + $0x3a8] sm:$0xff] 0.0
        %423 = vst [vmem:[#allocation2 + $0x3b0] sm:$0xff] 0.0
        %424 = vst [vmem:[#allocation2 + $0x3b8] sm:$0xff] 0.0
        %425 = vst [vmem:[#allocation2 + $0x3c0] sm:$0xff] 0.0
        %426 = vst [vmem:[#allocation2 + $0x3c8] sm:$0xff] 0.0
        %427 = vst [vmem:[#allocation2 + $0x3d0] sm:$0xff] 0.0
        %428 = vst [vmem:[#allocation2 + $0x3d8] sm:$0xff] 0.0
        %429 = vst [vmem:[#allocation2 + $0x3e0] sm:$0xff] 0.0
        %430 = vst [vmem:[#allocation2 + $0x3e8] sm:$0xff] 0.0
        %431 = vst [vmem:[#allocation2 + $0x3f0] sm:$0xff] 0.0
        %432 = vst [vmem:[#allocation2 + $0x3f8] sm:$0xff] 0.0
      $region40: #{_conv1x1_p.1} parent=35 // pred_fallthru
        _
      %v433 = vld [vmem:[#allocation2] sm:$0xff]
      %v434 = vld [vmem:[#allocation2 + $0x8] sm:$0xff]
      %v435 = vld [vmem:[#allocation2 + $0x10] sm:$0xff]
      %v436 = vld [vmem:[#allocation2 + $0x18] sm:$0xff]
      %v437 = vld [vmem:[#allocation2 + $0x20] sm:$0xff]
      %v438 = vld [vmem:[#allocation2 + $0x28] sm:$0xff]
      %v439 = vld [vmem:[#allocation2 + $0x30] sm:$0xff]
      %v440 = vld [vmem:[#allocation2 + $0x38] sm:$0xff]
      %v441 = vld [vmem:[#allocation2 + $0x40] sm:$0xff]
      %v442 = vld [vmem:[#allocation2 + $0x48] sm:$0xff]
      %v443 = vld [vmem:[#allocation2 + $0x50] sm:$0xff]
      %v444 = vld [vmem:[#allocation2 + $0x58] sm:$0xff]
      %v445 = vld [vmem:[#allocation2 + $0x60] sm:$0xff]
      %v446 = vld [vmem:[#allocation2 + $0x68] sm:$0xff]
      %v447 = vld [vmem:[#allocation2 + $0x70] sm:$0xff]
      %v448 = vld [vmem:[#allocation2 + $0x78] sm:$0xff]
      %v449 = vld [vmem:[#allocation2 + $0x80] sm:$0xff]
      %v450 = vld [vmem:[#allocation2 + $0x88] sm:$0xff]
      %v451 = vld [vmem:[#allocation2 + $0x90] sm:$0xff]
      %v452 = vld [vmem:[#allocation2 + $0x98] sm:$0xff]
      %v453 = vld [vmem:[#allocation2 + $0xa0] sm:$0xff]
      %v454 = vld [vmem:[#allocation2 + $0xa8] sm:$0xff]
      %v455 = vld [vmem:[#allocation2 + $0xb0] sm:$0xff]
      %v456 = vld [vmem:[#allocation2 + $0xb8] sm:$0xff]
      %v457 = vld [vmem:[#allocation2 + $0xc0] sm:$0xff]
      %v458 = vld [vmem:[#allocation2 + $0xc8] sm:$0xff]
      %v459 = vld [vmem:[#allocation2 + $0xd0] sm:$0xff]
      %v460 = vld [vmem:[#allocation2 + $0xd8] sm:$0xff]
      %v461 = vld [vmem:[#allocation2 + $0xe0] sm:$0xff]
      %v462 = vld [vmem:[#allocation2 + $0xe8] sm:$0xff]
      %v463 = vld [vmem:[#allocation2 + $0xf0] sm:$0xff]
      %v464 = vld [vmem:[#allocation2 + $0xf8] sm:$0xff]
      %v465 = vld [vmem:[#allocation2 + $0x100] sm:$0xff]
      %v466 = vld [vmem:[#allocation2 + $0x108] sm:$0xff]
      %v467 = vld [vmem:[#allocation2 + $0x110] sm:$0xff]
      %v468 = vld [vmem:[#allocation2 + $0x118] sm:$0xff]
      %v469 = vld [vmem:[#allocation2 + $0x120] sm:$0xff]
      %v470 = vld [vmem:[#allocation2 + $0x128] sm:$0xff]
      %v471 = vld [vmem:[#allocation2 + $0x130] sm:$0xff]
      %v472 = vld [vmem:[#allocation2 + $0x138] sm:$0xff]
      %v473 = vld [vmem:[#allocation2 + $0x140] sm:$0xff]
      %v474 = vld [vmem:[#allocation2 + $0x148] sm:$0xff]
      %v475 = vld [vmem:[#allocation2 + $0x150] sm:$0xff]
      %v476 = vld [vmem:[#allocation2 + $0x158] sm:$0xff]
      %v477 = vld [vmem:[#allocation2 + $0x160] sm:$0xff]
      %v478 = vld [vmem:[#allocation2 + $0x168] sm:$0xff]
      %v479 = vld [vmem:[#allocation2 + $0x170] sm:$0xff]
      %v480 = vld [vmem:[#allocation2 + $0x178] sm:$0xff]
      %v481 = vld [vmem:[#allocation2 + $0x180] sm:$0xff]
      %v482 = vld [vmem:[#allocation2 + $0x188] sm:$0xff]
      %v483 = vld [vmem:[#allocation2 + $0x190] sm:$0xff]
      %v484 = vld [vmem:[#allocation2 + $0x198] sm:$0xff]
      %v485 = vld [vmem:[#allocation2 + $0x1a0] sm:$0xff]
      %v486 = vld [vmem:[#allocation2 + $0x1a8] sm:$0xff]
      %v487 = vld [vmem:[#allocation2 + $0x1b0] sm:$0xff]
      %v488 = vld [vmem:[#allocation2 + $0x1b8] sm:$0xff]
      %v489 = vld [vmem:[#allocation2 + $0x1c0] sm:$0xff]
      %v490 = vld [vmem:[#allocation2 + $0x1c8] sm:$0xff]
      %v491 = vld [vmem:[#allocation2 + $0x1d0] sm:$0xff]
      %v492 = vld [vmem:[#allocation2 + $0x1d8] sm:$0xff]
      %v493 = vld [vmem:[#allocation2 + $0x1e0] sm:$0xff]
      %v494 = vld [vmem:[#allocation2 + $0x1e8] sm:$0xff]
      %v495 = vld [vmem:[#allocation2 + $0x1f0] sm:$0xff]
      %v496 = vld [vmem:[#allocation2 + $0x1f8] sm:$0xff]
      %v497 = vld [vmem:[#allocation2 + $0x200] sm:$0xff]
      %v498 = vld [vmem:[#allocation2 + $0x208] sm:$0xff]
      %v499 = vld [vmem:[#allocation2 + $0x210] sm:$0xff]
      %v500 = vld [vmem:[#allocation2 + $0x218] sm:$0xff]
      %v501 = vld [vmem:[#allocation2 + $0x220] sm:$0xff]
      %v502 = vld [vmem:[#allocation2 + $0x228] sm:$0xff]
      %v503 = vld [vmem:[#allocation2 + $0x230] sm:$0xff]
      %v504 = vld [vmem:[#allocation2 + $0x238] sm:$0xff]
      %v505 = vld [vmem:[#allocation2 + $0x240] sm:$0xff]
      %v506 = vld [vmem:[#allocation2 + $0x248] sm:$0xff]
      %v507 = vld [vmem:[#allocation2 + $0x250] sm:$0xff]
      %v508 = vld [vmem:[#allocation2 + $0x258] sm:$0xff]
      %v509 = vld [vmem:[#allocation2 + $0x260] sm:$0xff]
      %v510 = vld [vmem:[#allocation2 + $0x268] sm:$0xff]
      %v511 = vld [vmem:[#allocation2 + $0x270] sm:$0xff]
      %v512 = vld [vmem:[#allocation2 + $0x278] sm:$0xff]
      %v513 = vld [vmem:[#allocation2 + $0x280] sm:$0xff]
      %v514 = vld [vmem:[#allocation2 + $0x288] sm:$0xff]
      %v515 = vld [vmem:[#allocation2 + $0x290] sm:$0xff]
      %v516 = vld [vmem:[#allocation2 + $0x298] sm:$0xff]
      %v517 = vld [vmem:[#allocation2 + $0x2a0] sm:$0xff]
      %v518 = vld [vmem:[#allocation2 + $0x2a8] sm:$0xff]
      %v519 = vld [vmem:[#allocation2 + $0x2b0] sm:$0xff]
      %v520 = vld [vmem:[#allocation2 + $0x2b8] sm:$0xff]
      %v521 = vld [vmem:[#allocation2 + $0x2c0] sm:$0xff]
      %v522 = vld [vmem:[#allocation2 + $0x2c8] sm:$0xff]
      %v523 = vld [vmem:[#allocation2 + $0x2d0] sm:$0xff]
      %v524 = vld [vmem:[#allocation2 + $0x2d8] sm:$0xff]
      %v525 = vld [vmem:[#allocation2 + $0x2e0] sm:$0xff]
      %v526 = vld [vmem:[#allocation2 + $0x2e8] sm:$0xff]
      %v527 = vld [vmem:[#allocation2 + $0x2f0] sm:$0xff]
      %v528 = vld [vmem:[#allocation2 + $0x2f8] sm:$0xff]
      %v529 = vld [vmem:[#allocation2 + $0x300] sm:$0xff]
      %v530 = vld [vmem:[#allocation2 + $0x308] sm:$0xff]
      %v531 = vld [vmem:[#allocation2 + $0x310] sm:$0xff]
      %v532 = vld [vmem:[#allocation2 + $0x318] sm:$0xff]
      %v533 = vld [vmem:[#allocation2 + $0x320] sm:$0xff]
      %v534 = vld [vmem:[#allocation2 + $0x328] sm:$0xff]
      %v535 = vld [vmem:[#allocation2 + $0x330] sm:$0xff]
      %v536 = vld [vmem:[#allocation2 + $0x338] sm:$0xff]
      %v537 = vld [vmem:[#allocation2 + $0x340] sm:$0xff]
      %v538 = vld [vmem:[#allocation2 + $0x348] sm:$0xff]
      %v539 = vld [vmem:[#allocation2 + $0x350] sm:$0xff]
      %v540 = vld [vmem:[#allocation2 + $0x358] sm:$0xff]
      %v541 = vld [vmem:[#allocation2 + $0x360] sm:$0xff]
      %v542 = vld [vmem:[#allocation2 + $0x368] sm:$0xff]
      %v543 = vld [vmem:[#allocation2 + $0x370] sm:$0xff]
      %v544 = vld [vmem:[#allocation2 + $0x378] sm:$0xff]
      %v545 = vld [vmem:[#allocation2 + $0x380] sm:$0xff]
      %v546 = vld [vmem:[#allocation2 + $0x388] sm:$0xff]
      %v547 = vld [vmem:[#allocation2 + $0x390] sm:$0xff]
      %v548 = vld [vmem:[#allocation2 + $0x398] sm:$0xff]
      %v549 = vld [vmem:[#allocation2 + $0x3a0] sm:$0xff]
      %v550 = vld [vmem:[#allocation2 + $0x3a8] sm:$0xff]
      %v551 = vld [vmem:[#allocation2 + $0x3b0] sm:$0xff]
      %v552 = vld [vmem:[#allocation2 + $0x3b8] sm:$0xff]
      %v553 = vld [vmem:[#allocation2 + $0x3c0] sm:$0xff]
      %v554 = vld [vmem:[#allocation2 + $0x3c8] sm:$0xff]
      %v555 = vld [vmem:[#allocation2 + $0x3d0] sm:$0xff]
      %v556 = vld [vmem:[#allocation2 + $0x3d8] sm:$0xff]
      %v557 = vld [vmem:[#allocation2 + $0x3e0] sm:$0xff]
      %v558 = vld [vmem:[#allocation2 + $0x3e8] sm:$0xff]
      %v559 = vld [vmem:[#allocation2 + $0x3f0] sm:$0xff]
      %v560 = vld [vmem:[#allocation2 + $0x3f8] sm:$0xff]
      %v561 = vld [vmem:[%s274] sm:$0xf]
      %v562 = vld [vmem:[%s274 + $0x4] sm:$0xf]
      %v563 = vld [vmem:[%s274 + $0x8] sm:$0xf]
      %v564 = vld [vmem:[%s274 + $0xc] sm:$0xf]
      %v565 = vld [vmem:[%s274 + $0x10] sm:$0xf]
      %v566 = vld [vmem:[%s274 + $0x14] sm:$0xf]
      %v567 = vld [vmem:[%s274 + $0x18] sm:$0xf]
      %v568 = vld [vmem:[%s274 + $0x1c] sm:$0xf]
      %v569 = vld [vmem:[%s274 + $0x20] sm:$0xf]
      %v570 = vld [vmem:[%s274 + $0x24] sm:$0xf]
      %v571 = vld [vmem:[%s274 + $0x28] sm:$0xf]
      %v572 = vld [vmem:[%s274 + $0x2c] sm:$0xf]
      %v573 = vld [vmem:[%s274 + $0x30] sm:$0xf]
      %v574 = vld [vmem:[%s274 + $0x34] sm:$0xf]
      %v575 = vld [vmem:[%s274 + $0x38] sm:$0xf]
      %v576 = vld [vmem:[%s274 + $0x3c] sm:$0xf]
      %v577 = vld [vmem:[%s274 + $0x40] sm:$0xf]
      %v578 = vld [vmem:[%s274 + $0x44] sm:$0xf]
      %v579 = vld [vmem:[%s274 + $0x48] sm:$0xf]
      %v580 = vld [vmem:[%s274 + $0x4c] sm:$0xf]
      %v581 = vld [vmem:[%s274 + $0x50] sm:$0xf]
      %v582 = vld [vmem:[%s274 + $0x54] sm:$0xf]
      %v583 = vld [vmem:[%s274 + $0x58] sm:$0xf]
      %v584 = vld [vmem:[%s274 + $0x5c] sm:$0xf]
      %v585 = vld [vmem:[%s274 + $0x60] sm:$0xf]
      %v586 = vld [vmem:[%s274 + $0x64] sm:$0xf]
      %v587 = vld [vmem:[%s274 + $0x68] sm:$0xf]
      %v588 = vld [vmem:[%s274 + $0x6c] sm:$0xf]
      %v589 = vld [vmem:[%s274 + $0x70] sm:$0xf]
      %v590 = vld [vmem:[%s274 + $0x74] sm:$0xf]
      %v591 = vld [vmem:[%s274 + $0x78] sm:$0xf]
      %v592 = vld [vmem:[%s274 + $0x7c] sm:$0xf]
      %v593 = vld [vmem:[%s274 + $0x80] sm:$0xf]
      %v594 = vld [vmem:[%s274 + $0x84] sm:$0xf]
      %v595 = vld [vmem:[%s274 + $0x88] sm:$0xf]
      %v596 = vld [vmem:[%s274 + $0x8c] sm:$0xf]
      %v597 = vld [vmem:[%s274 + $0x90] sm:$0xf]
      %v598 = vld [vmem:[%s274 + $0x94] sm:$0xf]
      %v599 = vld [vmem:[%s274 + $0x98] sm:$0xf]
      %v600 = vld [vmem:[%s274 + $0x9c] sm:$0xf]
      %v601 = vld [vmem:[%s274 + $0xa0] sm:$0xf]
      %v602 = vld [vmem:[%s274 + $0xa4] sm:$0xf]
      %v603 = vld [vmem:[%s274 + $0xa8] sm:$0xf]
      %v604 = vld [vmem:[%s274 + $0xac] sm:$0xf]
      %v605 = vld [vmem:[%s274 + $0xb0] sm:$0xf]
      %v606 = vld [vmem:[%s274 + $0xb4] sm:$0xf]
      %v607 = vld [vmem:[%s274 + $0xb8] sm:$0xf]
      %v608 = vld [vmem:[%s274 + $0xbc] sm:$0xf]
      %v609 = vld [vmem:[%s274 + $0xc0] sm:$0xf]
      %v610 = vld [vmem:[%s274 + $0xc4] sm:$0xf]
      %v611 = vld [vmem:[%s274 + $0xc8] sm:$0xf]
      %v612 = vld [vmem:[%s274 + $0xcc] sm:$0xf]
      %v613 = vld [vmem:[%s274 + $0xd0] sm:$0xf]
      %v614 = vld [vmem:[%s274 + $0xd4] sm:$0xf]
      %v615 = vld [vmem:[%s274 + $0xd8] sm:$0xf]
      %v616 = vld [vmem:[%s274 + $0xdc] sm:$0xf]
      %v617 = vld [vmem:[%s274 + $0xe0] sm:$0xf]
      %v618 = vld [vmem:[%s274 + $0xe4] sm:$0xf]
      %v619 = vld [vmem:[%s274 + $0xe8] sm:$0xf]
      %v620 = vld [vmem:[%s274 + $0xec] sm:$0xf]
      %v621 = vld [vmem:[%s274 + $0xf0] sm:$0xf]
      %v622 = vld [vmem:[%s274 + $0xf4] sm:$0xf]
      %v623 = vld [vmem:[%s274 + $0xf8] sm:$0xf]
      %v624 = vld [vmem:[%s274 + $0xfc] sm:$0xf]
      %v625 = vld [vmem:[%s274 + $0x100] sm:$0xf]
      %v626 = vld [vmem:[%s274 + $0x104] sm:$0xf]
      %v627 = vld [vmem:[%s274 + $0x108] sm:$0xf]
      %v628 = vld [vmem:[%s274 + $0x10c] sm:$0xf]
      %v629 = vld [vmem:[%s274 + $0x110] sm:$0xf]
      %v630 = vld [vmem:[%s274 + $0x114] sm:$0xf]
      %v631 = vld [vmem:[%s274 + $0x118] sm:$0xf]
      %v632 = vld [vmem:[%s274 + $0x11c] sm:$0xf]
      %v633 = vld [vmem:[%s274 + $0x120] sm:$0xf]
      %v634 = vld [vmem:[%s274 + $0x124] sm:$0xf]
      %v635 = vld [vmem:[%s274 + $0x128] sm:$0xf]
      %v636 = vld [vmem:[%s274 + $0x12c] sm:$0xf]
      %v637 = vld [vmem:[%s274 + $0x130] sm:$0xf]
      %v638 = vld [vmem:[%s274 + $0x134] sm:$0xf]
      %v639 = vld [vmem:[%s274 + $0x138] sm:$0xf]
      %v640 = vld [vmem:[%s274 + $0x13c] sm:$0xf]
      %v641 = vld [vmem:[%s274 + $0x140] sm:$0xf]
      %v642 = vld [vmem:[%s274 + $0x144] sm:$0xf]
      %v643 = vld [vmem:[%s274 + $0x148] sm:$0xf]
      %v644 = vld [vmem:[%s274 + $0x14c] sm:$0xf]
      %v645 = vld [vmem:[%s274 + $0x150] sm:$0xf]
      %v646 = vld [vmem:[%s274 + $0x154] sm:$0xf]
      %v647 = vld [vmem:[%s274 + $0x158] sm:$0xf]
      %v648 = vld [vmem:[%s274 + $0x15c] sm:$0xf]
      %v649 = vld [vmem:[%s274 + $0x160] sm:$0xf]
      %v650 = vld [vmem:[%s274 + $0x164] sm:$0xf]
      %v651 = vld [vmem:[%s274 + $0x168] sm:$0xf]
      %v652 = vld [vmem:[%s274 + $0x16c] sm:$0xf]
      %v653 = vld [vmem:[%s274 + $0x170] sm:$0xf]
      %v654 = vld [vmem:[%s274 + $0x174] sm:$0xf]
      %v655 = vld [vmem:[%s274 + $0x178] sm:$0xf]
      %v656 = vld [vmem:[%s274 + $0x17c] sm:$0xf]
      %v657 = vld [vmem:[%s274 + $0x180] sm:$0xf]
      %v658 = vld [vmem:[%s274 + $0x184] sm:$0xf]
      %v659 = vld [vmem:[%s274 + $0x188] sm:$0xf]
      %v660 = vld [vmem:[%s274 + $0x18c] sm:$0xf]
      %v661 = vld [vmem:[%s274 + $0x190] sm:$0xf]
      %v662 = vld [vmem:[%s274 + $0x194] sm:$0xf]
      %v663 = vld [vmem:[%s274 + $0x198] sm:$0xf]
      %v664 = vld [vmem:[%s274 + $0x19c] sm:$0xf]
      %v665 = vld [vmem:[%s274 + $0x1a0] sm:$0xf]
      %v666 = vld [vmem:[%s274 + $0x1a4] sm:$0xf]
      %v667 = vld [vmem:[%s274 + $0x1a8] sm:$0xf]
      %v668 = vld [vmem:[%s274 + $0x1ac] sm:$0xf]
      %v669 = vld [vmem:[%s274 + $0x1b0] sm:$0xf]
      %v670 = vld [vmem:[%s274 + $0x1b4] sm:$0xf]
      %v671 = vld [vmem:[%s274 + $0x1b8] sm:$0xf]
      %v672 = vld [vmem:[%s274 + $0x1bc] sm:$0xf]
      %v673 = vld [vmem:[%s274 + $0x1c0] sm:$0xf]
      %v674 = vld [vmem:[%s274 + $0x1c4] sm:$0xf]
      %v675 = vld [vmem:[%s274 + $0x1c8] sm:$0xf]
      %v676 = vld [vmem:[%s274 + $0x1cc] sm:$0xf]
      %v677 = vld [vmem:[%s274 + $0x1d0] sm:$0xf]
      %v678 = vld [vmem:[%s274 + $0x1d4] sm:$0xf]
      %v679 = vld [vmem:[%s274 + $0x1d8] sm:$0xf]
      %v680 = vld [vmem:[%s274 + $0x1dc] sm:$0xf]
      %v681 = vld [vmem:[%s274 + $0x1e0] sm:$0xf]
      %v682 = vld [vmem:[%s274 + $0x1e4] sm:$0xf]
      %v683 = vld [vmem:[%s274 + $0x1e8] sm:$0xf]
      %v684 = vld [vmem:[%s274 + $0x1ec] sm:$0xf]
      %v685 = vld [vmem:[%s274 + $0x1f0] sm:$0xf]
      %v686 = vld [vmem:[%s274 + $0x1f4] sm:$0xf]
      %v687 = vld [vmem:[%s274 + $0x1f8] sm:$0xf]
      %v688 = vld [vmem:[%s274 + $0x1fc] sm:$0xf]
      %v689 = vld [vmem:[%s283] sm:$0xf]
      %v690 = vld [vmem:[%s283 + $0x4] sm:$0xf]
      %v691 = vld [vmem:[%s283 + $0x8] sm:$0xf]
      %v692 = vld [vmem:[%s283 + $0xc] sm:$0xf]
      %v693 = vld [vmem:[%s283 + $0x10] sm:$0xf]
      %v694 = vld [vmem:[%s283 + $0x14] sm:$0xf]
      %v695 = vld [vmem:[%s283 + $0x18] sm:$0xf]
      %v696 = vld [vmem:[%s283 + $0x1c] sm:$0xf]
      %v825 = vunpack.c.l.b16 %v561
      %v826 = vunpack.c.l.b16 %v562
      %v827 = vunpack.c.l.b16 %v563
      %v828 = vunpack.c.l.b16 %v564
      %v829 = vunpack.c.l.b16 %v565
      %v830 = vunpack.c.l.b16 %v566
      %v831 = vunpack.c.l.b16 %v567
      %v832 = vunpack.c.l.b16 %v568
      %v833 = vunpack.c.l.b16 %v569
      %v834 = vunpack.c.l.b16 %v570
      %v835 = vunpack.c.l.b16 %v571
      %v836 = vunpack.c.l.b16 %v572
      %v837 = vunpack.c.l.b16 %v573
      %v838 = vunpack.c.l.b16 %v574
      %v839 = vunpack.c.l.b16 %v575
      %v840 = vunpack.c.l.b16 %v576
      %v841 = vunpack.c.l.b16 %v577
      %v842 = vunpack.c.l.b16 %v578
      %v843 = vunpack.c.l.b16 %v579
      %v844 = vunpack.c.l.b16 %v580
      %v845 = vunpack.c.l.b16 %v581
      %v846 = vunpack.c.l.b16 %v582
      %v847 = vunpack.c.l.b16 %v583
      %v848 = vunpack.c.l.b16 %v584
      %v849 = vunpack.c.l.b16 %v585
      %v850 = vunpack.c.l.b16 %v586
      %v851 = vunpack.c.l.b16 %v587
      %v852 = vunpack.c.l.b16 %v588
      %v853 = vunpack.c.l.b16 %v589
      %v854 = vunpack.c.l.b16 %v590
      %v855 = vunpack.c.l.b16 %v591
      %v856 = vunpack.c.l.b16 %v592
      %v857 = vunpack.c.l.b16 %v593
      %v858 = vunpack.c.l.b16 %v594
      %v859 = vunpack.c.l.b16 %v595
      %v860 = vunpack.c.l.b16 %v596
      %v861 = vunpack.c.l.b16 %v597
      %v862 = vunpack.c.l.b16 %v598
      %v863 = vunpack.c.l.b16 %v599
      %v864 = vunpack.c.l.b16 %v600
      %v865 = vunpack.c.l.b16 %v601
      %v866 = vunpack.c.l.b16 %v602
      %v867 = vunpack.c.l.b16 %v603
      %v868 = vunpack.c.l.b16 %v604
      %v869 = vunpack.c.l.b16 %v605
      %v870 = vunpack.c.l.b16 %v606
      %v871 = vunpack.c.l.b16 %v607
      %v872 = vunpack.c.l.b16 %v608
      %v873 = vunpack.c.l.b16 %v609
      %v874 = vunpack.c.l.b16 %v610
      %v875 = vunpack.c.l.b16 %v611
      %v876 = vunpack.c.l.b16 %v612
      %v877 = vunpack.c.l.b16 %v613
      %v878 = vunpack.c.l.b16 %v614
      %v879 = vunpack.c.l.b16 %v615
      %v880 = vunpack.c.l.b16 %v616
      %v881 = vunpack.c.l.b16 %v617
      %v882 = vunpack.c.l.b16 %v618
      %v883 = vunpack.c.l.b16 %v619
      %v884 = vunpack.c.l.b16 %v620
      %v885 = vunpack.c.l.b16 %v621
      %v886 = vunpack.c.l.b16 %v622
      %v887 = vunpack.c.l.b16 %v623
      %v888 = vunpack.c.l.b16 %v624
      %v889 = vunpack.c.l.b16 %v625
      %v890 = vunpack.c.l.b16 %v626
      %v891 = vunpack.c.l.b16 %v627
      %v892 = vunpack.c.l.b16 %v628
      %v893 = vunpack.c.l.b16 %v629
      %v894 = vunpack.c.l.b16 %v630
      %v895 = vunpack.c.l.b16 %v631
      %v896 = vunpack.c.l.b16 %v632
      %v897 = vunpack.c.l.b16 %v633
      %v898 = vunpack.c.l.b16 %v634
      %v899 = vunpack.c.l.b16 %v635
      %v900 = vunpack.c.l.b16 %v636
      %v901 = vunpack.c.l.b16 %v637
      %v902 = vunpack.c.l.b16 %v638
      %v903 = vunpack.c.l.b16 %v639
      %v904 = vunpack.c.l.b16 %v640
      %v905 = vunpack.c.l.b16 %v641
      %v906 = vunpack.c.l.b16 %v642
      %v907 = vunpack.c.l.b16 %v643
      %v908 = vunpack.c.l.b16 %v644
      %v909 = vunpack.c.l.b16 %v645
      %v910 = vunpack.c.l.b16 %v646
      %v911 = vunpack.c.l.b16 %v647
      %v912 = vunpack.c.l.b16 %v648
      %v913 = vunpack.c.l.b16 %v649
      %v914 = vunpack.c.l.b16 %v650
      %v915 = vunpack.c.l.b16 %v651
      %v916 = vunpack.c.l.b16 %v652
      %v917 = vunpack.c.l.b16 %v653
      %v918 = vunpack.c.l.b16 %v654
      %v919 = vunpack.c.l.b16 %v655
      %v920 = vunpack.c.l.b16 %v656
      %v921 = vunpack.c.l.b16 %v657
      %v922 = vunpack.c.l.b16 %v658
      %v923 = vunpack.c.l.b16 %v659
      %v924 = vunpack.c.l.b16 %v660
      %v925 = vunpack.c.l.b16 %v661
      %v926 = vunpack.c.l.b16 %v662
      %v927 = vunpack.c.l.b16 %v663
      %v928 = vunpack.c.l.b16 %v664
      %v929 = vunpack.c.l.b16 %v665
      %v930 = vunpack.c.l.b16 %v666
      %v931 = vunpack.c.l.b16 %v667
      %v932 = vunpack.c.l.b16 %v668
      %v933 = vunpack.c.l.b16 %v669
      %v934 = vunpack.c.l.b16 %v670
      %v935 = vunpack.c.l.b16 %v671
      %v936 = vunpack.c.l.b16 %v672
      %v937 = vunpack.c.l.b16 %v673
      %v938 = vunpack.c.l.b16 %v674
      %v939 = vunpack.c.l.b16 %v675
      %v940 = vunpack.c.l.b16 %v676
      %v941 = vunpack.c.l.b16 %v677
      %v942 = vunpack.c.l.b16 %v678
      %v943 = vunpack.c.l.b16 %v679
      %v944 = vunpack.c.l.b16 %v680
      %v945 = vunpack.c.l.b16 %v681
      %v946 = vunpack.c.l.b16 %v682
      %v947 = vunpack.c.l.b16 %v683
      %v948 = vunpack.c.l.b16 %v684
      %v949 = vunpack.c.l.b16 %v685
      %v950 = vunpack.c.l.b16 %v686
      %v951 = vunpack.c.l.b16 %v687
      %v952 = vunpack.c.l.b16 %v688
      %v953 = vpack.c.b16 %v826, %v825
      %v954 = vpack.c.b16 %v828, %v827
      %v955 = vpack.c.b16 %v830, %v829
      %v956 = vpack.c.b16 %v832, %v831
      %v957 = vpack.c.b16 %v834, %v833
      %v958 = vpack.c.b16 %v836, %v835
      %v959 = vpack.c.b16 %v838, %v837
      %v960 = vpack.c.b16 %v840, %v839
      %v961 = vpack.c.b16 %v842, %v841
      %v962 = vpack.c.b16 %v844, %v843
      %v963 = vpack.c.b16 %v846, %v845
      %v964 = vpack.c.b16 %v848, %v847
      %v965 = vpack.c.b16 %v850, %v849
      %v966 = vpack.c.b16 %v852, %v851
      %v967 = vpack.c.b16 %v854, %v853
      %v968 = vpack.c.b16 %v856, %v855
      %v969 = vpack.c.b16 %v858, %v857
      %v970 = vpack.c.b16 %v860, %v859
      %v971 = vpack.c.b16 %v862, %v861
      %v972 = vpack.c.b16 %v864, %v863
      %v973 = vpack.c.b16 %v866, %v865
      %v974 = vpack.c.b16 %v868, %v867
      %v975 = vpack.c.b16 %v870, %v869
      %v976 = vpack.c.b16 %v872, %v871
      %v977 = vpack.c.b16 %v874, %v873
      %v978 = vpack.c.b16 %v876, %v875
      %v979 = vpack.c.b16 %v878, %v877
      %v980 = vpack.c.b16 %v880, %v879
      %v981 = vpack.c.b16 %v882, %v881
      %v982 = vpack.c.b16 %v884, %v883
      %v983 = vpack.c.b16 %v886, %v885
      %v984 = vpack.c.b16 %v888, %v887
      %v985 = vpack.c.b16 %v890, %v889
      %v986 = vpack.c.b16 %v892, %v891
      %v987 = vpack.c.b16 %v894, %v893
      %v988 = vpack.c.b16 %v896, %v895
      %v989 = vpack.c.b16 %v898, %v897
      %v990 = vpack.c.b16 %v900, %v899
      %v991 = vpack.c.b16 %v902, %v901
      %v992 = vpack.c.b16 %v904, %v903
      %v993 = vpack.c.b16 %v906, %v905
      %v994 = vpack.c.b16 %v908, %v907
      %v995 = vpack.c.b16 %v910, %v909
      %v996 = vpack.c.b16 %v912, %v911
      %v997 = vpack.c.b16 %v914, %v913
      %v998 = vpack.c.b16 %v916, %v915
      %v999 = vpack.c.b16 %v918, %v917
      %v1000 = vpack.c.b16 %v920, %v919
      %v1001 = vpack.c.b16 %v922, %v921
      %v1002 = vpack.c.b16 %v924, %v923
      %v1003 = vpack.c.b16 %v926, %v925
      %v1004 = vpack.c.b16 %v928, %v927
      %v1005 = vpack.c.b16 %v930, %v929
      %v1006 = vpack.c.b16 %v932, %v931
      %v1007 = vpack.c.b16 %v934, %v933
      %v1008 = vpack.c.b16 %v936, %v935
      %v1009 = vpack.c.b16 %v938, %v937
      %v1010 = vpack.c.b16 %v940, %v939
      %v1011 = vpack.c.b16 %v942, %v941
      %v1012 = vpack.c.b16 %v944, %v943
      %v1013 = vpack.c.b16 %v946, %v945
      %v1014 = vpack.c.b16 %v948, %v947
      %v1015 = vpack.c.b16 %v950, %v949
      %v1016 = vpack.c.b16 %v952, %v951
      %v1025 = vunpack.c.l.b16 %v689
      %v1026 = vunpack.c.l.b16 %v690
      %v1027 = vunpack.c.l.b16 %v691
      %v1028 = vunpack.c.l.b16 %v692
      %v1029 = vunpack.c.l.b16 %v693
      %v1030 = vunpack.c.l.b16 %v694
      %v1031 = vunpack.c.l.b16 %v695
      %v1032 = vunpack.c.l.b16 %v696
      %v1033 = vpack.c.b16 %v1026, %v1025
      %v1034 = vpack.c.b16 %v1028, %v1027
      %v1035 = vpack.c.b16 %v1030, %v1029
      %v1036 = vpack.c.b16 %v1032, %v1031
      %vm1041 = vcmask 523264
      %v1043 = vsel %vm1041, %v953, 0
      %v1046 = vsel %vm1041, %v954, 0
      %v1049 = vsel %vm1041, %v955, 0
      %v1052 = vsel %vm1041, %v956, 0
      %v1055 = vsel %vm1041, %v957, 0
      %v1058 = vsel %vm1041, %v958, 0
      %v1061 = vsel %vm1041, %v959, 0
      %v1064 = vsel %vm1041, %v960, 0
      %v1067 = vsel %vm1041, %v961, 0
      %v1070 = vsel %vm1041, %v962, 0
      %v1073 = vsel %vm1041, %v963, 0
      %v1076 = vsel %vm1041, %v964, 0
      %v1079 = vsel %vm1041, %v965, 0
      %v1082 = vsel %vm1041, %v966, 0
      %v1085 = vsel %vm1041, %v967, 0
      %v1088 = vsel %vm1041, %v968, 0
      %v1091 = vsel %vm1041, %v969, 0
      %v1094 = vsel %vm1041, %v970, 0
      %v1097 = vsel %vm1041, %v971, 0
      %v1100 = vsel %vm1041, %v972, 0
      %v1103 = vsel %vm1041, %v973, 0
      %v1106 = vsel %vm1041, %v974, 0
      %v1109 = vsel %vm1041, %v975, 0
      %v1112 = vsel %vm1041, %v976, 0
      %v1115 = vsel %vm1041, %v977, 0
      %v1118 = vsel %vm1041, %v978, 0
      %v1121 = vsel %vm1041, %v979, 0
      %v1124 = vsel %vm1041, %v980, 0
      %v1127 = vsel %vm1041, %v981, 0
      %v1130 = vsel %vm1041, %v982, 0
      %v1133 = vsel %vm1041, %v983, 0
      %v1136 = vsel %vm1041, %v984, 0
      %v1139 = vsel %vm1041, %v985, 0
      %v1142 = vsel %vm1041, %v986, 0
      %v1145 = vsel %vm1041, %v987, 0
      %v1148 = vsel %vm1041, %v988, 0
      %v1151 = vsel %vm1041, %v989, 0
      %v1154 = vsel %vm1041, %v990, 0
      %v1157 = vsel %vm1041, %v991, 0
      %v1160 = vsel %vm1041, %v992, 0
      %v1163 = vsel %vm1041, %v993, 0
      %v1166 = vsel %vm1041, %v994, 0
      %v1169 = vsel %vm1041, %v995, 0
      %v1172 = vsel %vm1041, %v996, 0
      %v1175 = vsel %vm1041, %v997, 0
      %v1178 = vsel %vm1041, %v998, 0
      %v1181 = vsel %vm1041, %v999, 0
      %v1184 = vsel %vm1041, %v1000, 0
      %v1187 = vsel %vm1041, %v1001, 0
      %v1190 = vsel %vm1041, %v1002, 0
      %v1193 = vsel %vm1041, %v1003, 0
      %v1196 = vsel %vm1041, %v1004, 0
      %v1199 = vsel %vm1041, %v1005, 0
      %v1202 = vsel %vm1041, %v1006, 0
      %v1205 = vsel %vm1041, %v1007, 0
      %v1208 = vsel %vm1041, %v1008, 0
      %v1211 = vsel %vm1041, %v1009, 0
      %v1214 = vsel %vm1041, %v1010, 0
      %v1217 = vsel %vm1041, %v1011, 0
      %v1220 = vsel %vm1041, %v1012, 0
      %v1223 = vsel %vm1041, %v1013, 0
      %v1226 = vsel %vm1041, %v1014, 0
      %v1229 = vsel %vm1041, %v1015, 0
      %v1232 = vsel %vm1041, %v1016, 0
      %1234 = vmatprep.subr.bf16.mxu0 0
      %1235 = vmatpush1.bf16.msra.mxu0 %v1033
      %1236 = vmatprep.subr.bf16.mxu0 0
      %1237 = vmatpush1.bf16.msra.mxu0 %v1034
      %1238 = vmatprep.subr.bf16.mxu0 0
      %1239 = vmatpush1.bf16.msra.mxu0 %v1035
      %1240 = vmatprep.subr.bf16.mxu0 0
      %1241 = vmatpush1.bf16.msra.mxu0 %v1036
      %1242 = vmatprep.subr.bf16.mxu0 0
      %1243 = vmatpush1.bf16.msra.mxu0 0
      %1244 = vmatprep.subr.bf16.mxu0 0
      %1245 = vmatpush1.bf16.msra.mxu0 0
      %1246 = vmatprep.subr.bf16.mxu0 0
      %1247 = vmatpush1.bf16.msra.mxu0 0
      %1248 = vmatprep.subr.bf16.mxu0 0
      %1249 = vmatpush1.bf16.msra.mxu0 0
      %1250 = vmatprep.subr.bf16.mxu0 0
      %1251 = vmatpush1.bf16.msra.mxu0 0
      %1252 = vmatprep.subr.bf16.mxu0 0
      %1253 = vmatpush1.bf16.msra.mxu0 0
      %1254 = vmatprep.subr.bf16.mxu0 0
      %1255 = vmatpush1.bf16.msra.mxu0 0
      %1256 = vmatprep.subr.bf16.mxu0 0
      %1257 = vmatpush1.bf16.msra.mxu0 0
      %1258 = vmatprep.subr.bf16.mxu0 0
      %1259 = vmatpush1.bf16.msra.mxu0 0
      %1260 = vmatprep.subr.bf16.mxu0 0
      %1261 = vmatpush1.bf16.msra.mxu0 0
      %1262 = vmatprep.subr.bf16.mxu0 0
      %1263 = vmatpush1.bf16.msra.mxu0 0
      %1264 = vmatprep.subr.bf16.mxu0 0
      %1265 = vmatpush1.bf16.msra.mxu0 0
      %1266 = vmatprep.mubr.bf16.mxu0 0
      %1267 = vmatmul.mubr.bf16.gmra.mrb[0].mxu0 %v1043
      %v1268 = vpop.f32.mrb[0].mxu0
      %v1269 = vadd.f32 0.0, %v1268
      %v1270 = vpop.f32.mrb[0].mxu0
      %v1271 = vpop.f32.mrb[0].mxu0
      %v1272 = vadd.f32 0.0, %v1271
      %v1273 = vpop.f32.mrb[0].mxu0
      %1274 = vmatprep.mubr.bf16.mxu0 0
      %1275 = vmatmul.mubr.bf16.gmra.mrb[0].mxu0 %v1046
      %v1276 = vpop.f32.mrb[0].mxu0
      %v1277 = vadd.f32 0.0, %v1276
      %v1278 = vpop.f32.mrb[0].mxu0
      %v1279 = vpop.f32.mrb[0].mxu0
      %v1280 = vadd.f32 0.0, %v1279
      %v1281 = vpop.f32.mrb[0].mxu0
      %1282 = vmatprep.mubr.bf16.mxu0 0
      %1283 = vmatmul.mubr.bf16.gmra.mrb[0].mxu0 %v1049
      %v1284 = vpop.f32.mrb[0].mxu0
      %v1285 = vadd.f32 0.0, %v1284
      %v1286 = vpop.f32.mrb[0].mxu0
      %v1287 = vpop.f32.mrb[0].mxu0
      %v1288 = vadd.f32 0.0, %v1287
      %v1289 = vpop.f32.mrb[0].mxu0
      %1290 = vmatprep.mubr.bf16.mxu0 0
      %1291 = vmatmul.mubr.bf16.gmra.mrb[0].mxu0 %v1052
      %v1292 = vpop.f32.mrb[0].mxu0
      %v1293 = vadd.f32 0.0, %v1292
      %v1294 = vpop.f32.mrb[0].mxu0
      %v1295 = vpop.f32.mrb[0].mxu0
      %v1296 = vadd.f32 0.0, %v1295
      %v1297 = vpop.f32.mrb[0].mxu0
      %1298 = vmatprep.mubr.bf16.mxu0 0
      %1299 = vmatmul.mubr.bf16.gmra.mrb[0].mxu0 %v1055
      %v1300 = vpop.f32.mrb[0].mxu0
      %v1301 = vadd.f32 0.0, %v1300
      %v1302 = vpop.f32.mrb[0].mxu0
      %v1303 = vpop.f32.mrb[0].mxu0
      %v1304 = vadd.f32 0.0, %v1303
      %v1305 = vpop.f32.mrb[0].mxu0
      %1306 = vmatprep.mubr.bf16.mxu0 0
      %1307 = vmatmul.mubr.bf16.gmra.mrb[0].mxu0 %v1058
      %v1308 = vpop.f32.mrb[0].mxu0
      %v1309 = vadd.f32 0.0, %v1308
      %v1310 = vpop.f32.mrb[0].mxu0
      %v1311 = vpop.f32.mrb[0].mxu0
      %v1312 = vadd.f32 0.0, %v1311
      %v1313 = vpop.f32.mrb[0].mxu0
      %1314 = vmatprep.mubr.bf16.mxu0 0
      %1315 = vmatmul.mubr.bf16.gmra.mrb[0].mxu0 %v1061
      %v1316 = vpop.f32.mrb[0].mxu0
      %v1317 = vadd.f32 0.0, %v1316
      %v1318 = vpop.f32.mrb[0].mxu0
      %v1319 = vpop.f32.mrb[0].mxu0
      %v1320 = vadd.f32 0.0, %v1319
      %v1321 = vpop.f32.mrb[0].mxu0
      %1322 = vmatprep.mubr.bf16.mxu0 0
      %1323 = vmatmul.mubr.bf16.gmra.mrb[0].mxu0 %v1064
      %v1324 = vpop.f32.mrb[0].mxu0
      %v1325 = vadd.f32 0.0, %v1324
      %v1326 = vpop.f32.mrb[0].mxu0
      %v1327 = vpop.f32.mrb[0].mxu0
      %v1328 = vadd.f32 0.0, %v1327
      %v1329 = vpop.f32.mrb[0].mxu0
      %1330 = vmatprep.mubr.bf16.mxu0 0
      %1331 = vmatmul.mubr.bf16.gmra.mrb[0].mxu0 %v1067
      %v1332 = vpop.f32.mrb[0].mxu0
      %v1333 = vadd.f32 0.0, %v1332
      %v1334 = vpop.f32.mrb[0].mxu0
      %v1335 = vpop.f32.mrb[0].mxu0
      %v1336 = vadd.f32 0.0, %v1335
      %v1337 = vpop.f32.mrb[0].mxu0
      %1338 = vmatprep.mubr.bf16.mxu0 0
      %1339 = vmatmul.mubr.bf16.gmra.mrb[0].mxu0 %v1070
      %v1340 = vpop.f32.mrb[0].mxu0
      %v1341 = vadd.f32 0.0, %v1340
      %v1342 = vpop.f32.mrb[0].mxu0
      %v1343 = vpop.f32.mrb[0].mxu0
      %v1344 = vadd.f32 0.0, %v1343
      %v1345 = vpop.f32.mrb[0].mxu0
      %1346 = vmatprep.mubr.bf16.mxu0 0
      %1347 = vmatmul.mubr.bf16.gmra.mrb[0].mxu0 %v1073
      %v1348 = vpop.f32.mrb[0].mxu0
      %v1349 = vadd.f32 0.0, %v1348
      %v1350 = vpop.f32.mrb[0].mxu0
      %v1351 = vpop.f32.mrb[0].mxu0
      %v1352 = vadd.f32 0.0, %v1351
      %v1353 = vpop.f32.mrb[0].mxu0
      %1354 = vmatprep.mubr.bf16.mxu0 0
      %1355 = vmatmul.mubr.bf16.gmra.mrb[0].mxu0 %v1076
      %v1356 = vpop.f32.mrb[0].mxu0
      %v1357 = vadd.f32 0.0, %v1356
      %v1358 = vpop.f32.mrb[0].mxu0
      %v1359 = vpop.f32.mrb[0].mxu0
      %v1360 = vadd.f32 0.0, %v1359
      %v1361 = vpop.f32.mrb[0].mxu0
      %1362 = vmatprep.mubr.bf16.mxu0 0
      %1363 = vmatmul.mubr.bf16.gmra.mrb[0].mxu0 %v1079
      %v1364 = vpop.f32.mrb[0].mxu0
      %v1365 = vadd.f32 0.0, %v1364
      %v1366 = vpop.f32.mrb[0].mxu0
      %v1367 = vpop.f32.mrb[0].mxu0
      %v1368 = vadd.f32 0.0, %v1367
      %v1369 = vpop.f32.mrb[0].mxu0
      %1370 = vmatprep.mubr.bf16.mxu0 0
      %1371 = vmatmul.mubr.bf16.gmra.mrb[0].mxu0 %v1082
      %v1372 = vpop.f32.mrb[0].mxu0
      %v1373 = vadd.f32 0.0, %v1372
      %v1374 = vpop.f32.mrb[0].mxu0
      %v1375 = vpop.f32.mrb[0].mxu0
      %v1376 = vadd.f32 0.0, %v1375
      %v1377 = vpop.f32.mrb[0].mxu0
      %1378 = vmatprep.mubr.bf16.mxu0 0
      %1379 = vmatmul.mubr.bf16.gmra.mrb[0].mxu0 %v1085
      %v1380 = vpop.f32.mrb[0].mxu0
      %v1381 = vadd.f32 0.0, %v1380
      %v1382 = vpop.f32.mrb[0].mxu0
      %v1383 = vpop.f32.mrb[0].mxu0
      %v1384 = vadd.f32 0.0, %v1383
      %v1385 = vpop.f32.mrb[0].mxu0
      %1386 = vmatprep.mubr.bf16.mxu0 0
      %1387 = vmatmul.mubr.bf16.gmra.mrb[0].mxu0 %v1088
      %v1388 = vpop.f32.mrb[0].mxu0
      %v1389 = vadd.f32 0.0, %v1388
      %v1390 = vpop.f32.mrb[0].mxu0
      %v1391 = vpop.f32.mrb[0].mxu0
      %v1392 = vadd.f32 0.0, %v1391
      %v1393 = vpop.f32.mrb[0].mxu0
      %1394 = vmatprep.mubr.bf16.mxu0 0
      %1395 = vmatmul.mubr.bf16.gmra.mrb[0].mxu0 %v1091
      %v1396 = vpop.f32.mrb[0].mxu0
      %v1397 = vadd.f32 0.0, %v1396
      %v1398 = vpop.f32.mrb[0].mxu0
      %v1399 = vpop.f32.mrb[0].mxu0
      %v1400 = vadd.f32 0.0, %v1399
      %v1401 = vpop.f32.mrb[0].mxu0
      %1402 = vmatprep.mubr.bf16.mxu0 0
      %1403 = vmatmul.mubr.bf16.gmra.mrb[0].mxu0 %v1094
      %v1404 = vpop.f32.mrb[0].mxu0
      %v1405 = vadd.f32 0.0, %v1404
      %v1406 = vpop.f32.mrb[0].mxu0
      %v1407 = vpop.f32.mrb[0].mxu0
      %v1408 = vadd.f32 0.0, %v1407
      %v1409 = vpop.f32.mrb[0].mxu0
      %1410 = vmatprep.mubr.bf16.mxu0 0
      %1411 = vmatmul.mubr.bf16.gmra.mrb[0].mxu0 %v1097
      %v1412 = vpop.f32.mrb[0].mxu0
      %v1413 = vadd.f32 0.0, %v1412
      %v1414 = vpop.f32.mrb[0].mxu0
      %v1415 = vpop.f32.mrb[0].mxu0
      %v1416 = vadd.f32 0.0, %v1415
      %v1417 = vpop.f32.mrb[0].mxu0
      %1418 = vmatprep.mubr.bf16.mxu0 0
      %1419 = vmatmul.mubr.bf16.gmra.mrb[0].mxu0 %v1100
      %v1420 = vpop.f32.mrb[0].mxu0
      %v1421 = vadd.f32 0.0, %v1420
      %v1422 = vpop.f32.mrb[0].mxu0
      %v1423 = vpop.f32.mrb[0].mxu0
      %v1424 = vadd.f32 0.0, %v1423
      %v1425 = vpop.f32.mrb[0].mxu0
      %1426 = vmatprep.mubr.bf16.mxu0 0
      %1427 = vmatmul.mubr.bf16.gmra.mrb[0].mxu0 %v1103
      %v1428 = vpop.f32.mrb[0].mxu0
      %v1429 = vadd.f32 0.0, %v1428
      %v1430 = vpop.f32.mrb[0].mxu0
      %v1431 = vpop.f32.mrb[0].mxu0
      %v1432 = vadd.f32 0.0, %v1431
      %v1433 = vpop.f32.mrb[0].mxu0
      %1434 = vmatprep.mubr.bf16.mxu0 0
      %1435 = vmatmul.mubr.bf16.gmra.mrb[0].mxu0 %v1106
      %v1436 = vpop.f32.mrb[0].mxu0
      %v1437 = vadd.f32 0.0, %v1436
      %v1438 = vpop.f32.mrb[0].mxu0
      %v1439 = vpop.f32.mrb[0].mxu0
      %v1440 = vadd.f32 0.0, %v1439
      %v1441 = vpop.f32.mrb[0].mxu0
      %1442 = vmatprep.mubr.bf16.mxu0 0
      %1443 = vmatmul.mubr.bf16.gmra.mrb[0].mxu0 %v1109
      %v1444 = vpop.f32.mrb[0].mxu0
      %v1445 = vadd.f32 0.0, %v1444
      %v1446 = vpop.f32.mrb[0].mxu0
      %v1447 = vpop.f32.mrb[0].mxu0
      %v1448 = vadd.f32 0.0, %v1447
      %v1449 = vpop.f32.mrb[0].mxu0
      %1450 = vmatprep.mubr.bf16.mxu0 0
      %1451 = vmatmul.mubr.bf16.gmra.mrb[0].mxu0 %v1112
      %v1452 = vpop.f32.mrb[0].mxu0
      %v1453 = vadd.f32 0.0, %v1452
      %v1454 = vpop.f32.mrb[0].mxu0
      %v1455 = vpop.f32.mrb[0].mxu0
      %v1456 = vadd.f32 0.0, %v1455
      %v1457 = vpop.f32.mrb[0].mxu0
      %1458 = vmatprep.mubr.bf16.mxu0 0
      %1459 = vmatmul.mubr.bf16.gmra.mrb[0].mxu0 %v1115
      %v1460 = vpop.f32.mrb[0].mxu0
      %v1461 = vadd.f32 0.0, %v1460
      %v1462 = vpop.f32.mrb[0].mxu0
      %v1463 = vpop.f32.mrb[0].mxu0
      %v1464 = vadd.f32 0.0, %v1463
      %v1465 = vpop.f32.mrb[0].mxu0
      %1466 = vmatprep.mubr.bf16.mxu0 0
      %1467 = vmatmul.mubr.bf16.gmra.mrb[0].mxu0 %v1118
      %v1468 = vpop.f32.mrb[0].mxu0
      %v1469 = vadd.f32 0.0, %v1468
      %v1470 = vpop.f32.mrb[0].mxu0
      %v1471 = vpop.f32.mrb[0].mxu0
      %v1472 = vadd.f32 0.0, %v1471
      %v1473 = vpop.f32.mrb[0].mxu0
      %1474 = vmatprep.mubr.bf16.mxu0 0
      %1475 = vmatmul.mubr.bf16.gmra.mrb[0].mxu0 %v1121
      %v1476 = vpop.f32.mrb[0].mxu0
      %v1477 = vadd.f32 0.0, %v1476
      %v1478 = vpop.f32.mrb[0].mxu0
      %v1479 = vpop.f32.mrb[0].mxu0
      %v1480 = vadd.f32 0.0, %v1479
      %v1481 = vpop.f32.mrb[0].mxu0
      %1482 = vmatprep.mubr.bf16.mxu0 0
      %1483 = vmatmul.mubr.bf16.gmra.mrb[0].mxu0 %v1124
      %v1484 = vpop.f32.mrb[0].mxu0
      %v1485 = vadd.f32 0.0, %v1484
      %v1486 = vpop.f32.mrb[0].mxu0
      %v1487 = vpop.f32.mrb[0].mxu0
      %v1488 = vadd.f32 0.0, %v1487
      %v1489 = vpop.f32.mrb[0].mxu0
      %1490 = vmatprep.mubr.bf16.mxu0 0
      %1491 = vmatmul.mubr.bf16.gmra.mrb[0].mxu0 %v1127
      %v1492 = vpop.f32.mrb[0].mxu0
      %v1493 = vadd.f32 0.0, %v1492
      %v1494 = vpop.f32.mrb[0].mxu0
      %v1495 = vpop.f32.mrb[0].mxu0
      %v1496 = vadd.f32 0.0, %v1495
      %v1497 = vpop.f32.mrb[0].mxu0
      %1498 = vmatprep.mubr.bf16.mxu0 0
      %1499 = vmatmul.mubr.bf16.gmra.mrb[0].mxu0 %v1130
      %v1500 = vpop.f32.mrb[0].mxu0
      %v1501 = vadd.f32 0.0, %v1500
      %v1502 = vpop.f32.mrb[0].mxu0
      %v1503 = vpop.f32.mrb[0].mxu0
      %v1504 = vadd.f32 0.0, %v1503
      %v1505 = vpop.f32.mrb[0].mxu0
      %1506 = vmatprep.mubr.bf16.mxu0 0
      %1507 = vmatmul.mubr.bf16.gmra.mrb[0].mxu0 %v1133
      %v1508 = vpop.f32.mrb[0].mxu0
      %v1509 = vadd.f32 0.0, %v1508
      %v1510 = vpop.f32.mrb[0].mxu0
      %v1511 = vpop.f32.mrb[0].mxu0
      %v1512 = vadd.f32 0.0, %v1511
      %v1513 = vpop.f32.mrb[0].mxu0
      %1514 = vmatprep.mubr.bf16.mxu0 0
      %1515 = vmatmul.mubr.bf16.gmra.mrb[0].mxu0 %v1136
      %v1516 = vpop.f32.mrb[0].mxu0
      %v1517 = vadd.f32 0.0, %v1516
      %v1518 = vpop.f32.mrb[0].mxu0
      %v1519 = vpop.f32.mrb[0].mxu0
      %v1520 = vadd.f32 0.0, %v1519
      %v1521 = vpop.f32.mrb[0].mxu0
      %1522 = vmatprep.mubr.bf16.mxu0 0
      %1523 = vmatmul.mubr.bf16.gmra.mrb[0].mxu0 %v1139
      %v1524 = vpop.f32.mrb[0].mxu0
      %v1525 = vadd.f32 0.0, %v1524
      %v1526 = vpop.f32.mrb[0].mxu0
      %v1527 = vpop.f32.mrb[0].mxu0
      %v1528 = vadd.f32 0.0, %v1527
      %v1529 = vpop.f32.mrb[0].mxu0
      %1530 = vmatprep.mubr.bf16.mxu0 0
      %1531 = vmatmul.mubr.bf16.gmra.mrb[0].mxu0 %v1142
      %v1532 = vpop.f32.mrb[0].mxu0
      %v1533 = vadd.f32 0.0, %v1532
      %v1534 = vpop.f32.mrb[0].mxu0
      %v1535 = vpop.f32.mrb[0].mxu0
      %v1536 = vadd.f32 0.0, %v1535
      %v1537 = vpop.f32.mrb[0].mxu0
      %1538 = vmatprep.mubr.bf16.mxu0 0
      %1539 = vmatmul.mubr.bf16.gmra.mrb[0].mxu0 %v1145
      %v1540 = vpop.f32.mrb[0].mxu0
      %v1541 = vadd.f32 0.0, %v1540
      %v1542 = vpop.f32.mrb[0].mxu0
      %v1543 = vpop.f32.mrb[0].mxu0
      %v1544 = vadd.f32 0.0, %v1543
      %v1545 = vpop.f32.mrb[0].mxu0
      %1546 = vmatprep.mubr.bf16.mxu0 0
      %1547 = vmatmul.mubr.bf16.gmra.mrb[0].mxu0 %v1148
      %v1548 = vpop.f32.mrb[0].mxu0
      %v1549 = vadd.f32 0.0, %v1548
      %v1550 = vpop.f32.mrb[0].mxu0
      %v1551 = vpop.f32.mrb[0].mxu0
      %v1552 = vadd.f32 0.0, %v1551
      %v1553 = vpop.f32.mrb[0].mxu0
      %1554 = vmatprep.mubr.bf16.mxu0 0
      %1555 = vmatmul.mubr.bf16.gmra.mrb[0].mxu0 %v1151
      %v1556 = vpop.f32.mrb[0].mxu0
      %v1557 = vadd.f32 0.0, %v1556
      %v1558 = vpop.f32.mrb[0].mxu0
      %v1559 = vpop.f32.mrb[0].mxu0
      %v1560 = vadd.f32 0.0, %v1559
      %v1561 = vpop.f32.mrb[0].mxu0
      %1562 = vmatprep.mubr.bf16.mxu0 0
      %1563 = vmatmul.mubr.bf16.gmra.mrb[0].mxu0 %v1154
      %v1564 = vpop.f32.mrb[0].mxu0
      %v1565 = vadd.f32 0.0, %v1564
      %v1566 = vpop.f32.mrb[0].mxu0
      %v1567 = vpop.f32.mrb[0].mxu0
      %v1568 = vadd.f32 0.0, %v1567
      %v1569 = vpop.f32.mrb[0].mxu0
      %1570 = vmatprep.mubr.bf16.mxu0 0
      %1571 = vmatmul.mubr.bf16.gmra.mrb[0].mxu0 %v1157
      %v1572 = vpop.f32.mrb[0].mxu0
      %v1573 = vadd.f32 0.0, %v1572
      %v1574 = vpop.f32.mrb[0].mxu0
      %v1575 = vpop.f32.mrb[0].mxu0
      %v1576 = vadd.f32 0.0, %v1575
      %v1577 = vpop.f32.mrb[0].mxu0
      %1578 = vmatprep.mubr.bf16.mxu0 0
      %1579 = vmatmul.mubr.bf16.gmra.mrb[0].mxu0 %v1160
      %v1580 = vpop.f32.mrb[0].mxu0
      %v1581 = vadd.f32 0.0, %v1580
      %v1582 = vpop.f32.mrb[0].mxu0
      %v1583 = vpop.f32.mrb[0].mxu0
      %v1584 = vadd.f32 0.0, %v1583
      %v1585 = vpop.f32.mrb[0].mxu0
      %1586 = vmatprep.mubr.bf16.mxu0 0
      %1587 = vmatmul.mubr.bf16.gmra.mrb[0].mxu0 %v1163
      %v1588 = vpop.f32.mrb[0].mxu0
      %v1589 = vadd.f32 0.0, %v1588
      %v1590 = vpop.f32.mrb[0].mxu0
      %v1591 = vpop.f32.mrb[0].mxu0
      %v1592 = vadd.f32 0.0, %v1591
      %v1593 = vpop.f32.mrb[0].mxu0
      %1594 = vmatprep.mubr.bf16.mxu0 0
      %1595 = vmatmul.mubr.bf16.gmra.mrb[0].mxu0 %v1166
      %v1596 = vpop.f32.mrb[0].mxu0
      %v1597 = vadd.f32 0.0, %v1596
      %v1598 = vpop.f32.mrb[0].mxu0
      %v1599 = vpop.f32.mrb[0].mxu0
      %v1600 = vadd.f32 0.0, %v1599
      %v1601 = vpop.f32.mrb[0].mxu0
      %1602 = vmatprep.mubr.bf16.mxu0 0
      %1603 = vmatmul.mubr.bf16.gmra.mrb[0].mxu0 %v1169
      %v1604 = vpop.f32.mrb[0].mxu0
      %v1605 = vadd.f32 0.0, %v1604
      %v1606 = vpop.f32.mrb[0].mxu0
      %v1607 = vpop.f32.mrb[0].mxu0
      %v1608 = vadd.f32 0.0, %v1607
      %v1609 = vpop.f32.mrb[0].mxu0
      %1610 = vmatprep.mubr.bf16.mxu0 0
      %1611 = vmatmul.mubr.bf16.gmra.mrb[0].mxu0 %v1172
      %v1612 = vpop.f32.mrb[0].mxu0
      %v1613 = vadd.f32 0.0, %v1612
      %v1614 = vpop.f32.mrb[0].mxu0
      %v1615 = vpop.f32.mrb[0].mxu0
      %v1616 = vadd.f32 0.0, %v1615
      %v1617 = vpop.f32.mrb[0].mxu0
      %1618 = vmatprep.mubr.bf16.mxu0 0
      %1619 = vmatmul.mubr.bf16.gmra.mrb[0].mxu0 %v1175
      %v1620 = vpop.f32.mrb[0].mxu0
      %v1621 = vadd.f32 0.0, %v1620
      %v1622 = vpop.f32.mrb[0].mxu0
      %v1623 = vpop.f32.mrb[0].mxu0
      %v1624 = vadd.f32 0.0, %v1623
      %v1625 = vpop.f32.mrb[0].mxu0
      %1626 = vmatprep.mubr.bf16.mxu0 0
      %1627 = vmatmul.mubr.bf16.gmra.mrb[0].mxu0 %v1178
      %v1628 = vpop.f32.mrb[0].mxu0
      %v1629 = vadd.f32 0.0, %v1628
      %v1630 = vpop.f32.mrb[0].mxu0
      %v1631 = vpop.f32.mrb[0].mxu0
      %v1632 = vadd.f32 0.0, %v1631
      %v1633 = vpop.f32.mrb[0].mxu0
      %1634 = vmatprep.mubr.bf16.mxu0 0
      %1635 = vmatmul.mubr.bf16.gmra.mrb[0].mxu0 %v1181
      %v1636 = vpop.f32.mrb[0].mxu0
      %v1637 = vadd.f32 0.0, %v1636
      %v1638 = vpop.f32.mrb[0].mxu0
      %v1639 = vpop.f32.mrb[0].mxu0
      %v1640 = vadd.f32 0.0, %v1639
      %v1641 = vpop.f32.mrb[0].mxu0
      %1642 = vmatprep.mubr.bf16.mxu0 0
      %1643 = vmatmul.mubr.bf16.gmra.mrb[0].mxu0 %v1184
      %v1644 = vpop.f32.mrb[0].mxu0
      %v1645 = vadd.f32 0.0, %v1644
      %v1646 = vpop.f32.mrb[0].mxu0
      %v1647 = vpop.f32.mrb[0].mxu0
      %v1648 = vadd.f32 0.0, %v1647
      %v1649 = vpop.f32.mrb[0].mxu0
      %1650 = vmatprep.mubr.bf16.mxu0 0
      %1651 = vmatmul.mubr.bf16.gmra.mrb[0].mxu0 %v1187
      %v1652 = vpop.f32.mrb[0].mxu0
      %v1653 = vadd.f32 0.0, %v1652
      %v1654 = vpop.f32.mrb[0].mxu0
      %v1655 = vpop.f32.mrb[0].mxu0
      %v1656 = vadd.f32 0.0, %v1655
      %v1657 = vpop.f32.mrb[0].mxu0
      %1658 = vmatprep.mubr.bf16.mxu0 0
      %1659 = vmatmul.mubr.bf16.gmra.mrb[0].mxu0 %v1190
      %v1660 = vpop.f32.mrb[0].mxu0
      %v1661 = vadd.f32 0.0, %v1660
      %v1662 = vpop.f32.mrb[0].mxu0
      %v1663 = vpop.f32.mrb[0].mxu0
      %v1664 = vadd.f32 0.0, %v1663
      %v1665 = vpop.f32.mrb[0].mxu0
      %1666 = vmatprep.mubr.bf16.mxu0 0
      %1667 = vmatmul.mubr.bf16.gmra.mrb[0].mxu0 %v1193
      %v1668 = vpop.f32.mrb[0].mxu0
      %v1669 = vadd.f32 0.0, %v1668
      %v1670 = vpop.f32.mrb[0].mxu0
      %v1671 = vpop.f32.mrb[0].mxu0
      %v1672 = vadd.f32 0.0, %v1671
      %v1673 = vpop.f32.mrb[0].mxu0
      %1674 = vmatprep.mubr.bf16.mxu0 0
      %1675 = vmatmul.mubr.bf16.gmra.mrb[0].mxu0 %v1196
      %v1676 = vpop.f32.mrb[0].mxu0
      %v1677 = vadd.f32 0.0, %v1676
      %v1678 = vpop.f32.mrb[0].mxu0
      %v1679 = vpop.f32.mrb[0].mxu0
      %v1680 = vadd.f32 0.0, %v1679
      %v1681 = vpop.f32.mrb[0].mxu0
      %1682 = vmatprep.mubr.bf16.mxu0 0
      %1683 = vmatmul.mubr.bf16.gmra.mrb[0].mxu0 %v1199
      %v1684 = vpop.f32.mrb[0].mxu0
      %v1685 = vadd.f32 0.0, %v1684
      %v1686 = vpop.f32.mrb[0].mxu0
      %v1687 = vpop.f32.mrb[0].mxu0
      %v1688 = vadd.f32 0.0, %v1687
      %v1689 = vpop.f32.mrb[0].mxu0
      %1690 = vmatprep.mubr.bf16.mxu0 0
      %1691 = vmatmul.mubr.bf16.gmra.mrb[0].mxu0 %v1202
      %v1692 = vpop.f32.mrb[0].mxu0
      %v1693 = vadd.f32 0.0, %v1692
      %v1694 = vpop.f32.mrb[0].mxu0
      %v1695 = vpop.f32.mrb[0].mxu0
      %v1696 = vadd.f32 0.0, %v1695
      %v1697 = vpop.f32.mrb[0].mxu0
      %1698 = vmatprep.mubr.bf16.mxu0 0
      %1699 = vmatmul.mubr.bf16.gmra.mrb[0].mxu0 %v1205
      %v1700 = vpop.f32.mrb[0].mxu0
      %v1701 = vadd.f32 0.0, %v1700
      %v1702 = vpop.f32.mrb[0].mxu0
      %v1703 = vpop.f32.mrb[0].mxu0
      %v1704 = vadd.f32 0.0, %v1703
      %v1705 = vpop.f32.mrb[0].mxu0
      %1706 = vmatprep.mubr.bf16.mxu0 0
      %1707 = vmatmul.mubr.bf16.gmra.mrb[0].mxu0 %v1208
      %v1708 = vpop.f32.mrb[0].mxu0
      %v1709 = vadd.f32 0.0, %v1708
      %v1710 = vpop.f32.mrb[0].mxu0
      %v1711 = vpop.f32.mrb[0].mxu0
      %v1712 = vadd.f32 0.0, %v1711
      %v1713 = vpop.f32.mrb[0].mxu0
      %1714 = vmatprep.mubr.bf16.mxu0 0
      %1715 = vmatmul.mubr.bf16.gmra.mrb[0].mxu0 %v1211
      %v1716 = vpop.f32.mrb[0].mxu0
      %v1717 = vadd.f32 0.0, %v1716
      %v1718 = vpop.f32.mrb[0].mxu0
      %v1719 = vpop.f32.mrb[0].mxu0
      %v1720 = vadd.f32 0.0, %v1719
      %v1721 = vpop.f32.mrb[0].mxu0
      %1722 = vmatprep.mubr.bf16.mxu0 0
      %1723 = vmatmul.mubr.bf16.gmra.mrb[0].mxu0 %v1214
      %v1724 = vpop.f32.mrb[0].mxu0
      %v1725 = vadd.f32 0.0, %v1724
      %v1726 = vpop.f32.mrb[0].mxu0
      %v1727 = vpop.f32.mrb[0].mxu0
      %v1728 = vadd.f32 0.0, %v1727
      %v1729 = vpop.f32.mrb[0].mxu0
      %1730 = vmatprep.mubr.bf16.mxu0 0
      %1731 = vmatmul.mubr.bf16.gmra.mrb[0].mxu0 %v1217
      %v1732 = vpop.f32.mrb[0].mxu0
      %v1733 = vadd.f32 0.0, %v1732
      %v1734 = vpop.f32.mrb[0].mxu0
      %v1735 = vpop.f32.mrb[0].mxu0
      %v1736 = vadd.f32 0.0, %v1735
      %v1737 = vpop.f32.mrb[0].mxu0
      %1738 = vmatprep.mubr.bf16.mxu0 0
      %1739 = vmatmul.mubr.bf16.gmra.mrb[0].mxu0 %v1220
      %v1740 = vpop.f32.mrb[0].mxu0
      %v1741 = vadd.f32 0.0, %v1740
      %v1742 = vpop.f32.mrb[0].mxu0
      %v1743 = vpop.f32.mrb[0].mxu0
      %v1744 = vadd.f32 0.0, %v1743
      %v1745 = vpop.f32.mrb[0].mxu0
      %1746 = vmatprep.mubr.bf16.mxu0 0
      %1747 = vmatmul.mubr.bf16.gmra.mrb[0].mxu0 %v1223
      %v1748 = vpop.f32.mrb[0].mxu0
      %v1749 = vadd.f32 0.0, %v1748
      %v1750 = vpop.f32.mrb[0].mxu0
      %v1751 = vpop.f32.mrb[0].mxu0
      %v1752 = vadd.f32 0.0, %v1751
      %v1753 = vpop.f32.mrb[0].mxu0
      %1754 = vmatprep.mubr.bf16.mxu0 0
      %1755 = vmatmul.mubr.bf16.gmra.mrb[0].mxu0 %v1226
      %v1756 = vpop.f32.mrb[0].mxu0
      %v1757 = vadd.f32 0.0, %v1756
      %v1758 = vpop.f32.mrb[0].mxu0
      %v1759 = vpop.f32.mrb[0].mxu0
      %v1760 = vadd.f32 0.0, %v1759
      %v1761 = vpop.f32.mrb[0].mxu0
      %1762 = vmatprep.mubr.bf16.mxu0 0
      %1763 = vmatmul.mubr.bf16.gmra.mrb[0].mxu0 %v1229
      %v1764 = vpop.f32.mrb[0].mxu0
      %v1765 = vadd.f32 0.0, %v1764
      %v1766 = vpop.f32.mrb[0].mxu0
      %v1767 = vpop.f32.mrb[0].mxu0
      %v1768 = vadd.f32 0.0, %v1767
      %v1769 = vpop.f32.mrb[0].mxu0
      %1770 = vmatprep.mubr.bf16.mxu0 0
      %1771 = vmatmul.mubr.bf16.gmra.mrb[0].mxu0 %v1232
      %v1772 = vpop.f32.mrb[0].mxu0
      %v1773 = vadd.f32 0.0, %v1772
      %v1774 = vpop.f32.mrb[0].mxu0
      %v1775 = vpop.f32.mrb[0].mxu0
      %v1776 = vadd.f32 0.0, %v1775
      %v1777 = vpop.f32.mrb[0].mxu0
      %1778 = vdwg.mxu0
      %v1779 = vadd.f32 %v433, %v1269
      %v1780 = vadd.f32 %v434, %v1272
      %v1781 = vadd.f32 %v435, %v1277
      %v1782 = vadd.f32 %v436, %v1280
      %v1783 = vadd.f32 %v437, %v1285
      %v1784 = vadd.f32 %v438, %v1288
      %v1785 = vadd.f32 %v439, %v1293
      %v1786 = vadd.f32 %v440, %v1296
      %v1787 = vadd.f32 %v441, %v1301
      %v1788 = vadd.f32 %v442, %v1304
      %v1789 = vadd.f32 %v443, %v1309
      %v1790 = vadd.f32 %v444, %v1312
      %v1791 = vadd.f32 %v445, %v1317
      %v1792 = vadd.f32 %v446, %v1320
      %v1793 = vadd.f32 %v447, %v1325
      %v1794 = vadd.f32 %v448, %v1328
      %v1795 = vadd.f32 %v449, %v1333
      %v1796 = vadd.f32 %v450, %v1336
      %v1797 = vadd.f32 %v451, %v1341
      %v1798 = vadd.f32 %v452, %v1344
      %v1799 = vadd.f32 %v453, %v1349
      %v1800 = vadd.f32 %v454, %v1352
      %v1801 = vadd.f32 %v455, %v1357
      %v1802 = vadd.f32 %v456, %v1360
      %v1803 = vadd.f32 %v457, %v1365
      %v1804 = vadd.f32 %v458, %v1368
      %v1805 = vadd.f32 %v459, %v1373
      %v1806 = vadd.f32 %v460, %v1376
      %v1807 = vadd.f32 %v461, %v1381
      %v1808 = vadd.f32 %v462, %v1384
      %v1809 = vadd.f32 %v463, %v1389
      %v1810 = vadd.f32 %v464, %v1392
      %v1811 = vadd.f32 %v465, %v1397
      %v1812 = vadd.f32 %v466, %v1400
      %v1813 = vadd.f32 %v467, %v1405
      %v1814 = vadd.f32 %v468, %v1408
      %v1815 = vadd.f32 %v469, %v1413
      %v1816 = vadd.f32 %v470, %v1416
      %v1817 = vadd.f32 %v471, %v1421
      %v1818 = vadd.f32 %v472, %v1424
      %v1819 = vadd.f32 %v473, %v1429
      %v1820 = vadd.f32 %v474, %v1432
      %v1821 = vadd.f32 %v475, %v1437
      %v1822 = vadd.f32 %v476, %v1440
      %v1823 = vadd.f32 %v477, %v1445
      %v1824 = vadd.f32 %v478, %v1448
      %v1825 = vadd.f32 %v479, %v1453
      %v1826 = vadd.f32 %v480, %v1456
      %v1827 = vadd.f32 %v481, %v1461
      %v1828 = vadd.f32 %v482, %v1464
      %v1829 = vadd.f32 %v483, %v1469
      %v1830 = vadd.f32 %v484, %v1472
      %v1831 = vadd.f32 %v485, %v1477
      %v1832 = vadd.f32 %v486, %v1480
      %v1833 = vadd.f32 %v487, %v1485
      %v1834 = vadd.f32 %v488, %v1488
      %v1835 = vadd.f32 %v489, %v1493
      %v1836 = vadd.f32 %v490, %v1496
      %v1837 = vadd.f32 %v491, %v1501
      %v1838 = vadd.f32 %v492, %v1504
      %v1839 = vadd.f32 %v493, %v1509
      %v1840 = vadd.f32 %v494, %v1512
      %v1841 = vadd.f32 %v495, %v1517
      %v1842 = vadd.f32 %v496, %v1520
      %v1843 = vadd.f32 %v497, %v1525
      %v1844 = vadd.f32 %v498, %v1528
      %v1845 = vadd.f32 %v499, %v1533
      %v1846 = vadd.f32 %v500, %v1536
      %v1847 = vadd.f32 %v501, %v1541
      %v1848 = vadd.f32 %v502, %v1544
      %v1849 = vadd.f32 %v503, %v1549
      %v1850 = vadd.f32 %v504, %v1552
      %v1851 = vadd.f32 %v505, %v1557
      %v1852 = vadd.f32 %v506, %v1560
      %v1853 = vadd.f32 %v507, %v1565
      %v1854 = vadd.f32 %v508, %v1568
      %v1855 = vadd.f32 %v509, %v1573
      %v1856 = vadd.f32 %v510, %v1576
      %v1857 = vadd.f32 %v511, %v1581
      %v1858 = vadd.f32 %v512, %v1584
      %v1859 = vadd.f32 %v513, %v1589
      %v1860 = vadd.f32 %v514, %v1592
      %v1861 = vadd.f32 %v515, %v1597
      %v1862 = vadd.f32 %v516, %v1600
      %v1863 = vadd.f32 %v517, %v1605
      %v1864 = vadd.f32 %v518, %v1608
      %v1865 = vadd.f32 %v519, %v1613
      %v1866 = vadd.f32 %v520, %v1616
      %v1867 = vadd.f32 %v521, %v1621
      %v1868 = vadd.f32 %v522, %v1624
      %v1869 = vadd.f32 %v523, %v1629
      %v1870 = vadd.f32 %v524, %v1632
      %v1871 = vadd.f32 %v525, %v1637
      %v1872 = vadd.f32 %v526, %v1640
      %v1873 = vadd.f32 %v527, %v1645
      %v1874 = vadd.f32 %v528, %v1648
      %v1875 = vadd.f32 %v529, %v1653
      %v1876 = vadd.f32 %v530, %v1656
      %v1877 = vadd.f32 %v531, %v1661
      %v1878 = vadd.f32 %v532, %v1664
      %v1879 = vadd.f32 %v533, %v1669
      %v1880 = vadd.f32 %v534, %v1672
      %v1881 = vadd.f32 %v535, %v1677
      %v1882 = vadd.f32 %v536, %v1680
      %v1883 = vadd.f32 %v537, %v1685
      %v1884 = vadd.f32 %v538, %v1688
      %v1885 = vadd.f32 %v539, %v1693
      %v1886 = vadd.f32 %v540, %v1696
      %v1887 = vadd.f32 %v541, %v1701
      %v1888 = vadd.f32 %v542, %v1704
      %v1889 = vadd.f32 %v543, %v1709
      %v1890 = vadd.f32 %v544, %v1712
      %v1891 = vadd.f32 %v545, %v1717
      %v1892 = vadd.f32 %v546, %v1720
      %v1893 = vadd.f32 %v547, %v1725
      %v1894 = vadd.f32 %v548, %v1728
      %v1895 = vadd.f32 %v549, %v1733
      %v1896 = vadd.f32 %v550, %v1736
      %v1897 = vadd.f32 %v551, %v1741
      %v1898 = vadd.f32 %v552, %v1744
      %v1899 = vadd.f32 %v553, %v1749
      %v1900 = vadd.f32 %v554, %v1752
      %v1901 = vadd.f32 %v555, %v1757
      %v1902 = vadd.f32 %v556, %v1760
      %v1903 = vadd.f32 %v557, %v1765
      %v1904 = vadd.f32 %v558, %v1768
      %v1905 = vadd.f32 %v559, %v1773
      %v1906 = vadd.f32 %v560, %v1776
      %1907 = vst [vmem:[#allocation2] sm:$0xff] %v1779
      %1908 = vst [vmem:[#allocation2 + $0x8] sm:$0xff] %v1780
      %1909 = vst [vmem:[#allocation2 + $0x10] sm:$0xff] %v1781
      %1910 = vst [vmem:[#allocation2 + $0x18] sm:$0xff] %v1782
      %1911 = vst [vmem:[#allocation2 + $0x20] sm:$0xff] %v1783
      %1912 = vst [vmem:[#allocation2 + $0x28] sm:$0xff] %v1784
      %1913 = vst [vmem:[#allocation2 + $0x30] sm:$0xff] %v1785
      %1914 = vst [vmem:[#allocation2 + $0x38] sm:$0xff] %v1786
      %1915 = vst [vmem:[#allocation2 + $0x40] sm:$0xff] %v1787
      %1916 = vst [vmem:[#allocation2 + $0x48] sm:$0xff] %v1788
      %1917 = vst [vmem:[#allocation2 + $0x50] sm:$0xff] %v1789
      %1918 = vst [vmem:[#allocation2 + $0x58] sm:$0xff] %v1790
      %1919 = vst [vmem:[#allocation2 + $0x60] sm:$0xff] %v1791
      %1920 = vst [vmem:[#allocation2 + $0x68] sm:$0xff] %v1792
      %1921 = vst [vmem:[#allocation2 + $0x70] sm:$0xff] %v1793
      %1922 = vst [vmem:[#allocation2 + $0x78] sm:$0xff] %v1794
      %1923 = vst [vmem:[#allocation2 + $0x80] sm:$0xff] %v1795
      %1924 = vst [vmem:[#allocation2 + $0x88] sm:$0xff] %v1796
      %1925 = vst [vmem:[#allocation2 + $0x90] sm:$0xff] %v1797
      %1926 = vst [vmem:[#allocation2 + $0x98] sm:$0xff] %v1798
      %1927 = vst [vmem:[#allocation2 + $0xa0] sm:$0xff] %v1799
      %1928 = vst [vmem:[#allocation2 + $0xa8] sm:$0xff] %v1800
      %1929 = vst [vmem:[#allocation2 + $0xb0] sm:$0xff] %v1801
      %1930 = vst [vmem:[#allocation2 + $0xb8] sm:$0xff] %v1802
      %1931 = vst [vmem:[#allocation2 + $0xc0] sm:$0xff] %v1803
      %1932 = vst [vmem:[#allocation2 + $0xc8] sm:$0xff] %v1804
      %1933 = vst [vmem:[#allocation2 + $0xd0] sm:$0xff] %v1805
      %1934 = vst [vmem:[#allocation2 + $0xd8] sm:$0xff] %v1806
      %1935 = vst [vmem:[#allocation2 + $0xe0] sm:$0xff] %v1807
      %1936 = vst [vmem:[#allocation2 + $0xe8] sm:$0xff] %v1808
      %1937 = vst [vmem:[#allocation2 + $0xf0] sm:$0xff] %v1809
      %1938 = vst [vmem:[#allocation2 + $0xf8] sm:$0xff] %v1810
      %1939 = vst [vmem:[#allocation2 + $0x100] sm:$0xff] %v1811
      %1940 = vst [vmem:[#allocation2 + $0x108] sm:$0xff] %v1812
      %1941 = vst [vmem:[#allocation2 + $0x110] sm:$0xff] %v1813
      %1942 = vst [vmem:[#allocation2 + $0x118] sm:$0xff] %v1814
      %1943 = vst [vmem:[#allocation2 + $0x120] sm:$0xff] %v1815
      %1944 = vst [vmem:[#allocation2 + $0x128] sm:$0xff] %v1816
      %1945 = vst [vmem:[#allocation2 + $0x130] sm:$0xff] %v1817
      %1946 = vst [vmem:[#allocation2 + $0x138] sm:$0xff] %v1818
      %1947 = vst [vmem:[#allocation2 + $0x140] sm:$0xff] %v1819
      %1948 = vst [vmem:[#allocation2 + $0x148] sm:$0xff] %v1820
      %1949 = vst [vmem:[#allocation2 + $0x150] sm:$0xff] %v1821
      %1950 = vst [vmem:[#allocation2 + $0x158] sm:$0xff] %v1822
      %1951 = vst [vmem:[#allocation2 + $0x160] sm:$0xff] %v1823
      %1952 = vst [vmem:[#allocation2 + $0x168] sm:$0xff] %v1824
      %1953 = vst [vmem:[#allocation2 + $0x170] sm:$0xff] %v1825
      %1954 = vst [vmem:[#allocation2 + $0x178] sm:$0xff] %v1826
      %1955 = vst [vmem:[#allocation2 + $0x180] sm:$0xff] %v1827
      %1956 = vst [vmem:[#allocation2 + $0x188] sm:$0xff] %v1828
      %1957 = vst [vmem:[#allocation2 + $0x190] sm:$0xff] %v1829
      %1958 = vst [vmem:[#allocation2 + $0x198] sm:$0xff] %v1830
      %1959 = vst [vmem:[#allocation2 + $0x1a0] sm:$0xff] %v1831
      %1960 = vst [vmem:[#allocation2 + $0x1a8] sm:$0xff] %v1832
      %1961 = vst [vmem:[#allocation2 + $0x1b0] sm:$0xff] %v1833
      %1962 = vst [vmem:[#allocation2 + $0x1b8] sm:$0xff] %v1834
      %1963 = vst [vmem:[#allocation2 + $0x1c0] sm:$0xff] %v1835
      %1964 = vst [vmem:[#allocation2 + $0x1c8] sm:$0xff] %v1836
      %1965 = vst [vmem:[#allocation2 + $0x1d0] sm:$0xff] %v1837
      %1966 = vst [vmem:[#allocation2 + $0x1d8] sm:$0xff] %v1838
      %1967 = vst [vmem:[#allocation2 + $0x1e0] sm:$0xff] %v1839
      %1968 = vst [vmem:[#allocation2 + $0x1e8] sm:$0xff] %v1840
      %1969 = vst [vmem:[#allocation2 + $0x1f0] sm:$0xff] %v1841
      %1970 = vst [vmem:[#allocation2 + $0x1f8] sm:$0xff] %v1842
      %1971 = vst [vmem:[#allocation2 + $0x200] sm:$0xff] %v1843
      %1972 = vst [vmem:[#allocation2 + $0x208] sm:$0xff] %v1844
      %1973 = vst [vmem:[#allocation2 + $0x210] sm:$0xff] %v1845
      %1974 = vst [vmem:[#allocation2 + $0x218] sm:$0xff] %v1846
      %1975 = vst [vmem:[#allocation2 + $0x220] sm:$0xff] %v1847
      %1976 = vst [vmem:[#allocation2 + $0x228] sm:$0xff] %v1848
      %1977 = vst [vmem:[#allocation2 + $0x230] sm:$0xff] %v1849
      %1978 = vst [vmem:[#allocation2 + $0x238] sm:$0xff] %v1850
      %1979 = vst [vmem:[#allocation2 + $0x240] sm:$0xff] %v1851
      %1980 = vst [vmem:[#allocation2 + $0x248] sm:$0xff] %v1852
      %1981 = vst [vmem:[#allocation2 + $0x250] sm:$0xff] %v1853
      %1982 = vst [vmem:[#allocation2 + $0x258] sm:$0xff] %v1854
      %1983 = vst [vmem:[#allocation2 + $0x260] sm:$0xff] %v1855
      %1984 = vst [vmem:[#allocation2 + $0x268] sm:$0xff] %v1856
      %1985 = vst [vmem:[#allocation2 + $0x270] sm:$0xff] %v1857
      %1986 = vst [vmem:[#allocation2 + $0x278] sm:$0xff] %v1858
      %1987 = vst [vmem:[#allocation2 + $0x280] sm:$0xff] %v1859
      %1988 = vst [vmem:[#allocation2 + $0x288] sm:$0xff] %v1860
      %1989 = vst [vmem:[#allocation2 + $0x290] sm:$0xff] %v1861
      %1990 = vst [vmem:[#allocation2 + $0x298] sm:$0xff] %v1862
      %1991 = vst [vmem:[#allocation2 + $0x2a0] sm:$0xff] %v1863
      %1992 = vst [vmem:[#allocation2 + $0x2a8] sm:$0xff] %v1864
      %1993 = vst [vmem:[#allocation2 + $0x2b0] sm:$0xff] %v1865
      %1994 = vst [vmem:[#allocation2 + $0x2b8] sm:$0xff] %v1866
      %1995 = vst [vmem:[#allocation2 + $0x2c0] sm:$0xff] %v1867
      %1996 = vst [vmem:[#allocation2 + $0x2c8] sm:$0xff] %v1868
      %1997 = vst [vmem:[#allocation2 + $0x2d0] sm:$0xff] %v1869
      %1998 = vst [vmem:[#allocation2 + $0x2d8] sm:$0xff] %v1870
      %1999 = vst [vmem:[#allocation2 + $0x2e0] sm:$0xff] %v1871
      %2000 = vst [vmem:[#allocation2 + $0x2e8] sm:$0xff] %v1872
      %2001 = vst [vmem:[#allocation2 + $0x2f0] sm:$0xff] %v1873
      %2002 = vst [vmem:[#allocation2 + $0x2f8] sm:$0xff] %v1874
      %2003 = vst [vmem:[#allocation2 + $0x300] sm:$0xff] %v1875
      %2004 = vst [vmem:[#allocation2 + $0x308] sm:$0xff] %v1876
      %2005 = vst [vmem:[#allocation2 + $0x310] sm:$0xff] %v1877
      %2006 = vst [vmem:[#allocation2 + $0x318] sm:$0xff] %v1878
      %2007 = vst [vmem:[#allocation2 + $0x320] sm:$0xff] %v1879
      %2008 = vst [vmem:[#allocation2 + $0x328] sm:$0xff] %v1880
      %2009 = vst [vmem:[#allocation2 + $0x330] sm:$0xff] %v1881
      %2010 = vst [vmem:[#allocation2 + $0x338] sm:$0xff] %v1882
      %2011 = vst [vmem:[#allocation2 + $0x340] sm:$0xff] %v1883
      %2012 = vst [vmem:[#allocation2 + $0x348] sm:$0xff] %v1884
      %2013 = vst [vmem:[#allocation2 + $0x350] sm:$0xff] %v1885
      %2014 = vst [vmem:[#allocation2 + $0x358] sm:$0xff] %v1886
      %2015 = vst [vmem:[#allocation2 + $0x360] sm:$0xff] %v1887
      %2016 = vst [vmem:[#allocation2 + $0x368] sm:$0xff] %v1888
      %2017 = vst [vmem:[#allocation2 + $0x370] sm:$0xff] %v1889
      %2018 = vst [vmem:[#allocation2 + $0x378] sm:$0xff] %v1890
      %2019 = vst [vmem:[#allocation2 + $0x380] sm:$0xff] %v1891
      %2020 = vst [vmem:[#allocation2 + $0x388] sm:$0xff] %v1892
      %2021 = vst [vmem:[#allocation2 + $0x390] sm:$0xff] %v1893
      %2022 = vst [vmem:[#allocation2 + $0x398] sm:$0xff] %v1894
      %2023 = vst [vmem:[#allocation2 + $0x3a0] sm:$0xff] %v1895
      %2024 = vst [vmem:[#allocation2 + $0x3a8] sm:$0xff] %v1896
      %2025 = vst [vmem:[#allocation2 + $0x3b0] sm:$0xff] %v1897
      %2026 = vst [vmem:[#allocation2 + $0x3b8] sm:$0xff] %v1898
      %2027 = vst [vmem:[#allocation2 + $0x3c0] sm:$0xff] %v1899
      %2028 = vst [vmem:[#allocation2 + $0x3c8] sm:$0xff] %v1900
      %2029 = vst [vmem:[#allocation2 + $0x3d0] sm:$0xff] %v1901
      %2030 = vst [vmem:[#allocation2 + $0x3d8] sm:$0xff] %v1902
      %2031 = vst [vmem:[#allocation2 + $0x3e0] sm:$0xff] %v1903
      %2032 = vst [vmem:[#allocation2 + $0x3e8] sm:$0xff] %v1904
      %2033 = vst [vmem:[#allocation2 + $0x3f0] sm:$0xff] %v1905
      %2034 = vst [vmem:[#allocation2 + $0x3f8] sm:$0xff] %v1906
      // Predicated region
      $region41: #{_conv1x1_p.1} parent=35 // pred_check
        %p2035 = pneg %p301
      $region42: #{_conv1x1_p.1} parent=35 // pred_check_branch
        %2037 = sbr.rel (%p2035) target = $region44
      $region43: #{_conv1x1_p.1} parent=35 // pred_region
        %v2038 = vld [vmem:[#allocation2] sm:$0xff]
        %v2039 = vld [vmem:[#allocation2 + $0x8] sm:$0xff]
        %v2040 = vld [vmem:[#allocation2 + $0x10] sm:$0xff]
        %v2041 = vld [vmem:[#allocation2 + $0x18] sm:$0xff]
        %v2042 = vld [vmem:[#allocation2 + $0x20] sm:$0xff]
        %v2043 = vld [vmem:[#allocation2 + $0x28] sm:$0xff]
        %v2044 = vld [vmem:[#allocation2 + $0x30] sm:$0xff]
        %v2045 = vld [vmem:[#allocation2 + $0x38] sm:$0xff]
        %v2046 = vld [vmem:[#allocation2 + $0x40] sm:$0xff]
        %v2047 = vld [vmem:[#allocation2 + $0x48] sm:$0xff]
        %v2048 = vld [vmem:[#allocation2 + $0x50] sm:$0xff]
        %v2049 = vld [vmem:[#allocation2 + $0x58] sm:$0xff]
        %v2050 = vld [vmem:[#allocation2 + $0x60] sm:$0xff]
        %v2051 = vld [vmem:[#allocation2 + $0x68] sm:$0xff]
        %v2052 = vld [vmem:[#allocation2 + $0x70] sm:$0xff]
        %v2053 = vld [vmem:[#allocation2 + $0x78] sm:$0xff]
        %v2054 = vld [vmem:[#allocation2 + $0x80] sm:$0xff]
        %v2055 = vld [vmem:[#allocation2 + $0x88] sm:$0xff]
        %v2056 = vld [vmem:[#allocation2 + $0x90] sm:$0xff]
        %v2057 = vld [vmem:[#allocation2 + $0x98] sm:$0xff]
        %v2058 = vld [vmem:[#allocation2 + $0xa0] sm:$0xff]
        %v2059 = vld [vmem:[#allocation2 + $0xa8] sm:$0xff]
        %v2060 = vld [vmem:[#allocation2 + $0xb0] sm:$0xff]
        %v2061 = vld [vmem:[#allocation2 + $0xb8] sm:$0xff]
        %v2062 = vld [vmem:[#allocation2 + $0xc0] sm:$0xff]
        %v2063 = vld [vmem:[#allocation2 + $0xc8] sm:$0xff]
        %v2064 = vld [vmem:[#allocation2 + $0xd0] sm:$0xff]
        %v2065 = vld [vmem:[#allocation2 + $0xd8] sm:$0xff]
        %v2066 = vld [vmem:[#allocation2 + $0xe0] sm:$0xff]
        %v2067 = vld [vmem:[#allocation2 + $0xe8] sm:$0xff]
        %v2068 = vld [vmem:[#allocation2 + $0xf0] sm:$0xff]
        %v2069 = vld [vmem:[#allocation2 + $0xf8] sm:$0xff]
        %v2070 = vld [vmem:[#allocation2 + $0x100] sm:$0xff]
        %v2071 = vld [vmem:[#allocation2 + $0x108] sm:$0xff]
        %v2072 = vld [vmem:[#allocation2 + $0x110] sm:$0xff]
        %v2073 = vld [vmem:[#allocation2 + $0x118] sm:$0xff]
        %v2074 = vld [vmem:[#allocation2 + $0x120] sm:$0xff]
        %v2075 = vld [vmem:[#allocation2 + $0x128] sm:$0xff]
        %v2076 = vld [vmem:[#allocation2 + $0x130] sm:$0xff]
        %v2077 = vld [vmem:[#allocation2 + $0x138] sm:$0xff]
        %v2078 = vld [vmem:[#allocation2 + $0x140] sm:$0xff]
        %v2079 = vld [vmem:[#allocation2 + $0x148] sm:$0xff]
        %v2080 = vld [vmem:[#allocation2 + $0x150] sm:$0xff]
        %v2081 = vld [vmem:[#allocation2 + $0x158] sm:$0xff]
        %v2082 = vld [vmem:[#allocation2 + $0x160] sm:$0xff]
        %v2083 = vld [vmem:[#allocation2 + $0x168] sm:$0xff]
        %v2084 = vld [vmem:[#allocation2 + $0x170] sm:$0xff]
        %v2085 = vld [vmem:[#allocation2 + $0x178] sm:$0xff]
        %v2086 = vld [vmem:[#allocation2 + $0x180] sm:$0xff]
        %v2087 = vld [vmem:[#allocation2 + $0x188] sm:$0xff]
        %v2088 = vld [vmem:[#allocation2 + $0x190] sm:$0xff]
        %v2089 = vld [vmem:[#allocation2 + $0x198] sm:$0xff]
        %v2090 = vld [vmem:[#allocation2 + $0x1a0] sm:$0xff]
        %v2091 = vld [vmem:[#allocation2 + $0x1a8] sm:$0xff]
        %v2092 = vld [vmem:[#allocation2 + $0x1b0] sm:$0xff]
        %v2093 = vld [vmem:[#allocation2 + $0x1b8] sm:$0xff]
        %v2094 = vld [vmem:[#allocation2 + $0x1c0] sm:$0xff]
        %v2095 = vld [vmem:[#allocation2 + $0x1c8] sm:$0xff]
        %v2096 = vld [vmem:[#allocation2 + $0x1d0] sm:$0xff]
        %v2097 = vld [vmem:[#allocation2 + $0x1d8] sm:$0xff]
        %v2098 = vld [vmem:[#allocation2 + $0x1e0] sm:$0xff]
        %v2099 = vld [vmem:[#allocation2 + $0x1e8] sm:$0xff]
        %v2100 = vld [vmem:[#allocation2 + $0x1f0] sm:$0xff]
        %v2101 = vld [vmem:[#allocation2 + $0x1f8] sm:$0xff]
        %v2102 = vld [vmem:[#allocation2 + $0x200] sm:$0xff]
        %v2103 = vld [vmem:[#allocation2 + $0x208] sm:$0xff]
        %v2104 = vld [vmem:[#allocation2 + $0x210] sm:$0xff]
        %v2105 = vld [vmem:[#allocation2 + $0x218] sm:$0xff]
        %v2106 = vld [vmem:[#allocation2 + $0x220] sm:$0xff]
        %v2107 = vld [vmem:[#allocation2 + $0x228] sm:$0xff]
        %v2108 = vld [vmem:[#allocation2 + $0x230] sm:$0xff]
        %v2109 = vld [vmem:[#allocation2 + $0x238] sm:$0xff]
        %v2110 = vld [vmem:[#allocation2 + $0x240] sm:$0xff]
        %v2111 = vld [vmem:[#allocation2 + $0x248] sm:$0xff]
        %v2112 = vld [vmem:[#allocation2 + $0x250] sm:$0xff]
        %v2113 = vld [vmem:[#allocation2 + $0x258] sm:$0xff]
        %v2114 = vld [vmem:[#allocation2 + $0x260] sm:$0xff]
        %v2115 = vld [vmem:[#allocation2 + $0x268] sm:$0xff]
        %v2116 = vld [vmem:[#allocation2 + $0x270] sm:$0xff]
        %v2117 = vld [vmem:[#allocation2 + $0x278] sm:$0xff]
        %v2118 = vld [vmem:[#allocation2 + $0x280] sm:$0xff]
        %v2119 = vld [vmem:[#allocation2 + $0x288] sm:$0xff]
        %v2120 = vld [vmem:[#allocation2 + $0x290] sm:$0xff]
        %v2121 = vld [vmem:[#allocation2 + $0x298] sm:$0xff]
        %v2122 = vld [vmem:[#allocation2 + $0x2a0] sm:$0xff]
        %v2123 = vld [vmem:[#allocation2 + $0x2a8] sm:$0xff]
        %v2124 = vld [vmem:[#allocation2 + $0x2b0] sm:$0xff]
        %v2125 = vld [vmem:[#allocation2 + $0x2b8] sm:$0xff]
        %v2126 = vld [vmem:[#allocation2 + $0x2c0] sm:$0xff]
        %v2127 = vld [vmem:[#allocation2 + $0x2c8] sm:$0xff]
        %v2128 = vld [vmem:[#allocation2 + $0x2d0] sm:$0xff]
        %v2129 = vld [vmem:[#allocation2 + $0x2d8] sm:$0xff]
        %v2130 = vld [vmem:[#allocation2 + $0x2e0] sm:$0xff]
        %v2131 = vld [vmem:[#allocation2 + $0x2e8] sm:$0xff]
        %v2132 = vld [vmem:[#allocation2 + $0x2f0] sm:$0xff]
        %v2133 = vld [vmem:[#allocation2 + $0x2f8] sm:$0xff]
        %v2134 = vld [vmem:[#allocation2 + $0x300] sm:$0xff]
        %v2135 = vld [vmem:[#allocation2 + $0x308] sm:$0xff]
        %v2136 = vld [vmem:[#allocation2 + $0x310] sm:$0xff]
        %v2137 = vld [vmem:[#allocation2 + $0x318] sm:$0xff]
        %v2138 = vld [vmem:[#allocation2 + $0x320] sm:$0xff]
        %v2139 = vld [vmem:[#allocation2 + $0x328] sm:$0xff]
        %v2140 = vld [vmem:[#allocation2 + $0x330] sm:$0xff]
        %v2141 = vld [vmem:[#allocation2 + $0x338] sm:$0xff]
        %v2142 = vld [vmem:[#allocation2 + $0x340] sm:$0xff]
        %v2143 = vld [vmem:[#allocation2 + $0x348] sm:$0xff]
        %v2144 = vld [vmem:[#allocation2 + $0x350] sm:$0xff]
        %v2145 = vld [vmem:[#allocation2 + $0x358] sm:$0xff]
        %v2146 = vld [vmem:[#allocation2 + $0x360] sm:$0xff]
        %v2147 = vld [vmem:[#allocation2 + $0x368] sm:$0xff]
        %v2148 = vld [vmem:[#allocation2 + $0x370] sm:$0xff]
        %v2149 = vld [vmem:[#allocation2 + $0x378] sm:$0xff]
        %v2150 = vld [vmem:[#allocation2 + $0x380] sm:$0xff]
        %v2151 = vld [vmem:[#allocation2 + $0x388] sm:$0xff]
        %v2152 = vld [vmem:[#allocation2 + $0x390] sm:$0xff]
        %v2153 = vld [vmem:[#allocation2 + $0x398] sm:$0xff]
        %v2154 = vld [vmem:[#allocation2 + $0x3a0] sm:$0xff]
        %v2155 = vld [vmem:[#allocation2 + $0x3a8] sm:$0xff]
        %v2156 = vld [vmem:[#allocation2 + $0x3b0] sm:$0xff]
        %v2157 = vld [vmem:[#allocation2 + $0x3b8] sm:$0xff]
        %v2158 = vld [vmem:[#allocation2 + $0x3c0] sm:$0xff]
        %v2159 = vld [vmem:[#allocation2 + $0x3c8] sm:$0xff]
        %v2160 = vld [vmem:[#allocation2 + $0x3d0] sm:$0xff]
        %v2161 = vld [vmem:[#allocation2 + $0x3d8] sm:$0xff]
        %v2162 = vld [vmem:[#allocation2 + $0x3e0] sm:$0xff]
        %v2163 = vld [vmem:[#allocation2 + $0x3e8] sm:$0xff]
        %v2164 = vld [vmem:[#allocation2 + $0x3f0] sm:$0xff]
        %v2165 = vld [vmem:[#allocation2 + $0x3f8] sm:$0xff]
        %v2166 = vld [vmem:[%s287] sm:$0x1]
        %v2167 = vld [vmem:[%s290] sm:$0x1]
        %v2169 = vlaneseq
        %v2170 = vshrl.u32 %v2169, 7
        %v2171 = vsub.s32 0, %v2170
        %v2172 = vrot.slane %v2166, %v2171
        %v2174 = vmul.f32 %v2038, %v2172
        %v2175 = vmul.f32 %v2039, %v2172
        %v2176 = vmul.f32 %v2040, %v2172
        %v2177 = vmul.f32 %v2041, %v2172
        %v2178 = vmul.f32 %v2042, %v2172
        %v2179 = vmul.f32 %v2043, %v2172
        %v2180 = vmul.f32 %v2044, %v2172
        %v2181 = vmul.f32 %v2045, %v2172
        %v2182 = vmul.f32 %v2046, %v2172
        %v2183 = vmul.f32 %v2047, %v2172
        %v2184 = vmul.f32 %v2048, %v2172
        %v2185 = vmul.f32 %v2049, %v2172
        %v2186 = vmul.f32 %v2050, %v2172
        %v2187 = vmul.f32 %v2051, %v2172
        %v2188 = vmul.f32 %v2052, %v2172
        %v2189 = vmul.f32 %v2053, %v2172
        %v2190 = vmul.f32 %v2054, %v2172
        %v2191 = vmul.f32 %v2055, %v2172
        %v2192 = vmul.f32 %v2056, %v2172
        %v2193 = vmul.f32 %v2057, %v2172
        %v2194 = vmul.f32 %v2058, %v2172
        %v2195 = vmul.f32 %v2059, %v2172
        %v2196 = vmul.f32 %v2060, %v2172
        %v2197 = vmul.f32 %v2061, %v2172
        %v2198 = vmul.f32 %v2062, %v2172
        %v2199 = vmul.f32 %v2063, %v2172
        %v2200 = vmul.f32 %v2064, %v2172
        %v2201 = vmul.f32 %v2065, %v2172
        %v2202 = vmul.f32 %v2066, %v2172
        %v2203 = vmul.f32 %v2067, %v2172
        %v2204 = vmul.f32 %v2068, %v2172
        %v2205 = vmul.f32 %v2069, %v2172
        %v2206 = vmul.f32 %v2070, %v2172
        %v2207 = vmul.f32 %v2071, %v2172
        %v2208 = vmul.f32 %v2072, %v2172
        %v2209 = vmul.f32 %v2073, %v2172
        %v2210 = vmul.f32 %v2074, %v2172
        %v2211 = vmul.f32 %v2075, %v2172
        %v2212 = vmul.f32 %v2076, %v2172
        %v2213 = vmul.f32 %v2077, %v2172
        %v2214 = vmul.f32 %v2078, %v2172
        %v2215 = vmul.f32 %v2079, %v2172
        %v2216 = vmul.f32 %v2080, %v2172
        %v2217 = vmul.f32 %v2081, %v2172
        %v2218 = vmul.f32 %v2082, %v2172
        %v2219 = vmul.f32 %v2083, %v2172
        %v2220 = vmul.f32 %v2084, %v2172
        %v2221 = vmul.f32 %v2085, %v2172
        %v2222 = vmul.f32 %v2086, %v2172
        %v2223 = vmul.f32 %v2087, %v2172
        %v2224 = vmul.f32 %v2088, %v2172
        %v2225 = vmul.f32 %v2089, %v2172
        %v2226 = vmul.f32 %v2090, %v2172
        %v2227 = vmul.f32 %v2091, %v2172
        %v2228 = vmul.f32 %v2092, %v2172
        %v2229 = vmul.f32 %v2093, %v2172
        %v2230 = vmul.f32 %v2094, %v2172
        %v2231 = vmul.f32 %v2095, %v2172
        %v2232 = vmul.f32 %v2096, %v2172
        %v2233 = vmul.f32 %v2097, %v2172
        %v2234 = vmul.f32 %v2098, %v2172
        %v2235 = vmul.f32 %v2099, %v2172
        %v2236 = vmul.f32 %v2100, %v2172
        %v2237 = vmul.f32 %v2101, %v2172
        %v2238 = vmul.f32 %v2102, %v2172
        %v2239 = vmul.f32 %v2103, %v2172
        %v2240 = vmul.f32 %v2104, %v2172
        %v2241 = vmul.f32 %v2105, %v2172
        %v2242 = vmul.f32 %v2106, %v2172
        %v2243 = vmul.f32 %v2107, %v2172
        %v2244 = vmul.f32 %v2108, %v2172
        %v2245 = vmul.f32 %v2109, %v2172
        %v2246 = vmul.f32 %v2110, %v2172
        %v2247 = vmul.f32 %v2111, %v2172
        %v2248 = vmul.f32 %v2112, %v2172
        %v2249 = vmul.f32 %v2113, %v2172
        %v2250 = vmul.f32 %v2114, %v2172
        %v2251 = vmul.f32 %v2115, %v2172
        %v2252 = vmul.f32 %v2116, %v2172
        %v2253 = vmul.f32 %v2117, %v2172
        %v2254 = vmul.f32 %v2118, %v2172
        %v2255 = vmul.f32 %v2119, %v2172
        %v2256 = vmul.f32 %v2120, %v2172
        %v2257 = vmul.f32 %v2121, %v2172
        %v2258 = vmul.f32 %v2122, %v2172
        %v2259 = vmul.f32 %v2123, %v2172
        %v2260 = vmul.f32 %v2124, %v2172
        %v2261 = vmul.f32 %v2125, %v2172
        %v2262 = vmul.f32 %v2126, %v2172
        %v2263 = vmul.f32 %v2127, %v2172
        %v2264 = vmul.f32 %v2128, %v2172
        %v2265 = vmul.f32 %v2129, %v2172
        %v2266 = vmul.f32 %v2130, %v2172
        %v2267 = vmul.f32 %v2131, %v2172
        %v2268 = vmul.f32 %v2132, %v2172
        %v2269 = vmul.f32 %v2133, %v2172
        %v2270 = vmul.f32 %v2134, %v2172
        %v2271 = vmul.f32 %v2135, %v2172
        %v2272 = vmul.f32 %v2136, %v2172
        %v2273 = vmul.f32 %v2137, %v2172
        %v2274 = vmul.f32 %v2138, %v2172
        %v2275 = vmul.f32 %v2139, %v2172
        %v2276 = vmul.f32 %v2140, %v2172
        %v2277 = vmul.f32 %v2141, %v2172
        %v2278 = vmul.f32 %v2142, %v2172
        %v2279 = vmul.f32 %v2143, %v2172
        %v2280 = vmul.f32 %v2144, %v2172
        %v2281 = vmul.f32 %v2145, %v2172
        %v2282 = vmul.f32 %v2146, %v2172
        %v2283 = vmul.f32 %v2147, %v2172
        %v2284 = vmul.f32 %v2148, %v2172
        %v2285 = vmul.f32 %v2149, %v2172
        %v2286 = vmul.f32 %v2150, %v2172
        %v2287 = vmul.f32 %v2151, %v2172
        %v2288 = vmul.f32 %v2152, %v2172
        %v2289 = vmul.f32 %v2153, %v2172
        %v2290 = vmul.f32 %v2154, %v2172
        %v2291 = vmul.f32 %v2155, %v2172
        %v2292 = vmul.f32 %v2156, %v2172
        %v2293 = vmul.f32 %v2157, %v2172
        %v2294 = vmul.f32 %v2158, %v2172
        %v2295 = vmul.f32 %v2159, %v2172
        %v2296 = vmul.f32 %v2160, %v2172
        %v2297 = vmul.f32 %v2161, %v2172
        %v2298 = vmul.f32 %v2162, %v2172
        %v2299 = vmul.f32 %v2163, %v2172
        %v2300 = vmul.f32 %v2164, %v2172
        %v2301 = vmul.f32 %v2165, %v2172
        %v2303 = vlaneseq
        %v2304 = vshrl.u32 %v2303, 7
        %v2305 = vsub.s32 0, %v2304
        %v2306 = vrot.slane %v2167, %v2305
        %v2308 = vadd.f32 %v2174, %v2306
        %v2309 = vadd.f32 %v2175, %v2306
        %v2310 = vadd.f32 %v2176, %v2306
        %v2311 = vadd.f32 %v2177, %v2306
        %v2312 = vadd.f32 %v2178, %v2306
        %v2313 = vadd.f32 %v2179, %v2306
        %v2314 = vadd.f32 %v2180, %v2306
        %v2315 = vadd.f32 %v2181, %v2306
        %v2316 = vadd.f32 %v2182, %v2306
        %v2317 = vadd.f32 %v2183, %v2306
        %v2318 = vadd.f32 %v2184, %v2306
        %v2319 = vadd.f32 %v2185, %v2306
        %v2320 = vadd.f32 %v2186, %v2306
        %v2321 = vadd.f32 %v2187, %v2306
        %v2322 = vadd.f32 %v2188, %v2306
        %v2323 = vadd.f32 %v2189, %v2306
        %v2324 = vadd.f32 %v2190, %v2306
        %v2325 = vadd.f32 %v2191, %v2306
        %v2326 = vadd.f32 %v2192, %v2306
        %v2327 = vadd.f32 %v2193, %v2306
        %v2328 = vadd.f32 %v2194, %v2306
        %v2329 = vadd.f32 %v2195, %v2306
        %v2330 = vadd.f32 %v2196, %v2306
        %v2331 = vadd.f32 %v2197, %v2306
        %v2332 = vadd.f32 %v2198, %v2306
        %v2333 = vadd.f32 %v2199, %v2306
        %v2334 = vadd.f32 %v2200, %v2306
        %v2335 = vadd.f32 %v2201, %v2306
        %v2336 = vadd.f32 %v2202, %v2306
        %v2337 = vadd.f32 %v2203, %v2306
        %v2338 = vadd.f32 %v2204, %v2306
        %v2339 = vadd.f32 %v2205, %v2306
        %v2340 = vadd.f32 %v2206, %v2306
        %v2341 = vadd.f32 %v2207, %v2306
        %v2342 = vadd.f32 %v2208, %v2306
        %v2343 = vadd.f32 %v2209, %v2306
        %v2344 = vadd.f32 %v2210, %v2306
        %v2345 = vadd.f32 %v2211, %v2306
        %v2346 = vadd.f32 %v2212, %v2306
        %v2347 = vadd.f32 %v2213, %v2306
        %v2348 = vadd.f32 %v2214, %v2306
        %v2349 = vadd.f32 %v2215, %v2306
        %v2350 = vadd.f32 %v2216, %v2306
        %v2351 = vadd.f32 %v2217, %v2306
        %v2352 = vadd.f32 %v2218, %v2306
        %v2353 = vadd.f32 %v2219, %v2306
        %v2354 = vadd.f32 %v2220, %v2306
        %v2355 = vadd.f32 %v2221, %v2306
        %v2356 = vadd.f32 %v2222, %v2306
        %v2357 = vadd.f32 %v2223, %v2306
        %v2358 = vadd.f32 %v2224, %v2306
        %v2359 = vadd.f32 %v2225, %v2306
        %v2360 = vadd.f32 %v2226, %v2306
        %v2361 = vadd.f32 %v2227, %v2306
        %v2362 = vadd.f32 %v2228, %v2306
        %v2363 = vadd.f32 %v2229, %v2306
        %v2364 = vadd.f32 %v2230, %v2306
        %v2365 = vadd.f32 %v2231, %v2306
        %v2366 = vadd.f32 %v2232, %v2306
        %v2367 = vadd.f32 %v2233, %v2306
        %v2368 = vadd.f32 %v2234, %v2306
        %v2369 = vadd.f32 %v2235, %v2306
        %v2370 = vadd.f32 %v2236, %v2306
        %v2371 = vadd.f32 %v2237, %v2306
        %v2372 = vadd.f32 %v2238, %v2306
        %v2373 = vadd.f32 %v2239, %v2306
        %v2374 = vadd.f32 %v2240, %v2306
        %v2375 = vadd.f32 %v2241, %v2306
        %v2376 = vadd.f32 %v2242, %v2306
        %v2377 = vadd.f32 %v2243, %v2306
        %v2378 = vadd.f32 %v2244, %v2306
        %v2379 = vadd.f32 %v2245, %v2306
        %v2380 = vadd.f32 %v2246, %v2306
        %v2381 = vadd.f32 %v2247, %v2306
        %v2382 = vadd.f32 %v2248, %v2306
        %v2383 = vadd.f32 %v2249, %v2306
        %v2384 = vadd.f32 %v2250, %v2306
        %v2385 = vadd.f32 %v2251, %v2306
        %v2386 = vadd.f32 %v2252, %v2306
        %v2387 = vadd.f32 %v2253, %v2306
        %v2388 = vadd.f32 %v2254, %v2306
        %v2389 = vadd.f32 %v2255, %v2306
        %v2390 = vadd.f32 %v2256, %v2306
        %v2391 = vadd.f32 %v2257, %v2306
        %v2392 = vadd.f32 %v2258, %v2306
        %v2393 = vadd.f32 %v2259, %v2306
        %v2394 = vadd.f32 %v2260, %v2306
        %v2395 = vadd.f32 %v2261, %v2306
        %v2396 = vadd.f32 %v2262, %v2306
        %v2397 = vadd.f32 %v2263, %v2306
        %v2398 = vadd.f32 %v2264, %v2306
        %v2399 = vadd.f32 %v2265, %v2306
        %v2400 = vadd.f32 %v2266, %v2306
        %v2401 = vadd.f32 %v2267, %v2306
        %v2402 = vadd.f32 %v2268, %v2306
        %v2403 = vadd.f32 %v2269, %v2306
        %v2404 = vadd.f32 %v2270, %v2306
        %v2405 = vadd.f32 %v2271, %v2306
        %v2406 = vadd.f32 %v2272, %v2306
        %v2407 = vadd.f32 %v2273, %v2306
        %v2408 = vadd.f32 %v2274, %v2306
        %v2409 = vadd.f32 %v2275, %v2306
        %v2410 = vadd.f32 %v2276, %v2306
        %v2411 = vadd.f32 %v2277, %v2306
        %v2412 = vadd.f32 %v2278, %v2306
        %v2413 = vadd.f32 %v2279, %v2306
        %v2414 = vadd.f32 %v2280, %v2306
        %v2415 = vadd.f32 %v2281, %v2306
        %v2416 = vadd.f32 %v2282, %v2306
        %v2417 = vadd.f32 %v2283, %v2306
        %v2418 = vadd.f32 %v2284, %v2306
        %v2419 = vadd.f32 %v2285, %v2306
        %v2420 = vadd.f32 %v2286, %v2306
        %v2421 = vadd.f32 %v2287, %v2306
        %v2422 = vadd.f32 %v2288, %v2306
        %v2423 = vadd.f32 %v2289, %v2306
        %v2424 = vadd.f32 %v2290, %v2306
        %v2425 = vadd.f32 %v2291, %v2306
        %v2426 = vadd.f32 %v2292, %v2306
        %v2427 = vadd.f32 %v2293, %v2306
        %v2428 = vadd.f32 %v2294, %v2306
        %v2429 = vadd.f32 %v2295, %v2306
        %v2430 = vadd.f32 %v2296, %v2306
        %v2431 = vadd.f32 %v2297, %v2306
        %v2432 = vadd.f32 %v2298, %v2306
        %v2433 = vadd.f32 %v2299, %v2306
        %v2434 = vadd.f32 %v2300, %v2306
        %v2435 = vadd.f32 %v2301, %v2306
        %v2436 = vmax.f32 %v2308, 0.0
        %v2437 = vmax.f32 %v2309, 0.0
        %v2438 = vmax.f32 %v2310, 0.0
        %v2439 = vmax.f32 %v2311, 0.0
        %v2440 = vmax.f32 %v2312, 0.0
        %v2441 = vmax.f32 %v2313, 0.0
        %v2442 = vmax.f32 %v2314, 0.0
        %v2443 = vmax.f32 %v2315, 0.0
        %v2444 = vmax.f32 %v2316, 0.0
        %v2445 = vmax.f32 %v2317, 0.0
        %v2446 = vmax.f32 %v2318, 0.0
        %v2447 = vmax.f32 %v2319, 0.0
        %v2448 = vmax.f32 %v2320, 0.0
        %v2449 = vmax.f32 %v2321, 0.0
        %v2450 = vmax.f32 %v2322, 0.0
        %v2451 = vmax.f32 %v2323, 0.0
        %v2452 = vmax.f32 %v2324, 0.0
        %v2453 = vmax.f32 %v2325, 0.0
        %v2454 = vmax.f32 %v2326, 0.0
        %v2455 = vmax.f32 %v2327, 0.0
        %v2456 = vmax.f32 %v2328, 0.0
        %v2457 = vmax.f32 %v2329, 0.0
        %v2458 = vmax.f32 %v2330, 0.0
        %v2459 = vmax.f32 %v2331, 0.0
        %v2460 = vmax.f32 %v2332, 0.0
        %v2461 = vmax.f32 %v2333, 0.0
        %v2462 = vmax.f32 %v2334, 0.0
        %v2463 = vmax.f32 %v2335, 0.0
        %v2464 = vmax.f32 %v2336, 0.0
        %v2465 = vmax.f32 %v2337, 0.0
        %v2466 = vmax.f32 %v2338, 0.0
        %v2467 = vmax.f32 %v2339, 0.0
        %v2468 = vmax.f32 %v2340, 0.0
        %v2469 = vmax.f32 %v2341, 0.0
        %v2470 = vmax.f32 %v2342, 0.0
        %v2471 = vmax.f32 %v2343, 0.0
        %v2472 = vmax.f32 %v2344, 0.0
        %v2473 = vmax.f32 %v2345, 0.0
        %v2474 = vmax.f32 %v2346, 0.0
        %v2475 = vmax.f32 %v2347, 0.0
        %v2476 = vmax.f32 %v2348, 0.0
        %v2477 = vmax.f32 %v2349, 0.0
        %v2478 = vmax.f32 %v2350, 0.0
        %v2479 = vmax.f32 %v2351, 0.0
        %v2480 = vmax.f32 %v2352, 0.0
        %v2481 = vmax.f32 %v2353, 0.0
        %v2482 = vmax.f32 %v2354, 0.0
        %v2483 = vmax.f32 %v2355, 0.0
        %v2484 = vmax.f32 %v2356, 0.0
        %v2485 = vmax.f32 %v2357, 0.0
        %v2486 = vmax.f32 %v2358, 0.0
        %v2487 = vmax.f32 %v2359, 0.0
        %v2488 = vmax.f32 %v2360, 0.0
        %v2489 = vmax.f32 %v2361, 0.0
        %v2490 = vmax.f32 %v2362, 0.0
        %v2491 = vmax.f32 %v2363, 0.0
        %v2492 = vmax.f32 %v2364, 0.0
        %v2493 = vmax.f32 %v2365, 0.0
        %v2494 = vmax.f32 %v2366, 0.0
        %v2495 = vmax.f32 %v2367, 0.0
        %v2496 = vmax.f32 %v2368, 0.0
        %v2497 = vmax.f32 %v2369, 0.0
        %v2498 = vmax.f32 %v2370, 0.0
        %v2499 = vmax.f32 %v2371, 0.0
        %v2500 = vmax.f32 %v2372, 0.0
        %v2501 = vmax.f32 %v2373, 0.0
        %v2502 = vmax.f32 %v2374, 0.0
        %v2503 = vmax.f32 %v2375, 0.0
        %v2504 = vmax.f32 %v2376, 0.0
        %v2505 = vmax.f32 %v2377, 0.0
        %v2506 = vmax.f32 %v2378, 0.0
        %v2507 = vmax.f32 %v2379, 0.0
        %v2508 = vmax.f32 %v2380, 0.0
        %v2509 = vmax.f32 %v2381, 0.0
        %v2510 = vmax.f32 %v2382, 0.0
        %v2511 = vmax.f32 %v2383, 0.0
        %v2512 = vmax.f32 %v2384, 0.0
        %v2513 = vmax.f32 %v2385, 0.0
        %v2514 = vmax.f32 %v2386, 0.0
        %v2515 = vmax.f32 %v2387, 0.0
        %v2516 = vmax.f32 %v2388, 0.0
        %v2517 = vmax.f32 %v2389, 0.0
        %v2518 = vmax.f32 %v2390, 0.0
        %v2519 = vmax.f32 %v2391, 0.0
        %v2520 = vmax.f32 %v2392, 0.0
        %v2521 = vmax.f32 %v2393, 0.0
        %v2522 = vmax.f32 %v2394, 0.0
        %v2523 = vmax.f32 %v2395, 0.0
        %v2524 = vmax.f32 %v2396, 0.0
        %v2525 = vmax.f32 %v2397, 0.0
        %v2526 = vmax.f32 %v2398, 0.0
        %v2527 = vmax.f32 %v2399, 0.0
        %v2528 = vmax.f32 %v2400, 0.0
        %v2529 = vmax.f32 %v2401, 0.0
        %v2530 = vmax.f32 %v2402, 0.0
        %v2531 = vmax.f32 %v2403, 0.0
        %v2532 = vmax.f32 %v2404, 0.0
        %v2533 = vmax.f32 %v2405, 0.0
        %v2534 = vmax.f32 %v2406, 0.0
        %v2535 = vmax.f32 %v2407, 0.0
        %v2536 = vmax.f32 %v2408, 0.0
        %v2537 = vmax.f32 %v2409, 0.0
        %v2538 = vmax.f32 %v2410, 0.0
        %v2539 = vmax.f32 %v2411, 0.0
        %v2540 = vmax.f32 %v2412, 0.0
        %v2541 = vmax.f32 %v2413, 0.0
        %v2542 = vmax.f32 %v2414, 0.0
        %v2543 = vmax.f32 %v2415, 0.0
        %v2544 = vmax.f32 %v2416, 0.0
        %v2545 = vmax.f32 %v2417, 0.0
        %v2546 = vmax.f32 %v2418, 0.0
        %v2547 = vmax.f32 %v2419, 0.0
        %v2548 = vmax.f32 %v2420, 0.0
        %v2549 = vmax.f32 %v2421, 0.0
        %v2550 = vmax.f32 %v2422, 0.0
        %v2551 = vmax.f32 %v2423, 0.0
        %v2552 = vmax.f32 %v2424, 0.0
        %v2553 = vmax.f32 %v2425, 0.0
        %v2554 = vmax.f32 %v2426, 0.0
        %v2555 = vmax.f32 %v2427, 0.0
        %v2556 = vmax.f32 %v2428, 0.0
        %v2557 = vmax.f32 %v2429, 0.0
        %v2558 = vmax.f32 %v2430, 0.0
        %v2559 = vmax.f32 %v2431, 0.0
        %v2560 = vmax.f32 %v2432, 0.0
        %v2561 = vmax.f32 %v2433, 0.0
        %v2562 = vmax.f32 %v2434, 0.0
        %v2563 = vmax.f32 %v2435, 0.0
        %v2564 = vpack.c.bf16 %v2437, %v2436
        %v2565 = vpack.c.bf16 %v2439, %v2438
        %v2566 = vpack.c.bf16 %v2441, %v2440
        %v2567 = vpack.c.bf16 %v2443, %v2442
        %v2568 = vpack.c.bf16 %v2445, %v2444
        %v2569 = vpack.c.bf16 %v2447, %v2446
        %v2570 = vpack.c.bf16 %v2449, %v2448
        %v2571 = vpack.c.bf16 %v2451, %v2450
        %v2572 = vpack.c.bf16 %v2453, %v2452
        %v2573 = vpack.c.bf16 %v2455, %v2454
        %v2574 = vpack.c.bf16 %v2457, %v2456
        %v2575 = vpack.c.bf16 %v2459, %v2458
        %v2576 = vpack.c.bf16 %v2461, %v2460
        %v2577 = vpack.c.bf16 %v2463, %v2462
        %v2578 = vpack.c.bf16 %v2465, %v2464
        %v2579 = vpack.c.bf16 %v2467, %v2466
        %v2580 = vpack.c.bf16 %v2469, %v2468
        %v2581 = vpack.c.bf16 %v2471, %v2470
        %v2582 = vpack.c.bf16 %v2473, %v2472
        %v2583 = vpack.c.bf16 %v2475, %v2474
        %v2584 = vpack.c.bf16 %v2477, %v2476
        %v2585 = vpack.c.bf16 %v2479, %v2478
        %v2586 = vpack.c.bf16 %v2481, %v2480
        %v2587 = vpack.c.bf16 %v2483, %v2482
        %v2588 = vpack.c.bf16 %v2485, %v2484
        %v2589 = vpack.c.bf16 %v2487, %v2486
        %v2590 = vpack.c.bf16 %v2489, %v2488
        %v2591 = vpack.c.bf16 %v2491, %v2490
        %v2592 = vpack.c.bf16 %v2493, %v2492
        %v2593 = vpack.c.bf16 %v2495, %v2494
        %v2594 = vpack.c.bf16 %v2497, %v2496
        %v2595 = vpack.c.bf16 %v2499, %v2498
        %v2596 = vpack.c.bf16 %v2501, %v2500
        %v2597 = vpack.c.bf16 %v2503, %v2502
        %v2598 = vpack.c.bf16 %v2505, %v2504
        %v2599 = vpack.c.bf16 %v2507, %v2506
        %v2600 = vpack.c.bf16 %v2509, %v2508
        %v2601 = vpack.c.bf16 %v2511, %v2510
        %v2602 = vpack.c.bf16 %v2513, %v2512
        %v2603 = vpack.c.bf16 %v2515, %v2514
        %v2604 = vpack.c.bf16 %v2517, %v2516
        %v2605 = vpack.c.bf16 %v2519, %v2518
        %v2606 = vpack.c.bf16 %v2521, %v2520
        %v2607 = vpack.c.bf16 %v2523, %v2522
        %v2608 = vpack.c.bf16 %v2525, %v2524
        %v2609 = vpack.c.bf16 %v2527, %v2526
        %v2610 = vpack.c.bf16 %v2529, %v2528
        %v2611 = vpack.c.bf16 %v2531, %v2530
        %v2612 = vpack.c.bf16 %v2533, %v2532
        %v2613 = vpack.c.bf16 %v2535, %v2534
        %v2614 = vpack.c.bf16 %v2537, %v2536
        %v2615 = vpack.c.bf16 %v2539, %v2538
        %v2616 = vpack.c.bf16 %v2541, %v2540
        %v2617 = vpack.c.bf16 %v2543, %v2542
        %v2618 = vpack.c.bf16 %v2545, %v2544
        %v2619 = vpack.c.bf16 %v2547, %v2546
        %v2620 = vpack.c.bf16 %v2549, %v2548
        %v2621 = vpack.c.bf16 %v2551, %v2550
        %v2622 = vpack.c.bf16 %v2553, %v2552
        %v2623 = vpack.c.bf16 %v2555, %v2554
        %v2624 = vpack.c.bf16 %v2557, %v2556
        %v2625 = vpack.c.bf16 %v2559, %v2558
        %v2626 = vpack.c.bf16 %v2561, %v2560
        %v2627 = vpack.c.bf16 %v2563, %v2562
        %v2692 = vunpack.c.l.b16 %v2564
        %v2693 = vunpack.c.h.b16 %v2564
        %v2694 = vunpack.c.l.b16 %v2565
        %v2695 = vunpack.c.h.b16 %v2565
        %v2696 = vunpack.c.l.b16 %v2566
        %v2697 = vunpack.c.h.b16 %v2566
        %v2698 = vunpack.c.l.b16 %v2567
        %v2699 = vunpack.c.h.b16 %v2567
        %v2700 = vunpack.c.l.b16 %v2568
        %v2701 = vunpack.c.h.b16 %v2568
        %v2702 = vunpack.c.l.b16 %v2569
        %v2703 = vunpack.c.h.b16 %v2569
        %v2704 = vunpack.c.l.b16 %v2570
        %v2705 = vunpack.c.h.b16 %v2570
        %v2706 = vunpack.c.l.b16 %v2571
        %v2707 = vunpack.c.h.b16 %v2571
        %v2708 = vunpack.c.l.b16 %v2572
        %v2709 = vunpack.c.h.b16 %v2572
        %v2710 = vunpack.c.l.b16 %v2573
        %v2711 = vunpack.c.h.b16 %v2573
        %v2712 = vunpack.c.l.b16 %v2574
        %v2713 = vunpack.c.h.b16 %v2574
        %v2714 = vunpack.c.l.b16 %v2575
        %v2715 = vunpack.c.h.b16 %v2575
        %v2716 = vunpack.c.l.b16 %v2576
        %v2717 = vunpack.c.h.b16 %v2576
        %v2718 = vunpack.c.l.b16 %v2577
        %v2719 = vunpack.c.h.b16 %v2577
        %v2720 = vunpack.c.l.b16 %v2578
        %v2721 = vunpack.c.h.b16 %v2578
        %v2722 = vunpack.c.l.b16 %v2579
        %v2723 = vunpack.c.h.b16 %v2579
        %v2724 = vunpack.c.l.b16 %v2580
        %v2725 = vunpack.c.h.b16 %v2580
        %v2726 = vunpack.c.l.b16 %v2581
        %v2727 = vunpack.c.h.b16 %v2581
        %v2728 = vunpack.c.l.b16 %v2582
        %v2729 = vunpack.c.h.b16 %v2582
        %v2730 = vunpack.c.l.b16 %v2583
        %v2731 = vunpack.c.h.b16 %v2583
        %v2732 = vunpack.c.l.b16 %v2584
        %v2733 = vunpack.c.h.b16 %v2584
        %v2734 = vunpack.c.l.b16 %v2585
        %v2735 = vunpack.c.h.b16 %v2585
        %v2736 = vunpack.c.l.b16 %v2586
        %v2737 = vunpack.c.h.b16 %v2586
        %v2738 = vunpack.c.l.b16 %v2587
        %v2739 = vunpack.c.h.b16 %v2587
        %v2740 = vunpack.c.l.b16 %v2588
        %v2741 = vunpack.c.h.b16 %v2588
        %v2742 = vunpack.c.l.b16 %v2589
        %v2743 = vunpack.c.h.b16 %v2589
        %v2744 = vunpack.c.l.b16 %v2590
        %v2745 = vunpack.c.h.b16 %v2590
        %v2746 = vunpack.c.l.b16 %v2591
        %v2747 = vunpack.c.h.b16 %v2591
        %v2748 = vunpack.c.l.b16 %v2592
        %v2749 = vunpack.c.h.b16 %v2592
        %v2750 = vunpack.c.l.b16 %v2593
        %v2751 = vunpack.c.h.b16 %v2593
        %v2752 = vunpack.c.l.b16 %v2594
        %v2753 = vunpack.c.h.b16 %v2594
        %v2754 = vunpack.c.l.b16 %v2595
        %v2755 = vunpack.c.h.b16 %v2595
        %v2756 = vunpack.c.l.b16 %v2596
        %v2757 = vunpack.c.h.b16 %v2596
        %v2758 = vunpack.c.l.b16 %v2597
        %v2759 = vunpack.c.h.b16 %v2597
        %v2760 = vunpack.c.l.b16 %v2598
        %v2761 = vunpack.c.h.b16 %v2598
        %v2762 = vunpack.c.l.b16 %v2599
        %v2763 = vunpack.c.h.b16 %v2599
        %v2764 = vunpack.c.l.b16 %v2600
        %v2765 = vunpack.c.h.b16 %v2600
        %v2766 = vunpack.c.l.b16 %v2601
        %v2767 = vunpack.c.h.b16 %v2601
        %v2768 = vunpack.c.l.b16 %v2602
        %v2769 = vunpack.c.h.b16 %v2602
        %v2770 = vunpack.c.l.b16 %v2603
        %v2771 = vunpack.c.h.b16 %v2603
        %v2772 = vunpack.c.l.b16 %v2604
        %v2773 = vunpack.c.h.b16 %v2604
        %v2774 = vunpack.c.l.b16 %v2605
        %v2775 = vunpack.c.h.b16 %v2605
        %v2776 = vunpack.c.l.b16 %v2606
        %v2777 = vunpack.c.h.b16 %v2606
        %v2778 = vunpack.c.l.b16 %v2607
        %v2779 = vunpack.c.h.b16 %v2607
        %v2780 = vunpack.c.l.b16 %v2608
        %v2781 = vunpack.c.h.b16 %v2608
        %v2782 = vunpack.c.l.b16 %v2609
        %v2783 = vunpack.c.h.b16 %v2609
        %v2784 = vunpack.c.l.b16 %v2610
        %v2785 = vunpack.c.h.b16 %v2610
        %v2786 = vunpack.c.l.b16 %v2611
        %v2787 = vunpack.c.h.b16 %v2611
        %v2788 = vunpack.c.l.b16 %v2612
        %v2789 = vunpack.c.h.b16 %v2612
        %v2790 = vunpack.c.l.b16 %v2613
        %v2791 = vunpack.c.h.b16 %v2613
        %v2792 = vunpack.c.l.b16 %v2614
        %v2793 = vunpack.c.h.b16 %v2614
        %v2794 = vunpack.c.l.b16 %v2615
        %v2795 = vunpack.c.h.b16 %v2615
        %v2796 = vunpack.c.l.b16 %v2616
        %v2797 = vunpack.c.h.b16 %v2616
        %v2798 = vunpack.c.l.b16 %v2617
        %v2799 = vunpack.c.h.b16 %v2617
        %v2800 = vunpack.c.l.b16 %v2618
        %v2801 = vunpack.c.h.b16 %v2618
        %v2802 = vunpack.c.l.b16 %v2619
        %v2803 = vunpack.c.h.b16 %v2619
        %v2804 = vunpack.c.l.b16 %v2620
        %v2805 = vunpack.c.h.b16 %v2620
        %v2806 = vunpack.c.l.b16 %v2621
        %v2807 = vunpack.c.h.b16 %v2621
        %v2808 = vunpack.c.l.b16 %v2622
        %v2809 = vunpack.c.h.b16 %v2622
        %v2810 = vunpack.c.l.b16 %v2623
        %v2811 = vunpack.c.h.b16 %v2623
        %v2812 = vunpack.c.l.b16 %v2624
        %v2813 = vunpack.c.h.b16 %v2624
        %v2814 = vunpack.c.l.b16 %v2625
        %v2815 = vunpack.c.h.b16 %v2625
        %v2816 = vunpack.c.l.b16 %v2626
        %v2817 = vunpack.c.h.b16 %v2626
        %v2818 = vunpack.c.l.b16 %v2627
        %v2819 = vunpack.c.h.b16 %v2627
        %v2820 = vpack.c.b16 %v2692, %v2692
        %v2821 = vpack.c.b16 %v2693, %v2693
        %v2822 = vpack.c.b16 %v2694, %v2694
        %v2823 = vpack.c.b16 %v2695, %v2695
        %v2824 = vpack.c.b16 %v2696, %v2696
        %v2825 = vpack.c.b16 %v2697, %v2697
        %v2826 = vpack.c.b16 %v2698, %v2698
        %v2827 = vpack.c.b16 %v2699, %v2699
        %v2828 = vpack.c.b16 %v2700, %v2700
        %v2829 = vpack.c.b16 %v2701, %v2701
        %v2830 = vpack.c.b16 %v2702, %v2702
        %v2831 = vpack.c.b16 %v2703, %v2703
        %v2832 = vpack.c.b16 %v2704, %v2704
        %v2833 = vpack.c.b16 %v2705, %v2705
        %v2834 = vpack.c.b16 %v2706, %v2706
        %v2835 = vpack.c.b16 %v2707, %v2707
        %v2836 = vpack.c.b16 %v2708, %v2708
        %v2837 = vpack.c.b16 %v2709, %v2709
        %v2838 = vpack.c.b16 %v2710, %v2710
        %v2839 = vpack.c.b16 %v2711, %v2711
        %v2840 = vpack.c.b16 %v2712, %v2712
        %v2841 = vpack.c.b16 %v2713, %v2713
        %v2842 = vpack.c.b16 %v2714, %v2714
        %v2843 = vpack.c.b16 %v2715, %v2715
        %v2844 = vpack.c.b16 %v2716, %v2716
        %v2845 = vpack.c.b16 %v2717, %v2717
        %v2846 = vpack.c.b16 %v2718, %v2718
        %v2847 = vpack.c.b16 %v2719, %v2719
        %v2848 = vpack.c.b16 %v2720, %v2720
        %v2849 = vpack.c.b16 %v2721, %v2721
        %v2850 = vpack.c.b16 %v2722, %v2722
        %v2851 = vpack.c.b16 %v2723, %v2723
        %v2852 = vpack.c.b16 %v2724, %v2724
        %v2853 = vpack.c.b16 %v2725, %v2725
        %v2854 = vpack.c.b16 %v2726, %v2726
        %v2855 = vpack.c.b16 %v2727, %v2727
        %v2856 = vpack.c.b16 %v2728, %v2728
        %v2857 = vpack.c.b16 %v2729, %v2729
        %v2858 = vpack.c.b16 %v2730, %v2730
        %v2859 = vpack.c.b16 %v2731, %v2731
        %v2860 = vpack.c.b16 %v2732, %v2732
        %v2861 = vpack.c.b16 %v2733, %v2733
        %v2862 = vpack.c.b16 %v2734, %v2734
        %v2863 = vpack.c.b16 %v2735, %v2735
        %v2864 = vpack.c.b16 %v2736, %v2736
        %v2865 = vpack.c.b16 %v2737, %v2737
        %v2866 = vpack.c.b16 %v2738, %v2738
        %v2867 = vpack.c.b16 %v2739, %v2739
        %v2868 = vpack.c.b16 %v2740, %v2740
        %v2869 = vpack.c.b16 %v2741, %v2741
        %v2870 = vpack.c.b16 %v2742, %v2742
        %v2871 = vpack.c.b16 %v2743, %v2743
        %v2872 = vpack.c.b16 %v2744, %v2744
        %v2873 = vpack.c.b16 %v2745, %v2745
        %v2874 = vpack.c.b16 %v2746, %v2746
        %v2875 = vpack.c.b16 %v2747, %v2747
        %v2876 = vpack.c.b16 %v2748, %v2748
        %v2877 = vpack.c.b16 %v2749, %v2749
        %v2878 = vpack.c.b16 %v2750, %v2750
        %v2879 = vpack.c.b16 %v2751, %v2751
        %v2880 = vpack.c.b16 %v2752, %v2752
        %v2881 = vpack.c.b16 %v2753, %v2753
        %v2882 = vpack.c.b16 %v2754, %v2754
        %v2883 = vpack.c.b16 %v2755, %v2755
        %v2884 = vpack.c.b16 %v2756, %v2756
        %v2885 = vpack.c.b16 %v2757, %v2757
        %v2886 = vpack.c.b16 %v2758, %v2758
        %v2887 = vpack.c.b16 %v2759, %v2759
        %v2888 = vpack.c.b16 %v2760, %v2760
        %v2889 = vpack.c.b16 %v2761, %v2761
        %v2890 = vpack.c.b16 %v2762, %v2762
        %v2891 = vpack.c.b16 %v2763, %v2763
        %v2892 = vpack.c.b16 %v2764, %v2764
        %v2893 = vpack.c.b16 %v2765, %v2765
        %v2894 = vpack.c.b16 %v2766, %v2766
        %v2895 = vpack.c.b16 %v2767, %v2767
        %v2896 = vpack.c.b16 %v2768, %v2768
        %v2897 = vpack.c.b16 %v2769, %v2769
        %v2898 = vpack.c.b16 %v2770, %v2770
        %v2899 = vpack.c.b16 %v2771, %v2771
        %v2900 = vpack.c.b16 %v2772, %v2772
        %v2901 = vpack.c.b16 %v2773, %v2773
        %v2902 = vpack.c.b16 %v2774, %v2774
        %v2903 = vpack.c.b16 %v2775, %v2775
        %v2904 = vpack.c.b16 %v2776, %v2776
        %v2905 = vpack.c.b16 %v2777, %v2777
        %v2906 = vpack.c.b16 %v2778, %v2778
        %v2907 = vpack.c.b16 %v2779, %v2779
        %v2908 = vpack.c.b16 %v2780, %v2780
        %v2909 = vpack.c.b16 %v2781, %v2781
        %v2910 = vpack.c.b16 %v2782, %v2782
        %v2911 = vpack.c.b16 %v2783, %v2783
        %v2912 = vpack.c.b16 %v2784, %v2784
        %v2913 = vpack.c.b16 %v2785, %v2785
        %v2914 = vpack.c.b16 %v2786, %v2786
        %v2915 = vpack.c.b16 %v2787, %v2787
        %v2916 = vpack.c.b16 %v2788, %v2788
        %v2917 = vpack.c.b16 %v2789, %v2789
        %v2918 = vpack.c.b16 %v2790, %v2790
        %v2919 = vpack.c.b16 %v2791, %v2791
        %v2920 = vpack.c.b16 %v2792, %v2792
        %v2921 = vpack.c.b16 %v2793, %v2793
        %v2922 = vpack.c.b16 %v2794, %v2794
        %v2923 = vpack.c.b16 %v2795, %v2795
        %v2924 = vpack.c.b16 %v2796, %v2796
        %v2925 = vpack.c.b16 %v2797, %v2797
        %v2926 = vpack.c.b16 %v2798, %v2798
        %v2927 = vpack.c.b16 %v2799, %v2799
        %v2928 = vpack.c.b16 %v2800, %v2800
        %v2929 = vpack.c.b16 %v2801, %v2801
        %v2930 = vpack.c.b16 %v2802, %v2802
        %v2931 = vpack.c.b16 %v2803, %v2803
        %v2932 = vpack.c.b16 %v2804, %v2804
        %v2933 = vpack.c.b16 %v2805, %v2805
        %v2934 = vpack.c.b16 %v2806, %v2806
        %v2935 = vpack.c.b16 %v2807, %v2807
        %v2936 = vpack.c.b16 %v2808, %v2808
        %v2937 = vpack.c.b16 %v2809, %v2809
        %v2938 = vpack.c.b16 %v2810, %v2810
        %v2939 = vpack.c.b16 %v2811, %v2811
        %v2940 = vpack.c.b16 %v2812, %v2812
        %v2941 = vpack.c.b16 %v2813, %v2813
        %v2942 = vpack.c.b16 %v2814, %v2814
        %v2943 = vpack.c.b16 %v2815, %v2815
        %v2944 = vpack.c.b16 %v2816, %v2816
        %v2945 = vpack.c.b16 %v2817, %v2817
        %v2946 = vpack.c.b16 %v2818, %v2818
        %v2947 = vpack.c.b16 %v2819, %v2819
        %3076 = vst [vmem:[%s298] sm:$0xf] %v2820
        %3077 = vst [vmem:[%s298 + $0x4] sm:$0xf] %v2821
        %3078 = vst [vmem:[%s298 + $0x8] sm:$0xf] %v2822
        %3079 = vst [vmem:[%s298 + $0xc] sm:$0xf] %v2823
        %3080 = vst [vmem:[%s298 + $0x10] sm:$0xf] %v2824
        %3081 = vst [vmem:[%s298 + $0x14] sm:$0xf] %v2825
        %3082 = vst [vmem:[%s298 + $0x18] sm:$0xf] %v2826
        %3083 = vst [vmem:[%s298 + $0x1c] sm:$0xf] %v2827
        %3084 = vst [vmem:[%s298 + $0x20] sm:$0xf] %v2828
        %3085 = vst [vmem:[%s298 + $0x24] sm:$0xf] %v2829
        %3086 = vst [vmem:[%s298 + $0x28] sm:$0xf] %v2830
        %3087 = vst [vmem:[%s298 + $0x2c] sm:$0xf] %v2831
        %3088 = vst [vmem:[%s298 + $0x30] sm:$0xf] %v2832
        %3089 = vst [vmem:[%s298 + $0x34] sm:$0xf] %v2833
        %3090 = vst [vmem:[%s298 + $0x38] sm:$0xf] %v2834
        %3091 = vst [vmem:[%s298 + $0x3c] sm:$0xf] %v2835
        %3092 = vst [vmem:[%s298 + $0x40] sm:$0xf] %v2836
        %3093 = vst [vmem:[%s298 + $0x44] sm:$0xf] %v2837
        %3094 = vst [vmem:[%s298 + $0x48] sm:$0xf] %v2838
        %3095 = vst [vmem:[%s298 + $0x4c] sm:$0xf] %v2839
        %3096 = vst [vmem:[%s298 + $0x50] sm:$0xf] %v2840
        %3097 = vst [vmem:[%s298 + $0x54] sm:$0xf] %v2841
        %3098 = vst [vmem:[%s298 + $0x58] sm:$0xf] %v2842
        %3099 = vst [vmem:[%s298 + $0x5c] sm:$0xf] %v2843
        %3100 = vst [vmem:[%s298 + $0x60] sm:$0xf] %v2844
        %3101 = vst [vmem:[%s298 + $0x64] sm:$0xf] %v2845
        %3102 = vst [vmem:[%s298 + $0x68] sm:$0xf] %v2846
        %3103 = vst [vmem:[%s298 + $0x6c] sm:$0xf] %v2847
        %3104 = vst [vmem:[%s298 + $0x70] sm:$0xf] %v2848
        %3105 = vst [vmem:[%s298 + $0x74] sm:$0xf] %v2849
        %3106 = vst [vmem:[%s298 + $0x78] sm:$0xf] %v2850
        %3107 = vst [vmem:[%s298 + $0x7c] sm:$0xf] %v2851
        %3108 = vst [vmem:[%s298 + $0x80] sm:$0xf] %v2852
        %3109 = vst [vmem:[%s298 + $0x84] sm:$0xf] %v2853
        %3110 = vst [vmem:[%s298 + $0x88] sm:$0xf] %v2854
        %3111 = vst [vmem:[%s298 + $0x8c] sm:$0xf] %v2855
        %3112 = vst [vmem:[%s298 + $0x90] sm:$0xf] %v2856
        %3113 = vst [vmem:[%s298 + $0x94] sm:$0xf] %v2857
        %3114 = vst [vmem:[%s298 + $0x98] sm:$0xf] %v2858
        %3115 = vst [vmem:[%s298 + $0x9c] sm:$0xf] %v2859
        %3116 = vst [vmem:[%s298 + $0xa0] sm:$0xf] %v2860
        %3117 = vst [vmem:[%s298 + $0xa4] sm:$0xf] %v2861
        %3118 = vst [vmem:[%s298 + $0xa8] sm:$0xf] %v2862
        %3119 = vst [vmem:[%s298 + $0xac] sm:$0xf] %v2863
        %3120 = vst [vmem:[%s298 + $0xb0] sm:$0xf] %v2864
        %3121 = vst [vmem:[%s298 + $0xb4] sm:$0xf] %v2865
        %3122 = vst [vmem:[%s298 + $0xb8] sm:$0xf] %v2866
        %3123 = vst [vmem:[%s298 + $0xbc] sm:$0xf] %v2867
        %3124 = vst [vmem:[%s298 + $0xc0] sm:$0xf] %v2868
        %3125 = vst [vmem:[%s298 + $0xc4] sm:$0xf] %v2869
        %3126 = vst [vmem:[%s298 + $0xc8] sm:$0xf] %v2870
        %3127 = vst [vmem:[%s298 + $0xcc] sm:$0xf] %v2871
        %3128 = vst [vmem:[%s298 + $0xd0] sm:$0xf] %v2872
        %3129 = vst [vmem:[%s298 + $0xd4] sm:$0xf] %v2873
        %3130 = vst [vmem:[%s298 + $0xd8] sm:$0xf] %v2874
        %3131 = vst [vmem:[%s298 + $0xdc] sm:$0xf] %v2875
        %3132 = vst [vmem:[%s298 + $0xe0] sm:$0xf] %v2876
        %3133 = vst [vmem:[%s298 + $0xe4] sm:$0xf] %v2877
        %3134 = vst [vmem:[%s298 + $0xe8] sm:$0xf] %v2878
        %3135 = vst [vmem:[%s298 + $0xec] sm:$0xf] %v2879
        %3136 = vst [vmem:[%s298 + $0xf0] sm:$0xf] %v2880
        %3137 = vst [vmem:[%s298 + $0xf4] sm:$0xf] %v2881
        %3138 = vst [vmem:[%s298 + $0xf8] sm:$0xf] %v2882
        %3139 = vst [vmem:[%s298 + $0xfc] sm:$0xf] %v2883
        %3140 = vst [vmem:[%s298 + $0x100] sm:$0xf] %v2884
        %3141 = vst [vmem:[%s298 + $0x104] sm:$0xf] %v2885
        %3142 = vst [vmem:[%s298 + $0x108] sm:$0xf] %v2886
        %3143 = vst [vmem:[%s298 + $0x10c] sm:$0xf] %v2887
        %3144 = vst [vmem:[%s298 + $0x110] sm:$0xf] %v2888
        %3145 = vst [vmem:[%s298 + $0x114] sm:$0xf] %v2889
        %3146 = vst [vmem:[%s298 + $0x118] sm:$0xf] %v2890
        %3147 = vst [vmem:[%s298 + $0x11c] sm:$0xf] %v2891
        %3148 = vst [vmem:[%s298 + $0x120] sm:$0xf] %v2892
        %3149 = vst [vmem:[%s298 + $0x124] sm:$0xf] %v2893
        %3150 = vst [vmem:[%s298 + $0x128] sm:$0xf] %v2894
        %3151 = vst [vmem:[%s298 + $0x12c] sm:$0xf] %v2895
        %3152 = vst [vmem:[%s298 + $0x130] sm:$0xf] %v2896
        %3153 = vst [vmem:[%s298 + $0x134] sm:$0xf] %v2897
        %3154 = vst [vmem:[%s298 + $0x138] sm:$0xf] %v2898
        %3155 = vst [vmem:[%s298 + $0x13c] sm:$0xf] %v2899
        %3156 = vst [vmem:[%s298 + $0x140] sm:$0xf] %v2900
        %3157 = vst [vmem:[%s298 + $0x144] sm:$0xf] %v2901
        %3158 = vst [vmem:[%s298 + $0x148] sm:$0xf] %v2902
        %3159 = vst [vmem:[%s298 + $0x14c] sm:$0xf] %v2903
        %3160 = vst [vmem:[%s298 + $0x150] sm:$0xf] %v2904
        %3161 = vst [vmem:[%s298 + $0x154] sm:$0xf] %v2905
        %3162 = vst [vmem:[%s298 + $0x158] sm:$0xf] %v2906
        %3163 = vst [vmem:[%s298 + $0x15c] sm:$0xf] %v2907
        %3164 = vst [vmem:[%s298 + $0x160] sm:$0xf] %v2908
        %3165 = vst [vmem:[%s298 + $0x164] sm:$0xf] %v2909
        %3166 = vst [vmem:[%s298 + $0x168] sm:$0xf] %v2910
        %3167 = vst [vmem:[%s298 + $0x16c] sm:$0xf] %v2911
        %3168 = vst [vmem:[%s298 + $0x170] sm:$0xf] %v2912
        %3169 = vst [vmem:[%s298 + $0x174] sm:$0xf] %v2913
        %3170 = vst [vmem:[%s298 + $0x178] sm:$0xf] %v2914
        %3171 = vst [vmem:[%s298 + $0x17c] sm:$0xf] %v2915
        %3172 = vst [vmem:[%s298 + $0x180] sm:$0xf] %v2916
        %3173 = vst [vmem:[%s298 + $0x184] sm:$0xf] %v2917
        %3174 = vst [vmem:[%s298 + $0x188] sm:$0xf] %v2918
        %3175 = vst [vmem:[%s298 + $0x18c] sm:$0xf] %v2919
        %3176 = vst [vmem:[%s298 + $0x190] sm:$0xf] %v2920
        %3177 = vst [vmem:[%s298 + $0x194] sm:$0xf] %v2921
        %3178 = vst [vmem:[%s298 + $0x198] sm:$0xf] %v2922
        %3179 = vst [vmem:[%s298 + $0x19c] sm:$0xf] %v2923
        %3180 = vst [vmem:[%s298 + $0x1a0] sm:$0xf] %v2924
        %3181 = vst [vmem:[%s298 + $0x1a4] sm:$0xf] %v2925
        %3182 = vst [vmem:[%s298 + $0x1a8] sm:$0xf] %v2926
        %3183 = vst [vmem:[%s298 + $0x1ac] sm:$0xf] %v2927
        %3184 = vst [vmem:[%s298 + $0x1b0] sm:$0xf] %v2928
        %3185 = vst [vmem:[%s298 + $0x1b4] sm:$0xf] %v2929
        %3186 = vst [vmem:[%s298 + $0x1b8] sm:$0xf] %v2930
        %3187 = vst [vmem:[%s298 + $0x1bc] sm:$0xf] %v2931
        %3188 = vst [vmem:[%s298 + $0x1c0] sm:$0xf] %v2932
        %3189 = vst [vmem:[%s298 + $0x1c4] sm:$0xf] %v2933
        %3190 = vst [vmem:[%s298 + $0x1c8] sm:$0xf] %v2934
        %3191 = vst [vmem:[%s298 + $0x1cc] sm:$0xf] %v2935
        %3192 = vst [vmem:[%s298 + $0x1d0] sm:$0xf] %v2936
        %3193 = vst [vmem:[%s298 + $0x1d4] sm:$0xf] %v2937
        %3194 = vst [vmem:[%s298 + $0x1d8] sm:$0xf] %v2938
        %3195 = vst [vmem:[%s298 + $0x1dc] sm:$0xf] %v2939
        %3196 = vst [vmem:[%s298 + $0x1e0] sm:$0xf] %v2940
        %3197 = vst [vmem:[%s298 + $0x1e4] sm:$0xf] %v2941
        %3198 = vst [vmem:[%s298 + $0x1e8] sm:$0xf] %v2942
        %3199 = vst [vmem:[%s298 + $0x1ec] sm:$0xf] %v2943
        %3200 = vst [vmem:[%s298 + $0x1f0] sm:$0xf] %v2944
        %3201 = vst [vmem:[%s298 + $0x1f4] sm:$0xf] %v2945
        %3202 = vst [vmem:[%s298 + $0x1f8] sm:$0xf] %v2946
        %3203 = vst [vmem:[%s298 + $0x1fc] sm:$0xf] %v2947
      $region44: #{_conv1x1_p.1} parent=35 // pred_fallthru
        _
      %s3204 = smul.u32 128, %s20
      %p3205 = scmp.lt.s32.totalorder %s3204, 1151
      %s3206 = scalar_select %p3205, %s3204, 1151
      %p3207 = scmp.lt.s32.totalorder %s21, 0
      %s3208 = scalar_select %p3207, %s21, 0
      %s3209 = sadd.s32 %s3208, %s3206
      %s3210 = smul.addr %s3209, 4
      %s3211 = scalar_lea.vmem %s4, %s3210
      // Predicated region
      $region45: #{_conv1x1_p.1} parent=35 // pred_check
        %p3212 = pneg %p162
      $region46: #{_conv1x1_p.1} parent=35 // pred_check_branch
        %3214 = sbr.rel (%p3212) target = $region48
      $region47: #{_conv1x1_p.1} parent=35 // pred_region
        %s3215 = smul.u32 128, %s20
      $region48: #{_conv1x1_p.1} parent=35 // pred_fallthru
        _
    $region36: #{_conv1x1_p.1} parent=5 // pred_fallthru
      _
    %p3216 = scmp.le.s32.totalorder 2, %s10
    // Predicated region
    $region49: #{_conv1x1_p.1} parent=5 // pred_check
      %p3217 = pneg %p3216
    $region50: #{_conv1x1_p.1} parent=5 // pred_check_branch
      %3219 = sbr.rel (%p3217) target = $region52
    $region51: #{_conv1x1_p.1} parent=5 // pred_region
      %s3220 = ssub.s32 %s10, 2
      // Predicated region
      $region53: #{_conv1x1_p.1} parent=51 // pred_check
        %p3221 = pneg %p168
      $region54: #{_conv1x1_p.1} parent=51 // pred_check_branch
        %3223 = sbr.rel (%p3221) target = $region56
      $region55: #{_conv1x1_p.1} parent=51 // pred_region
        %s3224 = smul.u32 128, %s23
        %p3225 = scmp.lt.s32.totalorder %s3224, 1151
        %s3226 = scalar_select %p3225, %s3224, 1151
        %p3227 = scmp.lt.s32.totalorder %s24, 0
        %s3228 = scalar_select %p3227, %s24, 0
        %s3229 = sadd.s32 %s3228, %s3226
        %s3230 = smul.addr %s3229, 4
        %s3231 = scalar_lea.vmem %s4, %s3230
      $region56: #{_conv1x1_p.1} parent=51 // pred_fallthru
        _
    $region52: #{_conv1x1_p.1} parent=5 // pred_fallthru
      _
  $region6: #{_conv1x1_p.1} parent=0 // loop_footer
    %s14 = sadd.s32 1, %s10
  $region7: #{_conv1x1_p.1} parent=0 // loop_footer_branch
    %9 = sbr.rel target = $region3
  $region8: #{_conv1x1_p.1} parent=0 // loop_exit
    _

</llo_original>
